<compile_context>
chip_gen: v5e
topology: v5e:2x2
jax: 0.10.0
libtpu: 0.0.40
codegen_flags: <defaults>
</compile_context>

<pallas_src>
import functools

import jax
import jax.numpy as jnp
from jax.experimental import pallas as pl
from jax.experimental.pallas import tpu as pltpu


# Transposed-conv phase/tap table for k=4, s=2, p=1 (validated against PyTorch):
#   output parity -> ((row/col offset into zero-padded y, kernel row/col index), ...)
_UP_TAPS = {0: ((0, 3), (1, 1)), 1: ((1, 2), (2, 0))}


# ------------------------------------------------------------------------------
# Kernel 1: fused LeakyReLU -> Conv(4,4,s2,p1) -> ReLU -> ConvTranspose(4,4,s2,p1)
#           (phase decomposed) -> BatchNorm partial statistics (sum / sumsq).
# One grid step per Nb-image batch tile; all per-tile tensors stay in VMEM.
# ------------------------------------------------------------------------------
def _fused_unet_inner_kernel(xpar_ref, wd_ref, wu_ref,            # inputs
                             u_ref, s_ref, ss_ref,                # outputs
                             ypad_ref,                            # VMEM scratch
                             *, Nb, Ho, Wo, Cin, inner_nc, outer_nc, compute_dtype):
    f32 = jnp.float32
    cdt = compute_dtype
    M = Nb * Ho * Wo

    # ---- down path: LeakyReLU -> Conv -> ReLU --------------------------------
    # x_pad was parity-split in the wrapper: x_pad[2a+pi, 2b+pj] == xpar[2*pi+pj, a, b],
    # so every tap is a contiguous window.  The 4 (di,dj) taps of a parity are fused
    # along K: operand (Nb*Ho*Wo, 4*Cin) @ weight (4*Cin, inner)  -> 4 GEMMs, not 16.
    acc = jnp.zeros((M, inner_nc), f32)
    for pi in range(2):
        for pj in range(2):
            p = 2 * pi + pj
            xa = xpar_ref[:, p]                                   # (Nb, Hh, Wh, Cin) f32
            xa = jnp.where(xa >= 0, xa, 0.2 * xa)                 # LeakyReLU, once per slab
            wins = [xa[:, di:di + Ho, dj:dj + Wo, :]
                    for di in range(2) for dj in range(2)]        # 4 x (Nb, Ho, Wo, Cin)
            a = jnp.concatenate(wins, axis=-1)                    # (Nb, Ho, Wo, 4*Cin)
            a = a.reshape(M, 4 * Cin).astype(cdt)
            acc = acc + jnp.dot(a, wd_ref[p], preferred_element_type=f32)
    y = jnp.maximum(acc, 0.0)                                     # ReLU

    # zero-padded y (pad=1 each side) in VMEM scratch; only the thin border is zeroed.
    ypad_ref[:, 0:1] = jnp.zeros((Nb, 1, Wo + 2, inner_nc), f32)
    ypad_ref[:, Ho + 1:Ho + 2] = jnp.zeros((Nb, 1, Wo + 2, inner_nc), f32)
    ypad_ref[:, :, 0:1, :] = jnp.zeros((Nb, Ho + 2, 1, inner_nc), f32)
    ypad_ref[:, :, Wo + 1:Wo + 2, :] = jnp.zeros((Nb, Ho + 2, 1, inner_nc), f32)
    ypad_ref[:, 1:Ho + 1, 1:Wo + 1, :] = y.reshape(Nb, Ho, Wo, inner_nc)

    # ---- up path: ConvTranspose2d(4,4,s2,p1) as 4 output-parity phases --------
    #   u[2m+py, 2n+px] = sum over 2x2 taps  y_pad[m+ro, n+co] @ Wu[kh, kw]
    # The 4 taps of a phase are fused along K: (M, 4*inner) @ (4*inner, outer).
    s_acc = jnp.zeros((1, outer_nc), f32)
    ss_acc = jnp.zeros((1, outer_nc), f32)
    for py in range(2):
        for px in range(2):
            wins = [ypad_ref[:, ro:ro + Ho, co:co + Wo, :]
                    for ro, _ in _UP_TAPS[py] for co, _ in _UP_TAPS[px]]
            a = jnp.concatenate(wins, axis=-1)                    # (Nb, Ho, Wo, 4*inner)
            a = a.reshape(M, 4 * inner_nc).astype(cdt)
            ph = jnp.dot(a, wu_ref[2 * py + px], preferred_element_type=f32)  # (M, outer)
            # (Nb, Ho, 2, Wo, 2*outer) layout -> free metadata reshape to NHWC later.
            u_ref[:, :, py, :, px * outer_nc:(px + 1) * outer_nc] = (
                ph.reshape(Nb, Ho, Wo, outer_nc).astype(u_ref.dtype))
            # BatchNorm sum / sum-of-squares fused into the GEMM epilogue (f32).
            s_acc = s_acc + jnp.sum(ph, axis=0, keepdims=True)
            ss_acc = ss_acc + jnp.sum(ph * ph, axis=0, keepdims=True)

    s_ref[0] = s_acc
    ss_ref[0] = ss_acc


# ------------------------------------------------------------------------------
# Kernel 2: fused BatchNorm normalisation + skip-connection concat (NHWC output).
# ------------------------------------------------------------------------------
def _bn_concat_kernel(x_ref, u_ref, scale_ref, shift_ref, o_ref, *, Cin, Cout):
    # out[..., :Cin]  = x                        (identity / skip)
    # out[..., Cin:]  = u * scale + shift        (BatchNorm with batch statistics)
    o_ref[0, :, :, 0:Cin] = x_ref[0].astype(o_ref.dtype)
    u = u_ref[0].astype(jnp.float32)
    o_ref[0, :, :, Cin:Cin + Cout] = (u * scale_ref[...] + shift_ref[...]).astype(o_ref.dtype)


# ------------------------------------------------------------------------------
# pallas_call wrappers
# ------------------------------------------------------------------------------
def _pick_batch_tile(N, Ho, Wo, max_rows=512):
    """Largest divisor Nb of N such that the GEMM M dim (Nb*Ho*Wo) stays moderate while
    keeping >= 2 grid steps (megacore sharding / pipeline overlap) whenever N > 1."""
    nb = 1
    for d in range(1, N + 1):
        if N % d:
            continue
        if d * Ho * Wo > max_rows:
            break
        if d > 1 and N // d < 2:
            break
        nb = d
    return nb


def _fused_down_up_stats(x_par, wd_par, wu_par, *, Nb, Ho, Wo, compute_dtype):
    N = x_par.shape[0]
    Cin = x_par.shape[-1]
    inner_nc = wd_par.shape[-1]
    outer_nc = wu_par.shape[-1]
    Hh, Wh = Ho + 1, Wo + 1
    nblk = N // Nb

    kern = functools.partial(
        _fused_unet_inner_kernel, Nb=Nb, Ho=Ho, Wo=Wo, Cin=Cin,
        inner_nc=inner_nc, outer_nc=outer_nc, compute_dtype=compute_dtype)

    return pl.pallas_call(
        kern,
        out_shape=(
            # u, stored in compute_dtype; layout reshapes to NHWC for free.
            jax.ShapeDtypeStruct((N, Ho, 2, Wo, 2 * outer_nc), compute_dtype),
            jax.ShapeDtypeStruct((nblk, 1, outer_nc), jnp.float32),   # per-tile sum
            jax.ShapeDtypeStruct((nblk, 1, outer_nc), jnp.float32),   # per-tile sumsq
        ),
        grid_spec=pltpu.PrefetchScalarGridSpec(
            num_scalar_prefetch=0,
            grid=(nblk,),
            in_specs=[
                pl.BlockSpec((Nb, 4, Hh, Wh, Cin), lambda b: (b, 0, 0, 0, 0)),
                # weights: constant index_map -> block stays resident across the grid.
                # TODO(synk): pipeline_mode=pl.Buffered(1) would halve resident-weight
                # VMEM at 512-channel sizes.
                pl.BlockSpec((4, 4 * Cin, inner_nc), lambda b: (0, 0, 0)),
                pl.BlockSpec((4, 4 * inner_nc, outer_nc), lambda b: (0, 0, 0)),
            ],
            out_specs=[
                pl.BlockSpec((Nb, Ho, 2, Wo, 2 * outer_nc), lambda b: (b, 0, 0, 0, 0)),
                pl.BlockSpec((1, 1, outer_nc), lambda b: (b, 0, 0)),
                pl.BlockSpec((1, 1, outer_nc), lambda b: (b, 0, 0)),
            ],
            scratch_shapes=[pltpu.VMEM((Nb, Ho + 2, Wo + 2, inner_nc), jnp.float32)],
        ),
        compiler_params=pltpu.CompilerParams(
            dimension_semantics=("parallel",),
            vmem_limit_bytes=64 * 1024 * 1024),
    )(x_par, wd_par, wu_par)


def _bn_concat(x_nhwc, u_nhwc, scale, shift):
    N, H, W, Cin = x_nhwc.shape
    Cout = u_nhwc.shape[-1]
    kern = functools.partial(_bn_concat_kernel, Cin=Cin, Cout=Cout)
    return pl.pallas_call(
        kern,
        out_shape=jax.ShapeDtypeStruct((N, H, W, Cin + Cout), jnp.float32),
        grid_spec=pltpu.PrefetchScalarGridSpec(
            num_scalar_prefetch=0,
            grid=(N,),
            in_specs=[
                pl.BlockSpec((1, H, W, Cin), lambda b: (b, 0, 0, 0)),
                pl.BlockSpec((1, H, W, Cout), lambda b: (b, 0, 0, 0)),
                pl.BlockSpec((1, 1, Cout), lambda b: (0, 0, 0)),
                pl.BlockSpec((1, 1, Cout), lambda b: (0, 0, 0)),
            ],
            out_specs=pl.BlockSpec((1, H, W, Cin + Cout), lambda b: (b, 0, 0, 0)),
        ),
        compiler_params=pltpu.CompilerParams(
            dimension_semantics=("parallel",),
            vmem_limit_bytes=64 * 1024 * 1024),
    )(x_nhwc, u_nhwc, scale, shift)


# ------------------------------------------------------------------------------
# Public forward: NCHW in / NCHW out (PyTorch convention)
# ------------------------------------------------------------------------------
@functools.partial(jax.jit, static_argnames=("compute_dtype",))
def unet_innermost_forward(x_nchw, params, *, compute_dtype=jnp.bfloat16, eps=1e-5):
    w_down = params["w_down"]            # (inner_nc, input_nc, 4, 4)   Conv2d weight
    w_up = params["w_up"]                # (inner_nc, outer_nc, 4, 4)   ConvTranspose2d weight
    gamma = params["gamma"].astype(jnp.float32)
    beta = params["beta"].astype(jnp.float32)

    inner_nc, Cin = w_down.shape[0], w_down.shape[1]
    outer_nc = w_up.shape[1]

    N, Cx, H, W = x_nchw.shape
    assert Cx == Cin and H % 2 == 0 and W % 2 == 0
    Ho, Wo = H // 2, W // 2
    Hh, Wh = Ho + 1, Wo + 1

    x_nhwc = jnp.transpose(x_nchw, (0, 2, 3, 1)).astype(jnp.float32)

    # parity-split, zero-padded (pad=1) input for contiguous in-kernel tap windows:
    #   x_par[n, 2*pi+pj, a, b, c] = x_pad[n, 2a+pi, 2b+pj, c]
    # TODO(synk): pass pre-padded NHWC input to collapse the transpose+pad+parity split
    # into fewer HBM passes over x when this block is embedded in the full UNet.
    x_pad = jnp.pad(x_nhwc, ((0, 0), (1, 1), (1, 1), (0, 0)))
    x_par = (x_pad.reshape(N, Hh, 2, Wh, 2, Cin)
                  .transpose(0, 2, 4, 1, 3, 5)
                  .reshape(N, 4, Hh, Wh, Cin))

    # down-conv weights: per input parity, the 4 (di,dj) taps fused along K.
    wd = jnp.transpose(w_down, (2, 3, 1, 0))                      # (kh, kw, Cin, inner)
    wd_par = jnp.stack(
        [jnp.concatenate([wd[2 * di + pi, 2 * dj + pj]
                          for di in range(2) for dj in range(2)], axis=0)
         for pi in range(2) for pj in range(2)], axis=0).astype(compute_dtype)  # (4, 4*Cin, inner)

    # up-conv weights: per output parity, the 2x2 taps fused along K (window order
    # matches the in-kernel concat order exactly).
    wu = jnp.transpose(w_up, (2, 3, 0, 1))                        # (kh, kw, inner, outer)
    wu_par = jnp.stack(
        [jnp.concatenate([wu[kh, kw]
                          for _, kh in _UP_TAPS[py] for _, kw in _UP_TAPS[px]], axis=0)
         for py in range(2) for px in range(2)], axis=0).astype(compute_dtype)  # (4, 4*inner, outer)

    Nb = _pick_batch_tile(N, Ho, Wo)

    u5, s, ss = _fused_down_up_stats(x_par, wd_par, wu_par,
                                     Nb=Nb, Ho=Ho, Wo=Wo, compute_dtype=compute_dtype)

    # BatchNorm (training-mode batch statistics, biased variance) from fused partial sums
    count = jnp.asarray(N * H * W, jnp.float32)
    mean = jnp.sum(s, axis=(0, 1)) / count
    var = jnp.maximum(jnp.sum(ss, axis=(0, 1)) / count - mean * mean, 0.0)
    inv = jax.lax.rsqrt(var + eps)
    scale = (gamma * inv).reshape(1, 1, outer_nc)
    shift = (beta - mean * gamma * inv).reshape(1, 1, outer_nc)

    # (N, Ho, 2, Wo, 2*outer) -> NHWC is a pure row-major metadata reshape: no extra
    # HBM relayout pass over u between the two kernels.
    u_nhwc = u5.reshape(N, H, W, outer_nc)

    out_nhwc = _bn_concat(x_nhwc, u_nhwc, scale, shift)
    return jnp.transpose(out_nhwc, (0, 3, 1, 2))       # back to NCHW


# ------------------------------------------------------------------------------
# pure-JAX reference (matches the PyTorch module in training mode)
# ------------------------------------------------------------------------------
def reference_forward(x_nchw, params):
    x = x_nchw.astype(jnp.float32)
    y = jnp.where(x >= 0, x, 0.2 * x)
    y = jax.lax.conv_general_dilated(
        y, params["w_down"], (2, 2), ((1, 1), (1, 1)),
        dimension_numbers=("NCHW", "OIHW", "NCHW"))
    y = jnp.maximum(y, 0.0)
    w_conv = jnp.transpose(jnp.flip(params["w_up"], axis=(2, 3)), (1, 0, 2, 3))
    u = jax.lax.conv_general_dilated(
        y, w_conv, (1, 1), ((2, 2), (2, 2)), lhs_dilation=(2, 2),
        dimension_numbers=("NCHW", "OIHW", "NCHW"))
    mean = u.mean(axis=(0, 2, 3), keepdims=True)
    var = ((u - mean) ** 2).mean(axis=(0, 2, 3), keepdims=True)
    u = (u - mean) * jax.lax.rsqrt(var + 1e-5)
    u = u * params["gamma"].reshape(1, -1, 1, 1) + params["beta"].reshape(1, -1, 1, 1)
    return jnp.concatenate([x, u], axis=1)


# ------------------------------------------------------------------------------
if __name__ == "__main__":
    key = jax.random.PRNGKey(0)
    N, outer_nc, inner_nc, H, W = 4, 4, 8, 16, 16     # N=4 exercises the Nb=2 batch tile
    input_nc = outer_nc                               # input_nc defaults to outer_nc

    k1, k2, k3 = jax.random.split(key, 3)
    params = {
        # Conv2d(input_nc, inner_nc, 4, 2, 1, bias=False) weight: (out, in, kh, kw)
        "w_down": 0.1 * jax.random.normal(k1, (inner_nc, input_nc, 4, 4), jnp.float32),
        # ConvTranspose2d(inner_nc, outer_nc, 4, 2, 1, bias=False) weight: (in, out, kh, kw)
        "w_up": 0.1 * jax.random.normal(k2, (inner_nc, outer_nc, 4, 4), jnp.float32),
        # BatchNorm2d(outer_nc) affine params at init
        "gamma": jnp.ones((outer_nc,), jnp.float32),
        "beta": jnp.zeros((outer_nc,), jnp.float32),
    }
    x = jax.random.normal(k3, (N, input_nc, H, W), jnp.float32)

    ref = jax.block_until_ready(reference_forward(x, params))

    # f32 MXU-operand / f32 u-storage path: strict correctness check
    out_f32 = jax.block_until_ready(
        unet_innermost_forward(x, params, compute_dtype=jnp.float32))
    assert out_f32.shape == (N, input_nc + outer_nc, H, W), out_f32.shape
    assert jnp.allclose(out_f32, ref, rtol=1e-3, atol=1e-3), \
        f"f32 max abs err {jnp.max(jnp.abs(out_f32 - ref))}"

    # bf16 MXU-operand / bf16 u-storage path (perf mode; f32 accumulation everywhere)
    out_bf16 = jax.block_until_ready(
        unet_innermost_forward(x, params, compute_dtype=jnp.bfloat16))
    assert jnp.allclose(out_bf16, ref, rtol=1e-1, atol=1e-1), \
        f"bf16 max abs err {jnp.max(jnp.abs(out_bf16 - ref))}"

    print("KERNEL_OK")
</pallas_src>

<mosaic_0001>
module attributes {stable_mosaic.version = 11 : i64} {
  func.func @_fused_unet_inner_kernel(%arg0: i32, %arg1: memref<2x4x9x9x4xf32, #tpu.memory_space<vmem>>, %arg2: memref<4x16x8xf32, #tpu.memory_space<vmem>>, %arg3: memref<4x32x4xf32, #tpu.memory_space<vmem>>, %arg4: memref<2x8x2x8x8xf32, #tpu.memory_space<vmem>>, %arg5: memref<1x1x4xf32, #tpu.memory_space<vmem>>, %arg6: memref<1x1x4xf32, #tpu.memory_space<vmem>>, %arg7: memref<2x10x10x8xf32, #tpu.memory_space<vmem>>) attributes {dimension_semantics = [#tpu.dimension_semantics<parallel>], iteration_bounds = array<i64: 2>, scalar_prefetch = 0 : i64, scratch_operands = 1 : i64, tpu.core_type = #tpu.core_type<tc>, window_params = [{transform_indices = @transform_0, window_bounds = array<i64: 2, 4, 9, 9, 4>}, {pipeline_mode = #tpu.pipeline_mode<synchronous>, transform_indices = @transform_1, window_bounds = array<i64: 4, 16, 8>}, {pipeline_mode = #tpu.pipeline_mode<synchronous>, transform_indices = @transform_2, window_bounds = array<i64: 4, 32, 4>}, {transform_indices = @transform_3, window_bounds = array<i64: 2, 8, 2, 8, 8>}, {transform_indices = @transform_4, window_bounds = array<i64: 1, 1, 4>}, {transform_indices = @transform_5, window_bounds = array<i64: 1, 1, 4>}]} {
    %cst = arith.constant 0.000000e+00 : f32
    %0 = vector.broadcast %cst : f32 to vector<128x8xf32>
    %c0 = arith.constant 0 : index
    %c0_0 = arith.constant 0 : index
    %c0_1 = arith.constant 0 : index
    %c0_2 = arith.constant 0 : index
    %c0_3 = arith.constant 0 : index
    %1 = vector.load %arg1[%c0, %c0_0, %c0_1, %c0_2, %c0_3] : memref<2x4x9x9x4xf32, #tpu.memory_space<vmem>>, vector<2x1x9x9x4xf32>
    %2 = vector.shape_cast %1 : vector<2x1x9x9x4xf32> to vector<2x9x9x4xf32>
    %cst_4 = arith.constant 0.000000e+00 : f32
    %3 = vector.broadcast %cst_4 : f32 to vector<2x9x9x4xf32>
    %4 = arith.cmpf oge, %2, %3 : vector<2x9x9x4xf32>
    %cst_5 = arith.constant 2.000000e-01 : f32
    %5 = vector.broadcast %cst_5 : f32 to vector<2x9x9x4xf32>
    %6 = arith.mulf %5, %2 : vector<2x9x9x4xf32>
    %7 = arith.select %4, %2, %6 : vector<2x9x9x4xi1>, vector<2x9x9x4xf32>
    %8 = vector.extract_strided_slice %7 {offsets = [0, 0, 0, 0], sizes = [2, 8, 8, 4], strides = [1, 1, 1, 1]} : vector<2x9x9x4xf32> to vector<2x8x8x4xf32>
    %9 = vector.extract_strided_slice %7 {offsets = [0, 0, 1, 0], sizes = [2, 8, 8, 4], strides = [1, 1, 1, 1]} : vector<2x9x9x4xf32> to vector<2x8x8x4xf32>
    %10 = vector.extract_strided_slice %7 {offsets = [0, 1, 0, 0], sizes = [2, 8, 8, 4], strides = [1, 1, 1, 1]} : vector<2x9x9x4xf32> to vector<2x8x8x4xf32>
    %11 = vector.extract_strided_slice %7 {offsets = [0, 1, 1, 0], sizes = [2, 8, 8, 4], strides = [1, 1, 1, 1]} : vector<2x9x9x4xf32> to vector<2x8x8x4xf32>
    %12 = tpu.concatenate %8, %9, %10, %11 in 3 : vector<2x8x8x4xf32>, vector<2x8x8x4xf32>, vector<2x8x8x4xf32>, vector<2x8x8x4xf32> -> vector<2x8x8x16xf32>
    %13 = vector.shape_cast %12 : vector<2x8x8x16xf32> to vector<128x16xf32>
    %c0_6 = arith.constant 0 : index
    %c0_7 = arith.constant 0 : index
    %c0_8 = arith.constant 0 : index
    %14 = vector.load %arg2[%c0_6, %c0_7, %c0_8] : memref<4x16x8xf32, #tpu.memory_space<vmem>>, vector<1x16x8xf32>
    %15 = vector.shape_cast %14 : vector<1x16x8xf32> to vector<16x8xf32>
    %cst_9 = arith.constant dense<0.000000e+00> : vector<128x8xf32>
    %16 = tpu.matmul %13, %15, %cst_9 {dimension_numbers = #tpu.dot_dimension_numbers<[1], [0], [0], [1], [0, 0, 1, 1], [], []>} : vector<128x16xf32>, vector<16x8xf32>, vector<128x8xf32> -> vector<128x8xf32>
    %17 = arith.addf %0, %16 : vector<128x8xf32>
    %c0_10 = arith.constant 0 : index
    %c1 = arith.constant 1 : index
    %c0_11 = arith.constant 0 : index
    %c0_12 = arith.constant 0 : index
    %c0_13 = arith.constant 0 : index
    %18 = vector.load %arg1[%c0_10, %c1, %c0_11, %c0_12, %c0_13] : memref<2x4x9x9x4xf32, #tpu.memory_space<vmem>>, vector<2x1x9x9x4xf32>
    %19 = vector.shape_cast %18 : vector<2x1x9x9x4xf32> to vector<2x9x9x4xf32>
    %cst_14 = arith.constant 0.000000e+00 : f32
    %20 = vector.broadcast %cst_14 : f32 to vector<2x9x9x4xf32>
    %21 = arith.cmpf oge, %19, %20 : vector<2x9x9x4xf32>
    %cst_15 = arith.constant 2.000000e-01 : f32
    %22 = vector.broadcast %cst_15 : f32 to vector<2x9x9x4xf32>
    %23 = arith.mulf %22, %19 : vector<2x9x9x4xf32>
    %24 = arith.select %21, %19, %23 : vector<2x9x9x4xi1>, vector<2x9x9x4xf32>
    %25 = vector.extract_strided_slice %24 {offsets = [0, 0, 0, 0], sizes = [2, 8, 8, 4], strides = [1, 1, 1, 1]} : vector<2x9x9x4xf32> to vector<2x8x8x4xf32>
    %26 = vector.extract_strided_slice %24 {offsets = [0, 0, 1, 0], sizes = [2, 8, 8, 4], strides = [1, 1, 1, 1]} : vector<2x9x9x4xf32> to vector<2x8x8x4xf32>
    %27 = vector.extract_strided_slice %24 {offsets = [0, 1, 0, 0], sizes = [2, 8, 8, 4], strides = [1, 1, 1, 1]} : vector<2x9x9x4xf32> to vector<2x8x8x4xf32>
    %28 = vector.extract_strided_slice %24 {offsets = [0, 1, 1, 0], sizes = [2, 8, 8, 4], strides = [1, 1, 1, 1]} : vector<2x9x9x4xf32> to vector<2x8x8x4xf32>
    %29 = tpu.concatenate %25, %26, %27, %28 in 3 : vector<2x8x8x4xf32>, vector<2x8x8x4xf32>, vector<2x8x8x4xf32>, vector<2x8x8x4xf32> -> vector<2x8x8x16xf32>
    %30 = vector.shape_cast %29 : vector<2x8x8x16xf32> to vector<128x16xf32>
    %c1_16 = arith.constant 1 : index
    %c0_17 = arith.constant 0 : index
    %c0_18 = arith.constant 0 : index
    %31 = vector.load %arg2[%c1_16, %c0_17, %c0_18] : memref<4x16x8xf32, #tpu.memory_space<vmem>>, vector<1x16x8xf32>
    %32 = vector.shape_cast %31 : vector<1x16x8xf32> to vector<16x8xf32>
    %cst_19 = arith.constant dense<0.000000e+00> : vector<128x8xf32>
    %33 = tpu.matmul %30, %32, %cst_19 {dimension_numbers = #tpu.dot_dimension_numbers<[1], [0], [0], [1], [0, 0, 1, 1], [], []>} : vector<128x16xf32>, vector<16x8xf32>, vector<128x8xf32> -> vector<128x8xf32>
    %34 = arith.addf %17, %33 : vector<128x8xf32>
    %c0_20 = arith.constant 0 : index
    %c2 = arith.constant 2 : index
    %c0_21 = arith.constant 0 : index
    %c0_22 = arith.constant 0 : index
    %c0_23 = arith.constant 0 : index
    %35 = vector.load %arg1[%c0_20, %c2, %c0_21, %c0_22, %c0_23] : memref<2x4x9x9x4xf32, #tpu.memory_space<vmem>>, vector<2x1x9x9x4xf32>
    %36 = vector.shape_cast %35 : vector<2x1x9x9x4xf32> to vector<2x9x9x4xf32>
    %cst_24 = arith.constant 0.000000e+00 : f32
    %37 = vector.broadcast %cst_24 : f32 to vector<2x9x9x4xf32>
    %38 = arith.cmpf oge, %36, %37 : vector<2x9x9x4xf32>
    %cst_25 = arith.constant 2.000000e-01 : f32
    %39 = vector.broadcast %cst_25 : f32 to vector<2x9x9x4xf32>
    %40 = arith.mulf %39, %36 : vector<2x9x9x4xf32>
    %41 = arith.select %38, %36, %40 : vector<2x9x9x4xi1>, vector<2x9x9x4xf32>
    %42 = vector.extract_strided_slice %41 {offsets = [0, 0, 0, 0], sizes = [2, 8, 8, 4], strides = [1, 1, 1, 1]} : vector<2x9x9x4xf32> to vector<2x8x8x4xf32>
    %43 = vector.extract_strided_slice %41 {offsets = [0, 0, 1, 0], sizes = [2, 8, 8, 4], strides = [1, 1, 1, 1]} : vector<2x9x9x4xf32> to vector<2x8x8x4xf32>
    %44 = vector.extract_strided_slice %41 {offsets = [0, 1, 0, 0], sizes = [2, 8, 8, 4], strides = [1, 1, 1, 1]} : vector<2x9x9x4xf32> to vector<2x8x8x4xf32>
    %45 = vector.extract_strided_slice %41 {offsets = [0, 1, 1, 0], sizes = [2, 8, 8, 4], strides = [1, 1, 1, 1]} : vector<2x9x9x4xf32> to vector<2x8x8x4xf32>
    %46 = tpu.concatenate %42, %43, %44, %45 in 3 : vector<2x8x8x4xf32>, vector<2x8x8x4xf32>, vector<2x8x8x4xf32>, vector<2x8x8x4xf32> -> vector<2x8x8x16xf32>
    %47 = vector.shape_cast %46 : vector<2x8x8x16xf32> to vector<128x16xf32>
    %c2_26 = arith.constant 2 : index
    %c0_27 = arith.constant 0 : index
    %c0_28 = arith.constant 0 : index
    %48 = vector.load %arg2[%c2_26, %c0_27, %c0_28] : memref<4x16x8xf32, #tpu.memory_space<vmem>>, vector<1x16x8xf32>
    %49 = vector.shape_cast %48 : vector<1x16x8xf32> to vector<16x8xf32>
    %cst_29 = arith.constant dense<0.000000e+00> : vector<128x8xf32>
    %50 = tpu.matmul %47, %49, %cst_29 {dimension_numbers = #tpu.dot_dimension_numbers<[1], [0], [0], [1], [0, 0, 1, 1], [], []>} : vector<128x16xf32>, vector<16x8xf32>, vector<128x8xf32> -> vector<128x8xf32>
    %51 = arith.addf %34, %50 : vector<128x8xf32>
    %c0_30 = arith.constant 0 : index
    %c3 = arith.constant 3 : index
    %c0_31 = arith.constant 0 : index
    %c0_32 = arith.constant 0 : index
    %c0_33 = arith.constant 0 : index
    %52 = vector.load %arg1[%c0_30, %c3, %c0_31, %c0_32, %c0_33] : memref<2x4x9x9x4xf32, #tpu.memory_space<vmem>>, vector<2x1x9x9x4xf32>
    %53 = vector.shape_cast %52 : vector<2x1x9x9x4xf32> to vector<2x9x9x4xf32>
    %cst_34 = arith.constant 0.000000e+00 : f32
    %54 = vector.broadcast %cst_34 : f32 to vector<2x9x9x4xf32>
    %55 = arith.cmpf oge, %53, %54 : vector<2x9x9x4xf32>
    %cst_35 = arith.constant 2.000000e-01 : f32
    %56 = vector.broadcast %cst_35 : f32 to vector<2x9x9x4xf32>
    %57 = arith.mulf %56, %53 : vector<2x9x9x4xf32>
    %58 = arith.select %55, %53, %57 : vector<2x9x9x4xi1>, vector<2x9x9x4xf32>
    %59 = vector.extract_strided_slice %58 {offsets = [0, 0, 0, 0], sizes = [2, 8, 8, 4], strides = [1, 1, 1, 1]} : vector<2x9x9x4xf32> to vector<2x8x8x4xf32>
    %60 = vector.extract_strided_slice %58 {offsets = [0, 0, 1, 0], sizes = [2, 8, 8, 4], strides = [1, 1, 1, 1]} : vector<2x9x9x4xf32> to vector<2x8x8x4xf32>
    %61 = vector.extract_strided_slice %58 {offsets = [0, 1, 0, 0], sizes = [2, 8, 8, 4], strides = [1, 1, 1, 1]} : vector<2x9x9x4xf32> to vector<2x8x8x4xf32>
    %62 = vector.extract_strided_slice %58 {offsets = [0, 1, 1, 0], sizes = [2, 8, 8, 4], strides = [1, 1, 1, 1]} : vector<2x9x9x4xf32> to vector<2x8x8x4xf32>
    %63 = tpu.concatenate %59, %60, %61, %62 in 3 : vector<2x8x8x4xf32>, vector<2x8x8x4xf32>, vector<2x8x8x4xf32>, vector<2x8x8x4xf32> -> vector<2x8x8x16xf32>
    %64 = vector.shape_cast %63 : vector<2x8x8x16xf32> to vector<128x16xf32>
    %c3_36 = arith.constant 3 : index
    %c0_37 = arith.constant 0 : index
    %c0_38 = arith.constant 0 : index
    %65 = vector.load %arg2[%c3_36, %c0_37, %c0_38] : memref<4x16x8xf32, #tpu.memory_space<vmem>>, vector<1x16x8xf32>
    %66 = vector.shape_cast %65 : vector<1x16x8xf32> to vector<16x8xf32>
    %cst_39 = arith.constant dense<0.000000e+00> : vector<128x8xf32>
    %67 = tpu.matmul %64, %66, %cst_39 {dimension_numbers = #tpu.dot_dimension_numbers<[1], [0], [0], [1], [0, 0, 1, 1], [], []>} : vector<128x16xf32>, vector<16x8xf32>, vector<128x8xf32> -> vector<128x8xf32>
    %68 = arith.addf %51, %67 : vector<128x8xf32>
    %cst_40 = arith.constant 0.000000e+00 : f32
    %69 = vector.broadcast %cst_40 : f32 to vector<128x8xf32>
    %70 = arith.maximumf %68, %69 : vector<128x8xf32>
    %cst_41 = arith.constant 0.000000e+00 : f32
    %71 = vector.broadcast %cst_41 : f32 to vector<2x1x10x8xf32>
    %c0_42 = arith.constant 0 : index
    %c0_43 = arith.constant 0 : index
    %c0_44 = arith.constant 0 : index
    %c0_45 = arith.constant 0 : index
    %72 = vector.load %arg7[%c0_42, %c0_43, %c0_44, %c0_45] : memref<2x10x10x8xf32, #tpu.memory_space<vmem>>, vector<2x1x10x8xf32>
    tpu.vector_store %arg7[%c0_42, %c0_43, %c0_44, %c0_45], %71 {strides = array<i32>} : memref<2x10x10x8xf32, #tpu.memory_space<vmem>>, vector<2x1x10x8xf32>,
    %cst_46 = arith.constant 0.000000e+00 : f32
    %73 = vector.broadcast %cst_46 : f32 to vector<2x1x10x8xf32>
    %c0_47 = arith.constant 0 : index
    %c9 = arith.constant 9 : index
    %c0_48 = arith.constant 0 : index
    %c0_49 = arith.constant 0 : index
    %74 = vector.load %arg7[%c0_47, %c9, %c0_48, %c0_49] : memref<2x10x10x8xf32, #tpu.memory_space<vmem>>, vector<2x1x10x8xf32>
    tpu.vector_store %arg7[%c0_47, %c9, %c0_48, %c0_49], %73 {strides = array<i32>} : memref<2x10x10x8xf32, #tpu.memory_space<vmem>>, vector<2x1x10x8xf32>,
    %cst_50 = arith.constant 0.000000e+00 : f32
    %75 = vector.broadcast %cst_50 : f32 to vector<2x10x1x8xf32>
    %c0_51 = arith.constant 0 : index
    %c0_52 = arith.constant 0 : index
    %c0_53 = arith.constant 0 : index
    %c0_54 = arith.constant 0 : index
    %76 = vector.load %arg7[%c0_51, %c0_52, %c0_53, %c0_54] : memref<2x10x10x8xf32, #tpu.memory_space<vmem>>, vector<2x10x1x8xf32>
    tpu.vector_store %arg7[%c0_51, %c0_52, %c0_53, %c0_54], %75 {strides = array<i32>} : memref<2x10x10x8xf32, #tpu.memory_space<vmem>>, vector<2x10x1x8xf32>,
    %cst_55 = arith.constant 0.000000e+00 : f32
    %77 = vector.broadcast %cst_55 : f32 to vector<2x10x1x8xf32>
    %c0_56 = arith.constant 0 : index
    %c0_57 = arith.constant 0 : index
    %c9_58 = arith.constant 9 : index
    %c0_59 = arith.constant 0 : index
    %78 = vector.load %arg7[%c0_56, %c0_57, %c9_58, %c0_59] : memref<2x10x10x8xf32, #tpu.memory_space<vmem>>, vector<2x10x1x8xf32>
    tpu.vector_store %arg7[%c0_56, %c0_57, %c9_58, %c0_59], %77 {strides = array<i32>} : memref<2x10x10x8xf32, #tpu.memory_space<vmem>>, vector<2x10x1x8xf32>,
    %79 = vector.shape_cast %70 : vector<128x8xf32> to vector<2x8x8x8xf32>
    %c0_60 = arith.constant 0 : index
    %c1_61 = arith.constant 1 : index
    %c1_62 = arith.constant 1 : index
    %c0_63 = arith.constant 0 : index
    %80 = vector.load %arg7[%c0_60, %c1_61, %c1_62, %c0_63] : memref<2x10x10x8xf32, #tpu.memory_space<vmem>>, vector<2x8x8x8xf32>
    tpu.vector_store %arg7[%c0_60, %c1_61, %c1_62, %c0_63], %79 {strides = array<i32>} : memref<2x10x10x8xf32, #tpu.memory_space<vmem>>, vector<2x8x8x8xf32>,
    %cst_64 = arith.constant 0.000000e+00 : f32
    %81 = vector.broadcast %cst_64 : f32 to vector<1x4xf32>
    %cst_65 = arith.constant 0.000000e+00 : f32
    %82 = vector.broadcast %cst_65 : f32 to vector<1x4xf32>
    %c0_66 = arith.constant 0 : index
    %c0_67 = arith.constant 0 : index
    %c0_68 = arith.constant 0 : index
    %c0_69 = arith.constant 0 : index
    %83 = vector.load %arg7[%c0_66, %c0_67, %c0_68, %c0_69] : memref<2x10x10x8xf32, #tpu.memory_space<vmem>>, vector<2x8x8x8xf32>
    %c0_70 = arith.constant 0 : index
    %c0_71 = arith.constant 0 : index
    %c1_72 = arith.constant 1 : index
    %c0_73 = arith.constant 0 : index
    %84 = vector.load %arg7[%c0_70, %c0_71, %c1_72, %c0_73] : memref<2x10x10x8xf32, #tpu.memory_space<vmem>>, vector<2x8x8x8xf32>
    %c0_74 = arith.constant 0 : index
    %c1_75 = arith.constant 1 : index
    %c0_76 = arith.constant 0 : index
    %c0_77 = arith.constant 0 : index
    %85 = vector.load %arg7[%c0_74, %c1_75, %c0_76, %c0_77] : memref<2x10x10x8xf32, #tpu.memory_space<vmem>>, vector<2x8x8x8xf32>
    %c0_78 = arith.constant 0 : index
    %c1_79 = arith.constant 1 : index
    %c1_80 = arith.constant 1 : index
    %c0_81 = arith.constant 0 : index
    %86 = vector.load %arg7[%c0_78, %c1_79, %c1_80, %c0_81] : memref<2x10x10x8xf32, #tpu.memory_space<vmem>>, vector<2x8x8x8xf32>
    %87 = tpu.concatenate %83, %84, %85, %86 in 3 : vector<2x8x8x8xf32>, vector<2x8x8x8xf32>, vector<2x8x8x8xf32>, vector<2x8x8x8xf32> -> vector<2x8x8x32xf32>
    %88 = vector.shape_cast %87 : vector<2x8x8x32xf32> to vector<128x32xf32>
    %c0_82 = arith.constant 0 : index
    %c0_83 = arith.constant 0 : index
    %c0_84 = arith.constant 0 : index
    %89 = vector.load %arg3[%c0_82, %c0_83, %c0_84] : memref<4x32x4xf32, #tpu.memory_space<vmem>>, vector<1x32x4xf32>
    %90 = vector.shape_cast %89 : vector<1x32x4xf32> to vector<32x4xf32>
    %cst_85 = arith.constant dense<0.000000e+00> : vector<128x4xf32>
    %91 = tpu.matmul %88, %90, %cst_85 {dimension_numbers = #tpu.dot_dimension_numbers<[1], [0], [0], [1], [0, 0, 1, 1], [], []>} : vector<128x32xf32>, vector<32x4xf32>, vector<128x4xf32> -> vector<128x4xf32>
    %92 = vector.shape_cast %91 : vector<128x4xf32> to vector<2x8x8x4xf32>
    %c0_86 = arith.constant 0 : index
    %c0_87 = arith.constant 0 : index
    %c0_88 = arith.constant 0 : index
    %c0_89 = arith.constant 0 : index
    %c0_90 = arith.constant 0 : index
    %93 = vector.load %arg4[%c0_86, %c0_87, %c0_88, %c0_89, %c0_90] : memref<2x8x2x8x8xf32, #tpu.memory_space<vmem>>, vector<2x8x1x8x4xf32>
    %94 = vector.shape_cast %93 : vector<2x8x1x8x4xf32> to vector<2x8x8x4xf32>
    %95 = vector.shape_cast %92 : vector<2x8x8x4xf32> to vector<2x8x1x8x4xf32>
    tpu.vector_store %arg4[%c0_86, %c0_87, %c0_88, %c0_89, %c0_90], %95 {strides = array<i32>} : memref<2x8x2x8x8xf32, #tpu.memory_space<vmem>>, vector<2x8x1x8x4xf32>,
    %cst_91 = arith.constant dense<0.000000e+00> : vector<4xf32>
    %96 = vector.multi_reduction <add>, %91, %cst_91 [0] : vector<128x4xf32> to vector<4xf32>
    %97 = vector.shape_cast %96 : vector<4xf32> to vector<1x4xf32>
    %98 = arith.addf %81, %97 : vector<1x4xf32>
    %99 = arith.mulf %91, %91 : vector<128x4xf32>
    %cst_92 = arith.constant dense<0.000000e+00> : vector<4xf32>
    %100 = vector.multi_reduction <add>, %99, %cst_92 [0] : vector<128x4xf32> to vector<4xf32>
    %101 = vector.shape_cast %100 : vector<4xf32> to vector<1x4xf32>
    %102 = arith.addf %82, %101 : vector<1x4xf32>
    %c0_93 = arith.constant 0 : index
    %c0_94 = arith.constant 0 : index
    %c1_95 = arith.constant 1 : index
    %c0_96 = arith.constant 0 : index
    %103 = vector.load %arg7[%c0_93, %c0_94, %c1_95, %c0_96] : memref<2x10x10x8xf32, #tpu.memory_space<vmem>>, vector<2x8x8x8xf32>
    %c0_97 = arith.constant 0 : index
    %c0_98 = arith.constant 0 : index
    %c2_99 = arith.constant 2 : index
    %c0_100 = arith.constant 0 : index
    %104 = vector.load %arg7[%c0_97, %c0_98, %c2_99, %c0_100] : memref<2x10x10x8xf32, #tpu.memory_space<vmem>>, vector<2x8x8x8xf32>
    %c0_101 = arith.constant 0 : index
    %c1_102 = arith.constant 1 : index
    %c1_103 = arith.constant 1 : index
    %c0_104 = arith.constant 0 : index
    %105 = vector.load %arg7[%c0_101, %c1_102, %c1_103, %c0_104] : memref<2x10x10x8xf32, #tpu.memory_space<vmem>>, vector<2x8x8x8xf32>
    %c0_105 = arith.constant 0 : index
    %c1_106 = arith.constant 1 : index
    %c2_107 = arith.constant 2 : index
    %c0_108 = arith.constant 0 : index
    %106 = vector.load %arg7[%c0_105, %c1_106, %c2_107, %c0_108] : memref<2x10x10x8xf32, #tpu.memory_space<vmem>>, vector<2x8x8x8xf32>
    %107 = tpu.concatenate %103, %104, %105, %106 in 3 : vector<2x8x8x8xf32>, vector<2x8x8x8xf32>, vector<2x8x8x8xf32>, vector<2x8x8x8xf32> -> vector<2x8x8x32xf32>
    %108 = vector.shape_cast %107 : vector<2x8x8x32xf32> to vector<128x32xf32>
    %c1_109 = arith.constant 1 : index
    %c0_110 = arith.constant 0 : index
    %c0_111 = arith.constant 0 : index
    %109 = vector.load %arg3[%c1_109, %c0_110, %c0_111] : memref<4x32x4xf32, #tpu.memory_space<vmem>>, vector<1x32x4xf32>
    %110 = vector.shape_cast %109 : vector<1x32x4xf32> to vector<32x4xf32>
    %cst_112 = arith.constant dense<0.000000e+00> : vector<128x4xf32>
    %111 = tpu.matmul %108, %110, %cst_112 {dimension_numbers = #tpu.dot_dimension_numbers<[1], [0], [0], [1], [0, 0, 1, 1], [], []>} : vector<128x32xf32>, vector<32x4xf32>, vector<128x4xf32> -> vector<128x4xf32>
    %112 = vector.shape_cast %111 : vector<128x4xf32> to vector<2x8x8x4xf32>
    %c0_113 = arith.constant 0 : index
    %c0_114 = arith.constant 0 : index
    %c0_115 = arith.constant 0 : index
    %c0_116 = arith.constant 0 : index
    %c4 = arith.constant 4 : index
    %113 = vector.load %arg4[%c0_113, %c0_114, %c0_115, %c0_116, %c4] : memref<2x8x2x8x8xf32, #tpu.memory_space<vmem>>, vector<2x8x1x8x4xf32>
    %114 = vector.shape_cast %113 : vector<2x8x1x8x4xf32> to vector<2x8x8x4xf32>
    %115 = vector.shape_cast %112 : vector<2x8x8x4xf32> to vector<2x8x1x8x4xf32>
    tpu.vector_store %arg4[%c0_113, %c0_114, %c0_115, %c0_116, %c4], %115 {strides = array<i32>} : memref<2x8x2x8x8xf32, #tpu.memory_space<vmem>>, vector<2x8x1x8x4xf32>,
    %cst_117 = arith.constant dense<0.000000e+00> : vector<4xf32>
    %116 = vector.multi_reduction <add>, %111, %cst_117 [0] : vector<128x4xf32> to vector<4xf32>
    %117 = vector.shape_cast %116 : vector<4xf32> to vector<1x4xf32>
    %118 = arith.addf %98, %117 : vector<1x4xf32>
    %119 = arith.mulf %111, %111 : vector<128x4xf32>
    %cst_118 = arith.constant dense<0.000000e+00> : vector<4xf32>
    %120 = vector.multi_reduction <add>, %119, %cst_118 [0] : vector<128x4xf32> to vector<4xf32>
    %121 = vector.shape_cast %120 : vector<4xf32> to vector<1x4xf32>
    %122 = arith.addf %102, %121 : vector<1x4xf32>
    %c0_119 = arith.constant 0 : index
    %c1_120 = arith.constant 1 : index
    %c0_121 = arith.constant 0 : index
    %c0_122 = arith.constant 0 : index
    %123 = vector.load %arg7[%c0_119, %c1_120, %c0_121, %c0_122] : memref<2x10x10x8xf32, #tpu.memory_space<vmem>>, vector<2x8x8x8xf32>
    %c0_123 = arith.constant 0 : index
    %c1_124 = arith.constant 1 : index
    %c1_125 = arith.constant 1 : index
    %c0_126 = arith.constant 0 : index
    %124 = vector.load %arg7[%c0_123, %c1_124, %c1_125, %c0_126] : memref<2x10x10x8xf32, #tpu.memory_space<vmem>>, vector<2x8x8x8xf32>
    %c0_127 = arith.constant 0 : index
    %c2_128 = arith.constant 2 : index
    %c0_129 = arith.constant 0 : index
    %c0_130 = arith.constant 0 : index
    %125 = vector.load %arg7[%c0_127, %c2_128, %c0_129, %c0_130] : memref<2x10x10x8xf32, #tpu.memory_space<vmem>>, vector<2x8x8x8xf32>
    %c0_131 = arith.constant 0 : index
    %c2_132 = arith.constant 2 : index
    %c1_133 = arith.constant 1 : index
    %c0_134 = arith.constant 0 : index
    %126 = vector.load %arg7[%c0_131, %c2_132, %c1_133, %c0_134] : memref<2x10x10x8xf32, #tpu.memory_space<vmem>>, vector<2x8x8x8xf32>
    %127 = tpu.concatenate %123, %124, %125, %126 in 3 : vector<2x8x8x8xf32>, vector<2x8x8x8xf32>, vector<2x8x8x8xf32>, vector<2x8x8x8xf32> -> vector<2x8x8x32xf32>
    %128 = vector.shape_cast %127 : vector<2x8x8x32xf32> to vector<128x32xf32>
    %c2_135 = arith.constant 2 : index
    %c0_136 = arith.constant 0 : index
    %c0_137 = arith.constant 0 : index
    %129 = vector.load %arg3[%c2_135, %c0_136, %c0_137] : memref<4x32x4xf32, #tpu.memory_space<vmem>>, vector<1x32x4xf32>
    %130 = vector.shape_cast %129 : vector<1x32x4xf32> to vector<32x4xf32>
    %cst_138 = arith.constant dense<0.000000e+00> : vector<128x4xf32>
    %131 = tpu.matmul %128, %130, %cst_138 {dimension_numbers = #tpu.dot_dimension_numbers<[1], [0], [0], [1], [0, 0, 1, 1], [], []>} : vector<128x32xf32>, vector<32x4xf32>, vector<128x4xf32> -> vector<128x4xf32>
    %132 = vector.shape_cast %131 : vector<128x4xf32> to vector<2x8x8x4xf32>
    %c0_139 = arith.constant 0 : index
    %c0_140 = arith.constant 0 : index
    %c1_141 = arith.constant 1 : index
    %c0_142 = arith.constant 0 : index
    %c0_143 = arith.constant 0 : index
    %133 = vector.load %arg4[%c0_139, %c0_140, %c1_141, %c0_142, %c0_143] : memref<2x8x2x8x8xf32, #tpu.memory_space<vmem>>, vector<2x8x1x8x4xf32>
    %134 = vector.shape_cast %133 : vector<2x8x1x8x4xf32> to vector<2x8x8x4xf32>
    %135 = vector.shape_cast %132 : vector<2x8x8x4xf32> to vector<2x8x1x8x4xf32>
    tpu.vector_store %arg4[%c0_139, %c0_140, %c1_141, %c0_142, %c0_143], %135 {strides = array<i32>} : memref<2x8x2x8x8xf32, #tpu.memory_space<vmem>>, vector<2x8x1x8x4xf32>,
    %cst_144 = arith.constant dense<0.000000e+00> : vector<4xf32>
    %136 = vector.multi_reduction <add>, %131, %cst_144 [0] : vector<128x4xf32> to vector<4xf32>
    %137 = vector.shape_cast %136 : vector<4xf32> to vector<1x4xf32>
    %138 = arith.addf %118, %137 : vector<1x4xf32>
    %139 = arith.mulf %131, %131 : vector<128x4xf32>
    %cst_145 = arith.constant dense<0.000000e+00> : vector<4xf32>
    %140 = vector.multi_reduction <add>, %139, %cst_145 [0] : vector<128x4xf32> to vector<4xf32>
    %141 = vector.shape_cast %140 : vector<4xf32> to vector<1x4xf32>
    %142 = arith.addf %122, %141 : vector<1x4xf32>
    %c0_146 = arith.constant 0 : index
    %c1_147 = arith.constant 1 : index
    %c1_148 = arith.constant 1 : index
    %c0_149 = arith.constant 0 : index
    %143 = vector.load %arg7[%c0_146, %c1_147, %c1_148, %c0_149] : memref<2x10x10x8xf32, #tpu.memory_space<vmem>>, vector<2x8x8x8xf32>
    %c0_150 = arith.constant 0 : index
    %c1_151 = arith.constant 1 : index
    %c2_152 = arith.constant 2 : index
    %c0_153 = arith.constant 0 : index
    %144 = vector.load %arg7[%c0_150, %c1_151, %c2_152, %c0_153] : memref<2x10x10x8xf32, #tpu.memory_space<vmem>>, vector<2x8x8x8xf32>
    %c0_154 = arith.constant 0 : index
    %c2_155 = arith.constant 2 : index
    %c1_156 = arith.constant 1 : index
    %c0_157 = arith.constant 0 : index
    %145 = vector.load %arg7[%c0_154, %c2_155, %c1_156, %c0_157] : memref<2x10x10x8xf32, #tpu.memory_space<vmem>>, vector<2x8x8x8xf32>
    %c0_158 = arith.constant 0 : index
    %c2_159 = arith.constant 2 : index
    %c2_160 = arith.constant 2 : index
    %c0_161 = arith.constant 0 : index
    %146 = vector.load %arg7[%c0_158, %c2_159, %c2_160, %c0_161] : memref<2x10x10x8xf32, #tpu.memory_space<vmem>>, vector<2x8x8x8xf32>
    %147 = tpu.concatenate %143, %144, %145, %146 in 3 : vector<2x8x8x8xf32>, vector<2x8x8x8xf32>, vector<2x8x8x8xf32>, vector<2x8x8x8xf32> -> vector<2x8x8x32xf32>
    %148 = vector.shape_cast %147 : vector<2x8x8x32xf32> to vector<128x32xf32>
    %c3_162 = arith.constant 3 : index
    %c0_163 = arith.constant 0 : index
    %c0_164 = arith.constant 0 : index
    %149 = vector.load %arg3[%c3_162, %c0_163, %c0_164] : memref<4x32x4xf32, #tpu.memory_space<vmem>>, vector<1x32x4xf32>
    %150 = vector.shape_cast %149 : vector<1x32x4xf32> to vector<32x4xf32>
    %cst_165 = arith.constant dense<0.000000e+00> : vector<128x4xf32>
    %151 = tpu.matmul %148, %150, %cst_165 {dimension_numbers = #tpu.dot_dimension_numbers<[1], [0], [0], [1], [0, 0, 1, 1], [], []>} : vector<128x32xf32>, vector<32x4xf32>, vector<128x4xf32> -> vector<128x4xf32>
    %152 = vector.shape_cast %151 : vector<128x4xf32> to vector<2x8x8x4xf32>
    %c0_166 = arith.constant 0 : index
    %c0_167 = arith.constant 0 : index
    %c1_168 = arith.constant 1 : index
    %c0_169 = arith.constant 0 : index
    %c4_170 = arith.constant 4 : index
    %153 = vector.load %arg4[%c0_166, %c0_167, %c1_168, %c0_169, %c4_170] : memref<2x8x2x8x8xf32, #tpu.memory_space<vmem>>, vector<2x8x1x8x4xf32>
    %154 = vector.shape_cast %153 : vector<2x8x1x8x4xf32> to vector<2x8x8x4xf32>
    %155 = vector.shape_cast %152 : vector<2x8x8x4xf32> to vector<2x8x1x8x4xf32>
    tpu.vector_store %arg4[%c0_166, %c0_167, %c1_168, %c0_169, %c4_170], %155 {strides = array<i32>} : memref<2x8x2x8x8xf32, #tpu.memory_space<vmem>>, vector<2x8x1x8x4xf32>,
    %cst_171 = arith.constant dense<0.000000e+00> : vector<4xf32>
    %156 = vector.multi_reduction <add>, %151, %cst_171 [0] : vector<128x4xf32> to vector<4xf32>
    %157 = vector.shape_cast %156 : vector<4xf32> to vector<1x4xf32>
    %158 = arith.addf %138, %157 : vector<1x4xf32>
    %159 = arith.mulf %151, %151 : vector<128x4xf32>
    %cst_172 = arith.constant dense<0.000000e+00> : vector<4xf32>
    %160 = vector.multi_reduction <add>, %159, %cst_172 [0] : vector<128x4xf32> to vector<4xf32>
    %161 = vector.shape_cast %160 : vector<4xf32> to vector<1x4xf32>
    %162 = arith.addf %142, %161 : vector<1x4xf32>
    %c0_173 = arith.constant 0 : index
    %c0_174 = arith.constant 0 : index
    %c0_175 = arith.constant 0 : index
    %163 = vector.load %arg5[%c0_173, %c0_174, %c0_175] : memref<1x1x4xf32, #tpu.memory_space<vmem>>, vector<1x1x4xf32>
    %164 = vector.shape_cast %163 : vector<1x1x4xf32> to vector<1x4xf32>
    %165 = vector.shape_cast %158 : vector<1x4xf32> to vector<1x1x4xf32>
    tpu.vector_store %arg5[%c0_173, %c0_174, %c0_175], %165 {strides = array<i32>} : memref<1x1x4xf32, #tpu.memory_space<vmem>>, vector<1x1x4xf32>,
    %c0_176 = arith.constant 0 : index
    %c0_177 = arith.constant 0 : index
    %c0_178 = arith.constant 0 : index
    %166 = vector.load %arg6[%c0_176, %c0_177, %c0_178] : memref<1x1x4xf32, #tpu.memory_space<vmem>>, vector<1x1x4xf32>
    %167 = vector.shape_cast %166 : vector<1x1x4xf32> to vector<1x4xf32>
    %168 = vector.shape_cast %162 : vector<1x4xf32> to vector<1x1x4xf32>
    tpu.vector_store %arg6[%c0_176, %c0_177, %c0_178], %168 {strides = array<i32>} : memref<1x1x4xf32, #tpu.memory_space<vmem>>, vector<1x1x4xf32>,
    return
  }
  func.func @transform_0(%arg0: i32) -> (i32, i32, i32, i32, i32) {
    %c0_i32 = arith.constant 0 : i32
    %c0_i32_0 = arith.constant 0 : i32
    %c0_i32_1 = arith.constant 0 : i32
    %c0_i32_2 = arith.constant 0 : i32
    %c0_i32_3 = arith.constant 0 : i32
    return %arg0, %c0_i32, %c0_i32_0, %c0_i32_1, %c0_i32_2 : i32, i32, i32, i32, i32
  }
  func.func @transform_1(%arg0: i32) -> (i32, i32, i32) {
    %c0_i32 = arith.constant 0 : i32
    %c0_i32_0 = arith.constant 0 : i32
    %c0_i32_1 = arith.constant 0 : i32
    %c0_i32_2 = arith.constant 0 : i32
    return %c0_i32, %c0_i32_0, %c0_i32_1 : i32, i32, i32
  }
  func.func @transform_2(%arg0: i32) -> (i32, i32, i32) {
    %c0_i32 = arith.constant 0 : i32
    %c0_i32_0 = arith.constant 0 : i32
    %c0_i32_1 = arith.constant 0 : i32
    %c0_i32_2 = arith.constant 0 : i32
    return %c0_i32, %c0_i32_0, %c0_i32_1 : i32, i32, i32
  }
  func.func @transform_3(%arg0: i32) -> (i32, i32, i32, i32, i32) {
    %c0_i32 = arith.constant 0 : i32
    %c0_i32_0 = arith.constant 0 : i32
    %c0_i32_1 = arith.constant 0 : i32
    %c0_i32_2 = arith.constant 0 : i32
    %c0_i32_3 = arith.constant 0 : i32
    return %arg0, %c0_i32, %c0_i32_0, %c0_i32_1, %c0_i32_2 : i32, i32, i32, i32, i32
  }
  func.func @transform_4(%arg0: i32) -> (i32, i32, i32) {
    %c0_i32 = arith.constant 0 : i32
    %c0_i32_0 = arith.constant 0 : i32
    %c0_i32_1 = arith.constant 0 : i32
    return %arg0, %c0_i32, %c0_i32_0 : i32, i32, i32
  }
  func.func @transform_5(%arg0: i32) -> (i32, i32, i32) {
    %c0_i32 = arith.constant 0 : i32
    %c0_i32_0 = arith.constant 0 : i32
    %c0_i32_1 = arith.constant 0 : i32
    return %arg0, %c0_i32, %c0_i32_0 : i32, i32, i32
  }
}

module attributes {stable_mosaic.version = 11 : i64} {
  func.func @_bn_concat_kernel(%arg0: i32, %arg1: memref<1x16x16x4xf32, #tpu.memory_space<vmem>>, %arg2: memref<1x16x16x4xf32, #tpu.memory_space<vmem>>, %arg3: memref<1x1x4xf32, #tpu.memory_space<vmem>>, %arg4: memref<1x1x4xf32, #tpu.memory_space<vmem>>, %arg5: memref<1x16x16x8xf32, #tpu.memory_space<vmem>>) attributes {dimension_semantics = [#tpu.dimension_semantics<parallel>], iteration_bounds = array<i64: 4>, scalar_prefetch = 0 : i64, scratch_operands = 0 : i64, tpu.core_type = #tpu.core_type<tc>, window_params = [{transform_indices = @transform_0, window_bounds = array<i64: 1, 16, 16, 4>}, {transform_indices = @transform_1, window_bounds = array<i64: 1, 16, 16, 4>}, {pipeline_mode = #tpu.pipeline_mode<synchronous>, transform_indices = @transform_2, window_bounds = array<i64: 1, 1, 4>}, {pipeline_mode = #tpu.pipeline_mode<synchronous>, transform_indices = @transform_3, window_bounds = array<i64: 1, 1, 4>}, {transform_indices = @transform_4, window_bounds = array<i64: 1, 16, 16, 8>}]} {
    %c0 = arith.constant 0 : index
    %c0_0 = arith.constant 0 : index
    %c0_1 = arith.constant 0 : index
    %c0_2 = arith.constant 0 : index
    %0 = vector.load %arg1[%c0, %c0_0, %c0_1, %c0_2] : memref<1x16x16x4xf32, #tpu.memory_space<vmem>>, vector<1x16x16x4xf32>
    %1 = vector.shape_cast %0 : vector<1x16x16x4xf32> to vector<16x16x4xf32>
    %c0_3 = arith.constant 0 : index
    %c0_4 = arith.constant 0 : index
    %c0_5 = arith.constant 0 : index
    %c0_6 = arith.constant 0 : index
    %2 = vector.load %arg5[%c0_3, %c0_4, %c0_5, %c0_6] : memref<1x16x16x8xf32, #tpu.memory_space<vmem>>, vector<1x16x16x4xf32>
    %3 = vector.shape_cast %2 : vector<1x16x16x4xf32> to vector<16x16x4xf32>
    %4 = vector.shape_cast %1 : vector<16x16x4xf32> to vector<1x16x16x4xf32>
    tpu.vector_store %arg5[%c0_3, %c0_4, %c0_5, %c0_6], %4 {strides = array<i32>} : memref<1x16x16x8xf32, #tpu.memory_space<vmem>>, vector<1x16x16x4xf32>,
    %c0_7 = arith.constant 0 : index
    %c0_8 = arith.constant 0 : index
    %c0_9 = arith.constant 0 : index
    %c0_10 = arith.constant 0 : index
    %5 = vector.load %arg2[%c0_7, %c0_8, %c0_9, %c0_10] : memref<1x16x16x4xf32, #tpu.memory_space<vmem>>, vector<1x16x16x4xf32>
    %6 = vector.shape_cast %5 : vector<1x16x16x4xf32> to vector<16x16x4xf32>
    %c0_11 = arith.constant 0 : index
    %c0_12 = arith.constant 0 : index
    %c0_13 = arith.constant 0 : index
    %7 = vector.load %arg3[%c0_11, %c0_12, %c0_13] : memref<1x1x4xf32, #tpu.memory_space<vmem>>, vector<1x1x4xf32>
    %8 = vector.broadcast %7 : vector<1x1x4xf32> to vector<16x16x4xf32>
    %9 = arith.mulf %6, %8 : vector<16x16x4xf32>
    %c0_14 = arith.constant 0 : index
    %c0_15 = arith.constant 0 : index
    %c0_16 = arith.constant 0 : index
    %10 = vector.load %arg4[%c0_14, %c0_15, %c0_16] : memref<1x1x4xf32, #tpu.memory_space<vmem>>, vector<1x1x4xf32>
    %11 = vector.broadcast %10 : vector<1x1x4xf32> to vector<16x16x4xf32>
    %12 = arith.addf %9, %11 : vector<16x16x4xf32>
    %c0_17 = arith.constant 0 : index
    %c0_18 = arith.constant 0 : index
    %c0_19 = arith.constant 0 : index
    %c4 = arith.constant 4 : index
    %13 = vector.load %arg5[%c0_17, %c0_18, %c0_19, %c4] : memref<1x16x16x8xf32, #tpu.memory_space<vmem>>, vector<1x16x16x4xf32>
    %14 = vector.shape_cast %13 : vector<1x16x16x4xf32> to vector<16x16x4xf32>
    %15 = vector.shape_cast %12 : vector<16x16x4xf32> to vector<1x16x16x4xf32>
    tpu.vector_store %arg5[%c0_17, %c0_18, %c0_19, %c4], %15 {strides = array<i32>} : memref<1x16x16x8xf32, #tpu.memory_space<vmem>>, vector<1x16x16x4xf32>,
    return
  }
  func.func @transform_0(%arg0: i32) -> (i32, i32, i32, i32) {
    %c0_i32 = arith.constant 0 : i32
    %c0_i32_0 = arith.constant 0 : i32
    %c0_i32_1 = arith.constant 0 : i32
    %c0_i32_2 = arith.constant 0 : i32
    return %arg0, %c0_i32, %c0_i32_0, %c0_i32_1 : i32, i32, i32, i32
  }
  func.func @transform_1(%arg0: i32) -> (i32, i32, i32, i32) {
    %c0_i32 = arith.constant 0 : i32
    %c0_i32_0 = arith.constant 0 : i32
    %c0_i32_1 = arith.constant 0 : i32
    %c0_i32_2 = arith.constant 0 : i32
    return %arg0, %c0_i32, %c0_i32_0, %c0_i32_1 : i32, i32, i32, i32
  }
  func.func @transform_2(%arg0: i32) -> (i32, i32, i32) {
    %c0_i32 = arith.constant 0 : i32
    %c0_i32_0 = arith.constant 0 : i32
    %c0_i32_1 = arith.constant 0 : i32
    %c0_i32_2 = arith.constant 0 : i32
    return %c0_i32, %c0_i32_0, %c0_i32_1 : i32, i32, i32
  }
  func.func @transform_3(%arg0: i32) -> (i32, i32, i32) {
    %c0_i32 = arith.constant 0 : i32
    %c0_i32_0 = arith.constant 0 : i32
    %c0_i32_1 = arith.constant 0 : i32
    %c0_i32_2 = arith.constant 0 : i32
    return %c0_i32, %c0_i32_0, %c0_i32_1 : i32, i32, i32
  }
  func.func @transform_4(%arg0: i32) -> (i32, i32, i32, i32) {
    %c0_i32 = arith.constant 0 : i32
    %c0_i32_0 = arith.constant 0 : i32
    %c0_i32_1 = arith.constant 0 : i32
    %c0_i32_2 = arith.constant 0 : i32
    return %arg0, %c0_i32, %c0_i32_0, %c0_i32_1 : i32, i32, i32, i32
  }
}

</mosaic_0001>

<llo_original>
// kernel: unet_innermost_forward.3
$region0: #{unet_innermost_forward.3}
  #allocation0 [shape = 'u32[]', space=smem, size = 0x4, offset = 0x4, fixed_abs, tag = 'smem constant byte address 0x4 - core index']
  #allocation1 [shape = 'u32[72,128]{1,0:T(1,128)}', space=vmem, size = 0x9000, scoped, tag = 'internal scratch']
  %s0 = inlined_call_operand.vmem [shape: f32[4,16,16,4], index: 0, kind: input, shape index: {}]
  %s1 = inlined_call_operand.vmem [shape: f32[4,16,16,4], index: 1, kind: input, shape index: {}]
  %s2 = inlined_call_operand.vmem [shape: f32[1,1,4], index: 2, kind: input, shape index: {}]
  %s3 = inlined_call_operand.vmem [shape: f32[1,1,4], index: 3, kind: input, shape index: {}]
  %s4 = inlined_call_operand.vmem [shape: f32[4,16,16,8], index: 4, kind: output, shape index: {}]
  %s5 = sld [smem:[#allocation0]]
  $region49: #{unet_innermost_forward.3} parent=0
    _
  %s7 = ssub.s32 1, %s5
  %s8 = scalar_select 0, %s7, %s5
  loop: start=0, step=1, limit=6
  $region2: #{unet_innermost_forward.3} parent=0 // loop_pre_header
    _
  $region3: #{unet_innermost_forward.3} parent=0 // loop_header
    %s10 = sphi 0, %s14
    %p11 = scmp.ge.s32.totalorder %s10, 6
    %s20 = sphi 0, %s22
    %s23 = sphi 0, %s20
    %s24 = sphi 0, %s23
    %s40 = sphi 0, %s24
    %s46 = sphi 0, %s48
    %s49 = sphi 0, %s46
    %s50 = sphi 0, %s49
    %s66 = sphi 0, %s50
    %s70 = sphi 0, %s70
    %s72 = sphi 0, %s70
    %s73 = sphi 0, %s72
    %s87 = sphi 0, %s73
    %s91 = sphi 0, %s91
    %s93 = sphi 0, %s91
    %s94 = sphi 0, %s93
    %s108 = sphi 0, %s94
    %s114 = sphi 0, %s116
    %s117 = sphi 0, %s114
    %s118 = sphi 0, %s117
    %s134 = sphi 0, %s118
  $region4: #{unet_innermost_forward.3} parent=0 // loop_header_branch
    %13 = sbr.rel (%p11) target = $region8
  $region5: #{unet_innermost_forward.3} parent=0 // loop_body
    %s15 = ssub.s32 %s10, 1
    %s16 = ssub.s32 %s10, 2
    %s17 = sadd.s32 %s10, 1
    %s18 = ssub.s32 %s10, %s17
    %p19 = scmp.eq.s32.totalorder %s18, 0
    %s21 = sadd.s32 %s20, 1
    %s22 = scalar_select %p19, %s20, %s21
    %p25 = pneg %p19
    %p26 = scmp.eq.s32.totalorder %s10, 3
    %p27 = por %p25, %p26
    %p28 = scmp.ne.s32.totalorder %s20, %s23
    %p29 = scmp.eq.s32.totalorder %s10, 0
    %p30 = por %p28, %p29
    %p31 = scmp.ne.s32.totalorder %s20, %s23
    %p32 = scmp.eq.s32.totalorder %s15, 3
    %p33 = por %p31, %p32
    %p34 = scmp.ne.s32.totalorder %s23, %s24
    %p35 = scmp.eq.s32.totalorder %s15, 0
    %p36 = por %p34, %p35
    %p37 = scmp.ne.s32.totalorder %s23, %s24
    %p38 = scmp.eq.s32.totalorder %s16, 3
    %p39 = por %p37, %p38
    %p41 = scmp.ne.s32.totalorder %s24, %s40
    %p42 = scmp.eq.s32.totalorder %s16, 0
    %p43 = por %p41, %p42
    %s44 = ssub.s32 %s10, %s17
    %p45 = scmp.eq.s32.totalorder %s44, 0
    %s47 = sadd.s32 %s46, 1
    %s48 = scalar_select %p45, %s46, %s47
    %p51 = pneg %p45
    %p52 = scmp.eq.s32.totalorder %s10, 3
    %p53 = por %p51, %p52
    %p54 = scmp.ne.s32.totalorder %s46, %s49
    %p55 = scmp.eq.s32.totalorder %s10, 0
    %p56 = por %p54, %p55
    %p57 = scmp.ne.s32.totalorder %s46, %s49
    %p58 = scmp.eq.s32.totalorder %s15, 3
    %p59 = por %p57, %p58
    %p60 = scmp.ne.s32.totalorder %s49, %s50
    %p61 = scmp.eq.s32.totalorder %s15, 0
    %p62 = por %p60, %p61
    %p63 = scmp.ne.s32.totalorder %s49, %s50
    %p64 = scmp.eq.s32.totalorder %s16, 3
    %p65 = por %p63, %p64
    %p67 = scmp.ne.s32.totalorder %s50, %s66
    %p68 = scmp.eq.s32.totalorder %s16, 0
    %p69 = por %p67, %p68
    %s71 = sadd.s32 %s70, 1
    %p74 = scmp.eq.s32.totalorder %s10, 3
    %p75 = scmp.ne.s32.totalorder %s70, %s72
    %p76 = scmp.eq.s32.totalorder %s10, 0
    %p77 = por %p75, %p76
    %p78 = scmp.ne.s32.totalorder %s70, %s72
    %p79 = scmp.eq.s32.totalorder %s15, 3
    %p80 = por %p78, %p79
    %p81 = scmp.ne.s32.totalorder %s72, %s73
    %p82 = scmp.eq.s32.totalorder %s15, 0
    %p83 = por %p81, %p82
    %p84 = scmp.ne.s32.totalorder %s72, %s73
    %p85 = scmp.eq.s32.totalorder %s16, 3
    %p86 = por %p84, %p85
    %p88 = scmp.ne.s32.totalorder %s73, %s87
    %p89 = scmp.eq.s32.totalorder %s16, 0
    %p90 = por %p88, %p89
    %s92 = sadd.s32 %s91, 1
    %p95 = scmp.eq.s32.totalorder %s10, 3
    %p96 = scmp.ne.s32.totalorder %s91, %s93
    %p97 = scmp.eq.s32.totalorder %s10, 0
    %p98 = por %p96, %p97
    %p99 = scmp.ne.s32.totalorder %s91, %s93
    %p100 = scmp.eq.s32.totalorder %s15, 3
    %p101 = por %p99, %p100
    %p102 = scmp.ne.s32.totalorder %s93, %s94
    %p103 = scmp.eq.s32.totalorder %s15, 0
    %p104 = por %p102, %p103
    %p105 = scmp.ne.s32.totalorder %s93, %s94
    %p106 = scmp.eq.s32.totalorder %s16, 3
    %p107 = por %p105, %p106
    %p109 = scmp.ne.s32.totalorder %s94, %s108
    %p110 = scmp.eq.s32.totalorder %s16, 0
    %p111 = por %p109, %p110
    %s112 = ssub.s32 %s10, %s17
    %p113 = scmp.eq.s32.totalorder %s112, 0
    %s115 = sadd.s32 %s114, 1
    %s116 = scalar_select %p113, %s114, %s115
    %p119 = pneg %p113
    %p120 = scmp.eq.s32.totalorder %s10, 3
    %p121 = por %p119, %p120
    %p122 = scmp.ne.s32.totalorder %s114, %s117
    %p123 = scmp.eq.s32.totalorder %s10, 0
    %p124 = por %p122, %p123
    %p125 = scmp.ne.s32.totalorder %s114, %s117
    %p126 = scmp.eq.s32.totalorder %s15, 3
    %p127 = por %p125, %p126
    %p128 = scmp.ne.s32.totalorder %s117, %s118
    %p129 = scmp.eq.s32.totalorder %s15, 0
    %p130 = por %p128, %p129
    %p131 = scmp.ne.s32.totalorder %s117, %s118
    %p132 = scmp.eq.s32.totalorder %s16, 3
    %p133 = por %p131, %p132
    %p135 = scmp.ne.s32.totalorder %s118, %s134
    %p136 = scmp.eq.s32.totalorder %s16, 0
    %p137 = por %p135, %p136
    %p138 = scmp.le.s32.totalorder 1, %s10
    %p139 = scmp.lt.s32.totalorder %s10, 5
    %p140 = pnand %p138, %p139
    %p141 = pneg %p140
    // Predicated region
    $region9: #{unet_innermost_forward.3} parent=5 // pred_check
      _
    $region10: #{unet_innermost_forward.3} parent=5 // pred_check_branch
      %143 = sbr.rel (%p140) target = $region12
    $region11: #{unet_innermost_forward.3} parent=5 // pred_region
      %s144 = ssub.s32 %s10, 1
      // Predicated region
      $region13: #{unet_innermost_forward.3} parent=11 // pred_check
        %p145 = pneg %p83
      $region14: #{unet_innermost_forward.3} parent=11 // pred_check_branch
        %147 = sbr.rel (%p145) target = $region16
      $region15: #{unet_innermost_forward.3} parent=11 // pred_region
        _
      $region16: #{unet_innermost_forward.3} parent=11 // pred_fallthru
        _
      // Predicated region
      $region17: #{unet_innermost_forward.3} parent=11 // pred_check
        %p148 = pneg %p104
      $region18: #{unet_innermost_forward.3} parent=11 // pred_check_branch
        %150 = sbr.rel (%p148) target = $region20
      $region19: #{unet_innermost_forward.3} parent=11 // pred_region
        _
      $region20: #{unet_innermost_forward.3} parent=11 // pred_fallthru
        _
    $region12: #{unet_innermost_forward.3} parent=5 // pred_fallthru
      _
    %p151 = scmp.lt.s32.totalorder %s10, 4
    // Predicated region
    $region21: #{unet_innermost_forward.3} parent=5 // pred_check
      %p152 = pneg %p151
    $region22: #{unet_innermost_forward.3} parent=5 // pred_check_branch
      %154 = sbr.rel (%p152) target = $region24
    $region23: #{unet_innermost_forward.3} parent=5 // pred_region
      // Predicated region
      $region25: #{unet_innermost_forward.3} parent=23 // pred_check
        %p155 = pneg %p30
      $region26: #{unet_innermost_forward.3} parent=23 // pred_check_branch
        %157 = sbr.rel (%p155) target = $region28
      $region27: #{unet_innermost_forward.3} parent=23 // pred_region
        %p158 = scmp.lt.s32.totalorder %s10, 3
        %s159 = scalar_select %p158, %s10, 3
        %s160 = smul.addr %s159, 32
        %s161 = smul.addr %s160, 8
        %s162 = scalar_lea.vmem %s0, %s161
      $region28: #{unet_innermost_forward.3} parent=23 // pred_fallthru
        _
      // Predicated region
      $region29: #{unet_innermost_forward.3} parent=23 // pred_check
        %p163 = pneg %p56
      $region30: #{unet_innermost_forward.3} parent=23 // pred_check_branch
        %165 = sbr.rel (%p163) target = $region32
      $region31: #{unet_innermost_forward.3} parent=23 // pred_region
        %p166 = scmp.lt.s32.totalorder %s10, 3
        %s167 = scalar_select %p166, %s10, 3
        %s168 = smul.addr %s167, 32
        %s169 = smul.addr %s168, 8
        %s170 = scalar_lea.vmem %s1, %s169
      $region32: #{unet_innermost_forward.3} parent=23 // pred_fallthru
        _
    $region24: #{unet_innermost_forward.3} parent=5 // pred_fallthru
      _
    %p171 = scmp.le.s32.totalorder 1, %s10
    %p172 = scmp.lt.s32.totalorder %s10, 5
    %p173 = pnand %p171, %p172
    %p174 = pneg %p173
    // Predicated region
    $region33: #{unet_innermost_forward.3} parent=5 // pred_check
      _
    $region34: #{unet_innermost_forward.3} parent=5 // pred_check_branch
      %176 = sbr.rel (%p173) target = $region36
    $region35: #{unet_innermost_forward.3} parent=5 // pred_region
      %s177 = ssub.s32 %s10, 1
      %p178 = scmp.lt.s32.totalorder %s15, 3
      %s179 = scalar_select %p178, %s15, 3
      %s180 = smul.addr %s179, 32
      %s181 = smul.addr %s180, 8
      %s182 = scalar_lea.vmem %s0, %s181
      %p183 = pneg %p36
      %p184 = pneg %p33
      %p185 = scmp.lt.s32.totalorder %s15, 3
      %s186 = scalar_select %p185, %s15, 3
      %s187 = smul.addr %s186, 32
      %s188 = smul.addr %s187, 8
      %s189 = scalar_lea.vmem %s1, %s188
      %p190 = pneg %p62
      %p191 = pneg %p59
      %p192 = pneg %p83
      %p193 = pneg %p80
      %p194 = pneg %p104
      %p195 = pneg %p101
      %p196 = pneg %p130
      %p197 = pneg %p127
      %p198 = scmp.lt.s32.totalorder %s15, 3
      %s199 = scalar_select %p198, %s15, 3
      %s200 = smul.addr %s199, 32
      %s201 = smul.addr %s200, 8
      %s202 = scalar_lea.vmem %s4, %s201
      %p203 = scmp.lt.s32.totalorder %s15, 3
      %s204 = scalar_select %p203, %s15, 3
      %s205 = smul.addr %s204, 32
      %s206 = smul.addr %s205, 8
      %s207 = scalar_lea.vmem %s0, %s206
      %p208 = scmp.lt.s32.totalorder %s15, 3
      %s209 = scalar_select %p208, %s15, 3
      %s210 = smul.addr %s209, 32
      %s211 = smul.addr %s210, 8
      %s212 = scalar_lea.vmem %s1, %s211
      %p213 = scmp.lt.s32.totalorder %s15, 3
      %s214 = scalar_select %p213, %s15, 3
      %s215 = smul.addr %s214, 32
      %s216 = smul.addr %s215, 8
      %s217 = scalar_lea.vmem %s4, %s216
      %v218 = vld [vmem:[%s207] sm:$0xff]
      %v219 = vld [vmem:[%s207 + $0x8] sm:$0xff]
      %v220 = vld [vmem:[%s207 + $0x10] sm:$0xff]
      %v221 = vld [vmem:[%s207 + $0x18] sm:$0xff]
      %v222 = vld [vmem:[%s207 + $0x20] sm:$0xff]
      %v223 = vld [vmem:[%s207 + $0x28] sm:$0xff]
      %v224 = vld [vmem:[%s207 + $0x30] sm:$0xff]
      %v225 = vld [vmem:[%s207 + $0x38] sm:$0xff]
      %v226 = vld [vmem:[%s207 + $0x40] sm:$0xff]
      %v227 = vld [vmem:[%s207 + $0x48] sm:$0xff]
      %v228 = vld [vmem:[%s207 + $0x50] sm:$0xff]
      %v229 = vld [vmem:[%s207 + $0x58] sm:$0xff]
      %v230 = vld [vmem:[%s207 + $0x60] sm:$0xff]
      %v231 = vld [vmem:[%s207 + $0x68] sm:$0xff]
      %v232 = vld [vmem:[%s207 + $0x70] sm:$0xff]
      %v233 = vld [vmem:[%s207 + $0x78] sm:$0xff]
      %v234 = vld [vmem:[%s207 + $0x80] sm:$0xff]
      %v235 = vld [vmem:[%s207 + $0x88] sm:$0xff]
      %v236 = vld [vmem:[%s207 + $0x90] sm:$0xff]
      %v237 = vld [vmem:[%s207 + $0x98] sm:$0xff]
      %v238 = vld [vmem:[%s207 + $0xa0] sm:$0xff]
      %v239 = vld [vmem:[%s207 + $0xa8] sm:$0xff]
      %v240 = vld [vmem:[%s207 + $0xb0] sm:$0xff]
      %v241 = vld [vmem:[%s207 + $0xb8] sm:$0xff]
      %v242 = vld [vmem:[%s207 + $0xc0] sm:$0xff]
      %v243 = vld [vmem:[%s207 + $0xc8] sm:$0xff]
      %v244 = vld [vmem:[%s207 + $0xd0] sm:$0xff]
      %v245 = vld [vmem:[%s207 + $0xd8] sm:$0xff]
      %v246 = vld [vmem:[%s207 + $0xe0] sm:$0xff]
      %v247 = vld [vmem:[%s207 + $0xe8] sm:$0xff]
      %v248 = vld [vmem:[%s207 + $0xf0] sm:$0xff]
      %v249 = vld [vmem:[%s207 + $0xf8] sm:$0xff]
      %vm250 = vcmask 31744
      %251 = vst.msk [vmem:[%s217] sm:$0xff] %vm250, %v218
      %252 = vst.msk [vmem:[%s217 + $0x8] sm:$0xff] %vm250, %v219
      %253 = vst.msk [vmem:[%s217 + $0x10] sm:$0xff] %vm250, %v220
      %254 = vst.msk [vmem:[%s217 + $0x18] sm:$0xff] %vm250, %v221
      %255 = vst.msk [vmem:[%s217 + $0x20] sm:$0xff] %vm250, %v222
      %256 = vst.msk [vmem:[%s217 + $0x28] sm:$0xff] %vm250, %v223
      %257 = vst.msk [vmem:[%s217 + $0x30] sm:$0xff] %vm250, %v224
      %258 = vst.msk [vmem:[%s217 + $0x38] sm:$0xff] %vm250, %v225
      %259 = vst.msk [vmem:[%s217 + $0x40] sm:$0xff] %vm250, %v226
      %260 = vst.msk [vmem:[%s217 + $0x48] sm:$0xff] %vm250, %v227
      %261 = vst.msk [vmem:[%s217 + $0x50] sm:$0xff] %vm250, %v228
      %262 = vst.msk [vmem:[%s217 + $0x58] sm:$0xff] %vm250, %v229
      %263 = vst.msk [vmem:[%s217 + $0x60] sm:$0xff] %vm250, %v230
      %264 = vst.msk [vmem:[%s217 + $0x68] sm:$0xff] %vm250, %v231
      %265 = vst.msk [vmem:[%s217 + $0x70] sm:$0xff] %vm250, %v232
      %266 = vst.msk [vmem:[%s217 + $0x78] sm:$0xff] %vm250, %v233
      %267 = vst.msk [vmem:[%s217 + $0x80] sm:$0xff] %vm250, %v234
      %268 = vst.msk [vmem:[%s217 + $0x88] sm:$0xff] %vm250, %v235
      %269 = vst.msk [vmem:[%s217 + $0x90] sm:$0xff] %vm250, %v236
      %270 = vst.msk [vmem:[%s217 + $0x98] sm:$0xff] %vm250, %v237
      %271 = vst.msk [vmem:[%s217 + $0xa0] sm:$0xff] %vm250, %v238
      %272 = vst.msk [vmem:[%s217 + $0xa8] sm:$0xff] %vm250, %v239
      %273 = vst.msk [vmem:[%s217 + $0xb0] sm:$0xff] %vm250, %v240
      %274 = vst.msk [vmem:[%s217 + $0xb8] sm:$0xff] %vm250, %v241
      %275 = vst.msk [vmem:[%s217 + $0xc0] sm:$0xff] %vm250, %v242
      %276 = vst.msk [vmem:[%s217 + $0xc8] sm:$0xff] %vm250, %v243
      %277 = vst.msk [vmem:[%s217 + $0xd0] sm:$0xff] %vm250, %v244
      %278 = vst.msk [vmem:[%s217 + $0xd8] sm:$0xff] %vm250, %v245
      %279 = vst.msk [vmem:[%s217 + $0xe0] sm:$0xff] %vm250, %v246
      %280 = vst.msk [vmem:[%s217 + $0xe8] sm:$0xff] %vm250, %v247
      %281 = vst.msk [vmem:[%s217 + $0xf0] sm:$0xff] %vm250, %v248
      %282 = vst.msk [vmem:[%s217 + $0xf8] sm:$0xff] %vm250, %v249
      %v283 = vld [vmem:[%s212] sm:$0xff]
      %v284 = vld [vmem:[%s212 + $0x8] sm:$0xff]
      %v285 = vld [vmem:[%s212 + $0x10] sm:$0xff]
      %v286 = vld [vmem:[%s212 + $0x18] sm:$0xff]
      %v287 = vld [vmem:[%s212 + $0x20] sm:$0xff]
      %v288 = vld [vmem:[%s212 + $0x28] sm:$0xff]
      %v289 = vld [vmem:[%s212 + $0x30] sm:$0xff]
      %v290 = vld [vmem:[%s212 + $0x38] sm:$0xff]
      %v291 = vld [vmem:[%s212 + $0x40] sm:$0xff]
      %v292 = vld [vmem:[%s212 + $0x48] sm:$0xff]
      %v293 = vld [vmem:[%s212 + $0x50] sm:$0xff]
      %v294 = vld [vmem:[%s212 + $0x58] sm:$0xff]
      %v295 = vld [vmem:[%s212 + $0x60] sm:$0xff]
      %v296 = vld [vmem:[%s212 + $0x68] sm:$0xff]
      %v297 = vld [vmem:[%s212 + $0x70] sm:$0xff]
      %v298 = vld [vmem:[%s212 + $0x78] sm:$0xff]
      %v299 = vld [vmem:[%s212 + $0x80] sm:$0xff]
      %v300 = vld [vmem:[%s212 + $0x88] sm:$0xff]
      %v301 = vld [vmem:[%s212 + $0x90] sm:$0xff]
      %v302 = vld [vmem:[%s212 + $0x98] sm:$0xff]
      %v303 = vld [vmem:[%s212 + $0xa0] sm:$0xff]
      %v304 = vld [vmem:[%s212 + $0xa8] sm:$0xff]
      %v305 = vld [vmem:[%s212 + $0xb0] sm:$0xff]
      %v306 = vld [vmem:[%s212 + $0xb8] sm:$0xff]
      %v307 = vld [vmem:[%s212 + $0xc0] sm:$0xff]
      %v308 = vld [vmem:[%s212 + $0xc8] sm:$0xff]
      %v309 = vld [vmem:[%s212 + $0xd0] sm:$0xff]
      %v310 = vld [vmem:[%s212 + $0xd8] sm:$0xff]
      %v311 = vld [vmem:[%s212 + $0xe0] sm:$0xff]
      %v312 = vld [vmem:[%s212 + $0xe8] sm:$0xff]
      %v313 = vld [vmem:[%s212 + $0xf0] sm:$0xff]
      %v314 = vld [vmem:[%s212 + $0xf8] sm:$0xff]
      %v315 = vld [vmem:[%s2] sm:$0x1]
      %v317 = vperm.slane %v315, 0
      %v319 = vmul.f32 %v283, %v317
      %v320 = vmul.f32 %v284, %v317
      %v321 = vmul.f32 %v285, %v317
      %v322 = vmul.f32 %v286, %v317
      %v323 = vmul.f32 %v287, %v317
      %v324 = vmul.f32 %v288, %v317
      %v325 = vmul.f32 %v289, %v317
      %v326 = vmul.f32 %v290, %v317
      %v327 = vmul.f32 %v291, %v317
      %v328 = vmul.f32 %v292, %v317
      %v329 = vmul.f32 %v293, %v317
      %v330 = vmul.f32 %v294, %v317
      %v331 = vmul.f32 %v295, %v317
      %v332 = vmul.f32 %v296, %v317
      %v333 = vmul.f32 %v297, %v317
      %v334 = vmul.f32 %v298, %v317
      %v335 = vmul.f32 %v299, %v317
      %v336 = vmul.f32 %v300, %v317
      %v337 = vmul.f32 %v301, %v317
      %v338 = vmul.f32 %v302, %v317
      %v339 = vmul.f32 %v303, %v317
      %v340 = vmul.f32 %v304, %v317
      %v341 = vmul.f32 %v305, %v317
      %v342 = vmul.f32 %v306, %v317
      %v343 = vmul.f32 %v307, %v317
      %v344 = vmul.f32 %v308, %v317
      %v345 = vmul.f32 %v309, %v317
      %v346 = vmul.f32 %v310, %v317
      %v347 = vmul.f32 %v311, %v317
      %v348 = vmul.f32 %v312, %v317
      %v349 = vmul.f32 %v313, %v317
      %v350 = vmul.f32 %v314, %v317
      %v351 = vld [vmem:[%s3] sm:$0x1]
      %v353 = vperm.slane %v351, 0
      %v355 = vadd.f32 %v319, %v353
      %v356 = vadd.f32 %v320, %v353
      %v357 = vadd.f32 %v321, %v353
      %v358 = vadd.f32 %v322, %v353
      %v359 = vadd.f32 %v323, %v353
      %v360 = vadd.f32 %v324, %v353
      %v361 = vadd.f32 %v325, %v353
      %v362 = vadd.f32 %v326, %v353
      %v363 = vadd.f32 %v327, %v353
      %v364 = vadd.f32 %v328, %v353
      %v365 = vadd.f32 %v329, %v353
      %v366 = vadd.f32 %v330, %v353
      %v367 = vadd.f32 %v331, %v353
      %v368 = vadd.f32 %v332, %v353
      %v369 = vadd.f32 %v333, %v353
      %v370 = vadd.f32 %v334, %v353
      %v371 = vadd.f32 %v335, %v353
      %v372 = vadd.f32 %v336, %v353
      %v373 = vadd.f32 %v337, %v353
      %v374 = vadd.f32 %v338, %v353
      %v375 = vadd.f32 %v339, %v353
      %v376 = vadd.f32 %v340, %v353
      %v377 = vadd.f32 %v341, %v353
      %v378 = vadd.f32 %v342, %v353
      %v379 = vadd.f32 %v343, %v353
      %v380 = vadd.f32 %v344, %v353
      %v381 = vadd.f32 %v345, %v353
      %v382 = vadd.f32 %v346, %v353
      %v383 = vadd.f32 %v347, %v353
      %v384 = vadd.f32 %v348, %v353
      %v385 = vadd.f32 %v349, %v353
      %v386 = vadd.f32 %v350, %v353
      %419 = vrot.lane.b32.xlu0 %v355, 4
      %v420 = vpop.permute.xlu0 %419
      %421 = vrot.lane.b32.xlu0 %v356, 4
      %v422 = vpop.permute.xlu0 %421
      %423 = vrot.lane.b32.xlu0 %v357, 4
      %v424 = vpop.permute.xlu0 %423
      %425 = vrot.lane.b32.xlu0 %v358, 4
      %v426 = vpop.permute.xlu0 %425
      %427 = vrot.lane.b32.xlu0 %v359, 4
      %v428 = vpop.permute.xlu0 %427
      %429 = vrot.lane.b32.xlu0 %v360, 4
      %v430 = vpop.permute.xlu0 %429
      %431 = vrot.lane.b32.xlu0 %v361, 4
      %v432 = vpop.permute.xlu0 %431
      %433 = vrot.lane.b32.xlu0 %v362, 4
      %v434 = vpop.permute.xlu0 %433
      %435 = vrot.lane.b32.xlu0 %v363, 4
      %v436 = vpop.permute.xlu0 %435
      %437 = vrot.lane.b32.xlu0 %v364, 4
      %v438 = vpop.permute.xlu0 %437
      %439 = vrot.lane.b32.xlu0 %v365, 4
      %v440 = vpop.permute.xlu0 %439
      %441 = vrot.lane.b32.xlu0 %v366, 4
      %v442 = vpop.permute.xlu0 %441
      %443 = vrot.lane.b32.xlu0 %v367, 4
      %v444 = vpop.permute.xlu0 %443
      %445 = vrot.lane.b32.xlu0 %v368, 4
      %v446 = vpop.permute.xlu0 %445
      %447 = vrot.lane.b32.xlu0 %v369, 4
      %v448 = vpop.permute.xlu0 %447
      %449 = vrot.lane.b32.xlu0 %v370, 4
      %v450 = vpop.permute.xlu0 %449
      %451 = vrot.lane.b32.xlu0 %v371, 4
      %v452 = vpop.permute.xlu0 %451
      %453 = vrot.lane.b32.xlu0 %v372, 4
      %v454 = vpop.permute.xlu0 %453
      %455 = vrot.lane.b32.xlu0 %v373, 4
      %v456 = vpop.permute.xlu0 %455
      %457 = vrot.lane.b32.xlu0 %v374, 4
      %v458 = vpop.permute.xlu0 %457
      %459 = vrot.lane.b32.xlu0 %v375, 4
      %v460 = vpop.permute.xlu0 %459
      %461 = vrot.lane.b32.xlu0 %v376, 4
      %v462 = vpop.permute.xlu0 %461
      %463 = vrot.lane.b32.xlu0 %v377, 4
      %v464 = vpop.permute.xlu0 %463
      %465 = vrot.lane.b32.xlu0 %v378, 4
      %v466 = vpop.permute.xlu0 %465
      %467 = vrot.lane.b32.xlu0 %v379, 4
      %v468 = vpop.permute.xlu0 %467
      %469 = vrot.lane.b32.xlu0 %v380, 4
      %v470 = vpop.permute.xlu0 %469
      %471 = vrot.lane.b32.xlu0 %v381, 4
      %v472 = vpop.permute.xlu0 %471
      %473 = vrot.lane.b32.xlu0 %v382, 4
      %v474 = vpop.permute.xlu0 %473
      %475 = vrot.lane.b32.xlu0 %v383, 4
      %v476 = vpop.permute.xlu0 %475
      %477 = vrot.lane.b32.xlu0 %v384, 4
      %v478 = vpop.permute.xlu0 %477
      %479 = vrot.lane.b32.xlu0 %v385, 4
      %v480 = vpop.permute.xlu0 %479
      %481 = vrot.lane.b32.xlu0 %v386, 4
      %v482 = vpop.permute.xlu0 %481
      %vm515 = vcmask 64544
      %516 = vst.msk [vmem:[%s217] sm:$0xff] %vm515, %v420
      %517 = vst.msk [vmem:[%s217 + $0x8] sm:$0xff] %vm515, %v422
      %518 = vst.msk [vmem:[%s217 + $0x10] sm:$0xff] %vm515, %v424
      %519 = vst.msk [vmem:[%s217 + $0x18] sm:$0xff] %vm515, %v426
      %520 = vst.msk [vmem:[%s217 + $0x20] sm:$0xff] %vm515, %v428
      %521 = vst.msk [vmem:[%s217 + $0x28] sm:$0xff] %vm515, %v430
      %522 = vst.msk [vmem:[%s217 + $0x30] sm:$0xff] %vm515, %v432
      %523 = vst.msk [vmem:[%s217 + $0x38] sm:$0xff] %vm515, %v434
      %524 = vst.msk [vmem:[%s217 + $0x40] sm:$0xff] %vm515, %v436
      %525 = vst.msk [vmem:[%s217 + $0x48] sm:$0xff] %vm515, %v438
      %526 = vst.msk [vmem:[%s217 + $0x50] sm:$0xff] %vm515, %v440
      %527 = vst.msk [vmem:[%s217 + $0x58] sm:$0xff] %vm515, %v442
      %528 = vst.msk [vmem:[%s217 + $0x60] sm:$0xff] %vm515, %v444
      %529 = vst.msk [vmem:[%s217 + $0x68] sm:$0xff] %vm515, %v446
      %530 = vst.msk [vmem:[%s217 + $0x70] sm:$0xff] %vm515, %v448
      %531 = vst.msk [vmem:[%s217 + $0x78] sm:$0xff] %vm515, %v450
      %532 = vst.msk [vmem:[%s217 + $0x80] sm:$0xff] %vm515, %v452
      %533 = vst.msk [vmem:[%s217 + $0x88] sm:$0xff] %vm515, %v454
      %534 = vst.msk [vmem:[%s217 + $0x90] sm:$0xff] %vm515, %v456
      %535 = vst.msk [vmem:[%s217 + $0x98] sm:$0xff] %vm515, %v458
      %536 = vst.msk [vmem:[%s217 + $0xa0] sm:$0xff] %vm515, %v460
      %537 = vst.msk [vmem:[%s217 + $0xa8] sm:$0xff] %vm515, %v462
      %538 = vst.msk [vmem:[%s217 + $0xb0] sm:$0xff] %vm515, %v464
      %539 = vst.msk [vmem:[%s217 + $0xb8] sm:$0xff] %vm515, %v466
      %540 = vst.msk [vmem:[%s217 + $0xc0] sm:$0xff] %vm515, %v468
      %541 = vst.msk [vmem:[%s217 + $0xc8] sm:$0xff] %vm515, %v470
      %542 = vst.msk [vmem:[%s217 + $0xd0] sm:$0xff] %vm515, %v472
      %543 = vst.msk [vmem:[%s217 + $0xd8] sm:$0xff] %vm515, %v474
      %544 = vst.msk [vmem:[%s217 + $0xe0] sm:$0xff] %vm515, %v476
      %545 = vst.msk [vmem:[%s217 + $0xe8] sm:$0xff] %vm515, %v478
      %546 = vst.msk [vmem:[%s217 + $0xf0] sm:$0xff] %vm515, %v480
      %547 = vst.msk [vmem:[%s217 + $0xf8] sm:$0xff] %vm515, %v482
      %p548 = scmp.lt.s32.totalorder %s15, 3
      %s549 = scalar_select %p548, %s15, 3
      %s550 = smul.addr %s549, 32
      %s551 = smul.addr %s550, 8
      %s552 = scalar_lea.vmem %s4, %s551
      // Predicated region
      $region37: #{unet_innermost_forward.3} parent=35 // pred_check
        %p553 = pneg %p127
      $region38: #{unet_innermost_forward.3} parent=35 // pred_check_branch
        %555 = sbr.rel (%p553) target = $region40
      $region39: #{unet_innermost_forward.3} parent=35 // pred_region
        _
      $region40: #{unet_innermost_forward.3} parent=35 // pred_fallthru
        _
    $region36: #{unet_innermost_forward.3} parent=5 // pred_fallthru
      _
    %p556 = scmp.le.s32.totalorder 2, %s10
    // Predicated region
    $region41: #{unet_innermost_forward.3} parent=5 // pred_check
      %p557 = pneg %p556
    $region42: #{unet_innermost_forward.3} parent=5 // pred_check_branch
      %559 = sbr.rel (%p557) target = $region44
    $region43: #{unet_innermost_forward.3} parent=5 // pred_region
      %s560 = ssub.s32 %s10, 2
      // Predicated region
      $region45: #{unet_innermost_forward.3} parent=43 // pred_check
        %p561 = pneg %p133
      $region46: #{unet_innermost_forward.3} parent=43 // pred_check_branch
        %563 = sbr.rel (%p561) target = $region48
      $region47: #{unet_innermost_forward.3} parent=43 // pred_region
        %p564 = scmp.lt.s32.totalorder %s16, 3
        %s565 = scalar_select %p564, %s16, 3
        %s566 = smul.addr %s565, 32
        %s567 = smul.addr %s566, 8
        %s568 = scalar_lea.vmem %s4, %s567
      $region48: #{unet_innermost_forward.3} parent=43 // pred_fallthru
        _
    $region44: #{unet_innermost_forward.3} parent=5 // pred_fallthru
      _
  $region6: #{unet_innermost_forward.3} parent=0 // loop_footer
    %s14 = sadd.s32 1, %s10
  $region7: #{unet_innermost_forward.3} parent=0 // loop_footer_branch
    %9 = sbr.rel target = $region3
  $region8: #{unet_innermost_forward.3} parent=0 // loop_exit
    _

// kernel: unet_innermost_forward.2
$region0: #{unet_innermost_forward.2}
  #allocation0 [shape = 'u32[]', space=smem, size = 0x4, offset = 0x4, fixed_abs, tag = 'smem constant byte address 0x4 - core index']
  #allocation1 [shape = 'u32[72,128]{1,0:T(1,128)}', space=vmem, size = 0x9000, scoped, tag = 'internal scratch']
  #allocation2 [shape = 'f32[2,10,10,8]{3,2,1,0:T(8,128)}', space=vmem, size = 0x28000, scoped, tag = 'scratch operand']
  %s0 = inlined_call_operand.vmem [shape: f32[4,4,9,9,4], index: 0, kind: input, shape index: {}]
  %s1 = inlined_call_operand.vmem [shape: f32[4,16,8], index: 1, kind: input, shape index: {}]
  %s2 = inlined_call_operand.vmem [shape: f32[4,32,4], index: 2, kind: input, shape index: {}]
  %s3 = inlined_call_operand.vmem [shape: f32[4,8,2,8,8], index: 3, kind: output, shape index: {0}]
  %s4 = inlined_call_operand.vmem [shape: f32[2,1,4], index: 4, kind: output, shape index: {1}]
  %s5 = inlined_call_operand.vmem [shape: f32[2,1,4], index: 5, kind: output, shape index: {2}]
  %6 = xla_tuple %s3, %s4, %s5
  %s7 = sld [smem:[#allocation0]]
  $region61: #{unet_innermost_forward.2} parent=0
    _
  %s9 = ssub.s32 1, %s7
  %s10 = scalar_select 0, %s9, %s7
  loop: start=0, step=1, limit=4
  $region2: #{unet_innermost_forward.2} parent=0 // loop_pre_header
    _
  $region3: #{unet_innermost_forward.2} parent=0 // loop_header
    %s12 = sphi 0, %s16
    %p13 = scmp.ge.s32.totalorder %s12, 4
    %s22 = sphi 0, %s24
    %s25 = sphi 0, %s22
    %s26 = sphi 0, %s25
    %s42 = sphi 0, %s26
    %s46 = sphi 0, %s46
    %s48 = sphi 0, %s46
    %s49 = sphi 0, %s48
    %s63 = sphi 0, %s49
    %s67 = sphi 0, %s67
    %s69 = sphi 0, %s67
    %s70 = sphi 0, %s69
    %s84 = sphi 0, %s70
    %s90 = sphi 0, %s92
    %s93 = sphi 0, %s90
    %s94 = sphi 0, %s93
    %s110 = sphi 0, %s94
    %s116 = sphi 0, %s118
    %s119 = sphi 0, %s116
    %s120 = sphi 0, %s119
    %s136 = sphi 0, %s120
    %s142 = sphi 0, %s144
    %s145 = sphi 0, %s142
    %s146 = sphi 0, %s145
    %s162 = sphi 0, %s146
  $region4: #{unet_innermost_forward.2} parent=0 // loop_header_branch
    %15 = sbr.rel (%p13) target = $region8
  $region5: #{unet_innermost_forward.2} parent=0 // loop_body
    %s17 = ssub.s32 %s12, 1
    %s18 = ssub.s32 %s12, 2
    %s19 = sadd.s32 %s12, 1
    %s20 = ssub.s32 %s12, %s19
    %p21 = scmp.eq.s32.totalorder %s20, 0
    %s23 = sadd.s32 %s22, 1
    %s24 = scalar_select %p21, %s22, %s23
    %p27 = pneg %p21
    %p28 = scmp.eq.s32.totalorder %s12, 1
    %p29 = por %p27, %p28
    %p30 = scmp.ne.s32.totalorder %s22, %s25
    %p31 = scmp.eq.s32.totalorder %s12, 0
    %p32 = por %p30, %p31
    %p33 = scmp.ne.s32.totalorder %s22, %s25
    %p34 = scmp.eq.s32.totalorder %s17, 1
    %p35 = por %p33, %p34
    %p36 = scmp.ne.s32.totalorder %s25, %s26
    %p37 = scmp.eq.s32.totalorder %s17, 0
    %p38 = por %p36, %p37
    %p39 = scmp.ne.s32.totalorder %s25, %s26
    %p40 = scmp.eq.s32.totalorder %s18, 1
    %p41 = por %p39, %p40
    %p43 = scmp.ne.s32.totalorder %s26, %s42
    %p44 = scmp.eq.s32.totalorder %s18, 0
    %p45 = por %p43, %p44
    %s47 = sadd.s32 %s46, 1
    %p50 = scmp.eq.s32.totalorder %s12, 1
    %p51 = scmp.ne.s32.totalorder %s46, %s48
    %p52 = scmp.eq.s32.totalorder %s12, 0
    %p53 = por %p51, %p52
    %p54 = scmp.ne.s32.totalorder %s46, %s48
    %p55 = scmp.eq.s32.totalorder %s17, 1
    %p56 = por %p54, %p55
    %p57 = scmp.ne.s32.totalorder %s48, %s49
    %p58 = scmp.eq.s32.totalorder %s17, 0
    %p59 = por %p57, %p58
    %p60 = scmp.ne.s32.totalorder %s48, %s49
    %p61 = scmp.eq.s32.totalorder %s18, 1
    %p62 = por %p60, %p61
    %p64 = scmp.ne.s32.totalorder %s49, %s63
    %p65 = scmp.eq.s32.totalorder %s18, 0
    %p66 = por %p64, %p65
    %s68 = sadd.s32 %s67, 1
    %p71 = scmp.eq.s32.totalorder %s12, 1
    %p72 = scmp.ne.s32.totalorder %s67, %s69
    %p73 = scmp.eq.s32.totalorder %s12, 0
    %p74 = por %p72, %p73
    %p75 = scmp.ne.s32.totalorder %s67, %s69
    %p76 = scmp.eq.s32.totalorder %s17, 1
    %p77 = por %p75, %p76
    %p78 = scmp.ne.s32.totalorder %s69, %s70
    %p79 = scmp.eq.s32.totalorder %s17, 0
    %p80 = por %p78, %p79
    %p81 = scmp.ne.s32.totalorder %s69, %s70
    %p82 = scmp.eq.s32.totalorder %s18, 1
    %p83 = por %p81, %p82
    %p85 = scmp.ne.s32.totalorder %s70, %s84
    %p86 = scmp.eq.s32.totalorder %s18, 0
    %p87 = por %p85, %p86
    %s88 = ssub.s32 %s12, %s19
    %p89 = scmp.eq.s32.totalorder %s88, 0
    %s91 = sadd.s32 %s90, 1
    %s92 = scalar_select %p89, %s90, %s91
    %p95 = pneg %p89
    %p96 = scmp.eq.s32.totalorder %s12, 1
    %p97 = por %p95, %p96
    %p98 = scmp.ne.s32.totalorder %s90, %s93
    %p99 = scmp.eq.s32.totalorder %s12, 0
    %p100 = por %p98, %p99
    %p101 = scmp.ne.s32.totalorder %s90, %s93
    %p102 = scmp.eq.s32.totalorder %s17, 1
    %p103 = por %p101, %p102
    %p104 = scmp.ne.s32.totalorder %s93, %s94
    %p105 = scmp.eq.s32.totalorder %s17, 0
    %p106 = por %p104, %p105
    %p107 = scmp.ne.s32.totalorder %s93, %s94
    %p108 = scmp.eq.s32.totalorder %s18, 1
    %p109 = por %p107, %p108
    %p111 = scmp.ne.s32.totalorder %s94, %s110
    %p112 = scmp.eq.s32.totalorder %s18, 0
    %p113 = por %p111, %p112
    %s114 = ssub.s32 %s12, %s19
    %p115 = scmp.eq.s32.totalorder %s114, 0
    %s117 = sadd.s32 %s116, 1
    %s118 = scalar_select %p115, %s116, %s117
    %p121 = pneg %p115
    %p122 = scmp.eq.s32.totalorder %s12, 1
    %p123 = por %p121, %p122
    %p124 = scmp.ne.s32.totalorder %s116, %s119
    %p125 = scmp.eq.s32.totalorder %s12, 0
    %p126 = por %p124, %p125
    %p127 = scmp.ne.s32.totalorder %s116, %s119
    %p128 = scmp.eq.s32.totalorder %s17, 1
    %p129 = por %p127, %p128
    %p130 = scmp.ne.s32.totalorder %s119, %s120
    %p131 = scmp.eq.s32.totalorder %s17, 0
    %p132 = por %p130, %p131
    %p133 = scmp.ne.s32.totalorder %s119, %s120
    %p134 = scmp.eq.s32.totalorder %s18, 1
    %p135 = por %p133, %p134
    %p137 = scmp.ne.s32.totalorder %s120, %s136
    %p138 = scmp.eq.s32.totalorder %s18, 0
    %p139 = por %p137, %p138
    %s140 = ssub.s32 %s12, %s19
    %p141 = scmp.eq.s32.totalorder %s140, 0
    %s143 = sadd.s32 %s142, 1
    %s144 = scalar_select %p141, %s142, %s143
    %p147 = pneg %p141
    %p148 = scmp.eq.s32.totalorder %s12, 1
    %p149 = por %p147, %p148
    %p150 = scmp.ne.s32.totalorder %s142, %s145
    %p151 = scmp.eq.s32.totalorder %s12, 0
    %p152 = por %p150, %p151
    %p153 = scmp.ne.s32.totalorder %s142, %s145
    %p154 = scmp.eq.s32.totalorder %s17, 1
    %p155 = por %p153, %p154
    %p156 = scmp.ne.s32.totalorder %s145, %s146
    %p157 = scmp.eq.s32.totalorder %s17, 0
    %p158 = por %p156, %p157
    %p159 = scmp.ne.s32.totalorder %s145, %s146
    %p160 = scmp.eq.s32.totalorder %s18, 1
    %p161 = por %p159, %p160
    %p163 = scmp.ne.s32.totalorder %s146, %s162
    %p164 = scmp.eq.s32.totalorder %s18, 0
    %p165 = por %p163, %p164
    %p166 = scmp.le.s32.totalorder 1, %s12
    %p167 = scmp.lt.s32.totalorder %s12, 3
    %p168 = pnand %p166, %p167
    %p169 = pneg %p168
    // Predicated region
    $region9: #{unet_innermost_forward.2} parent=5 // pred_check
      _
    $region10: #{unet_innermost_forward.2} parent=5 // pred_check_branch
      %171 = sbr.rel (%p168) target = $region12
    $region11: #{unet_innermost_forward.2} parent=5 // pred_region
      %s172 = ssub.s32 %s12, 1
      // Predicated region
      $region13: #{unet_innermost_forward.2} parent=11 // pred_check
        %p173 = pneg %p59
      $region14: #{unet_innermost_forward.2} parent=11 // pred_check_branch
        %175 = sbr.rel (%p173) target = $region16
      $region15: #{unet_innermost_forward.2} parent=11 // pred_region
        _
      $region16: #{unet_innermost_forward.2} parent=11 // pred_fallthru
        _
      // Predicated region
      $region17: #{unet_innermost_forward.2} parent=11 // pred_check
        %p176 = pneg %p80
      $region18: #{unet_innermost_forward.2} parent=11 // pred_check_branch
        %178 = sbr.rel (%p176) target = $region20
      $region19: #{unet_innermost_forward.2} parent=11 // pred_region
        _
      $region20: #{unet_innermost_forward.2} parent=11 // pred_fallthru
        _
    $region12: #{unet_innermost_forward.2} parent=5 // pred_fallthru
      _
    %p179 = scmp.lt.s32.totalorder %s12, 2
    // Predicated region
    $region21: #{unet_innermost_forward.2} parent=5 // pred_check
      %p180 = pneg %p179
    $region22: #{unet_innermost_forward.2} parent=5 // pred_check_branch
      %182 = sbr.rel (%p180) target = $region24
    $region23: #{unet_innermost_forward.2} parent=5 // pred_region
      // Predicated region
      $region25: #{unet_innermost_forward.2} parent=23 // pred_check
        %p183 = pneg %p32
      $region26: #{unet_innermost_forward.2} parent=23 // pred_check_branch
        %185 = sbr.rel (%p183) target = $region28
      $region27: #{unet_innermost_forward.2} parent=23 // pred_region
        %s186 = smul.u32 2, %s12
        %p187 = scmp.lt.s32.totalorder %s186, 3
        %s188 = scalar_select %p187, %s186, 3
        %s189 = smul.addr %s188, 72
        %s190 = smul.addr %s189, 8
        %s191 = scalar_lea.vmem %s0, %s190
        %s192 = smul.u32 2, %s12
      $region28: #{unet_innermost_forward.2} parent=23 // pred_fallthru
        _
    $region24: #{unet_innermost_forward.2} parent=5 // pred_fallthru
      _
    %p193 = scmp.le.s32.totalorder 1, %s12
    %p194 = scmp.lt.s32.totalorder %s12, 3
    %p195 = pnand %p193, %p194
    %p196 = pneg %p195
    // Predicated region
    $region29: #{unet_innermost_forward.2} parent=5 // pred_check
      _
    $region30: #{unet_innermost_forward.2} parent=5 // pred_check_branch
      %198 = sbr.rel (%p195) target = $region32
    $region31: #{unet_innermost_forward.2} parent=5 // pred_region
      %s199 = ssub.s32 %s12, 1
      %s200 = smul.u32 2, %s17
      %p201 = scmp.lt.s32.totalorder %s200, 3
      %s202 = scalar_select %p201, %s200, 3
      %s203 = smul.addr %s202, 72
      %s204 = smul.addr %s203, 8
      %s205 = scalar_lea.vmem %s0, %s204
      %p206 = pneg %p38
      %p207 = pneg %p35
      %p208 = pneg %p59
      %p209 = pneg %p56
      %p210 = pneg %p80
      %p211 = pneg %p77
      %p212 = pneg %p106
      %p213 = pneg %p103
      %s214 = smul.u32 2, %s17
      %p215 = scmp.lt.s32.totalorder %s214, 3
      %s216 = scalar_select %p215, %s214, 3
      %s217 = smul.addr %s216, 16
      %s218 = smul.addr %s217, 8
      %s219 = scalar_lea.vmem %s3, %s218
      %p220 = pneg %p132
      %p221 = pneg %p129
      %p222 = scmp.lt.s32.totalorder %s17, 1
      %s223 = scalar_select %p222, %s17, 1
      %s224 = scalar_lea.vmem %s4, %s223
      %p225 = pneg %p158
      %p226 = pneg %p155
      %p227 = scmp.lt.s32.totalorder %s17, 1
      %s228 = scalar_select %p227, %s17, 1
      %s229 = scalar_lea.vmem %s5, %s228
      %s230 = smul.u32 2, %s17
      %p231 = scmp.lt.s32.totalorder %s230, 3
      %s232 = scalar_select %p231, %s230, 3
      %s233 = smul.addr %s232, 72
      %s234 = smul.addr %s233, 8
      %s235 = scalar_lea.vmem %s0, %s234
      %s236 = smul.u32 2, %s17
      %s237 = smul.u32 2, %s17
      %p238 = scmp.lt.s32.totalorder %s237, 3
      %s239 = scalar_select %p238, %s237, 3
      %s240 = smul.addr %s239, 16
      %s241 = smul.addr %s240, 8
      %s242 = scalar_lea.vmem %s3, %s241
      %s243 = smul.u32 2, %s17
      %p244 = scmp.lt.s32.totalorder %s17, 1
      %s245 = scalar_select %p244, %s17, 1
      %s246 = scalar_lea.vmem %s4, %s245
      %p247 = scmp.lt.s32.totalorder %s17, 1
      %s248 = scalar_select %p247, %s17, 1
      %s249 = scalar_lea.vmem %s5, %s248
      %v250 = vld [vmem:[%s235] sm:$0xff]
      %v251 = vld [vmem:[%s235 + $0x8] sm:$0x1]
      %v252 = vld [vmem:[%s235 + $0x10] sm:$0xff]
      %v253 = vld [vmem:[%s235 + $0x18] sm:$0x1]
      %v254 = vld [vmem:[%s235 + $0x20] sm:$0xff]
      %v255 = vld [vmem:[%s235 + $0x28] sm:$0x1]
      %v256 = vld [vmem:[%s235 + $0x30] sm:$0xff]
      %v257 = vld [vmem:[%s235 + $0x38] sm:$0x1]
      %v258 = vld [vmem:[%s235 + $0x40] sm:$0xff]
      %v259 = vld [vmem:[%s235 + $0x48] sm:$0x1]
      %v260 = vld [vmem:[%s235 + $0x50] sm:$0xff]
      %v261 = vld [vmem:[%s235 + $0x58] sm:$0x1]
      %v262 = vld [vmem:[%s235 + $0x60] sm:$0xff]
      %v263 = vld [vmem:[%s235 + $0x68] sm:$0x1]
      %v264 = vld [vmem:[%s235 + $0x70] sm:$0xff]
      %v265 = vld [vmem:[%s235 + $0x78] sm:$0x1]
      %v266 = vld [vmem:[%s235 + $0x80] sm:$0xff]
      %v267 = vld [vmem:[%s235 + $0x88] sm:$0x1]
      %v268 = vld [vmem:[%s235 + $0x240] sm:$0xff]
      %v269 = vld [vmem:[%s235 + $0x248] sm:$0x1]
      %v270 = vld [vmem:[%s235 + $0x250] sm:$0xff]
      %v271 = vld [vmem:[%s235 + $0x258] sm:$0x1]
      %v272 = vld [vmem:[%s235 + $0x260] sm:$0xff]
      %v273 = vld [vmem:[%s235 + $0x268] sm:$0x1]
      %v274 = vld [vmem:[%s235 + $0x270] sm:$0xff]
      %v275 = vld [vmem:[%s235 + $0x278] sm:$0x1]
      %v276 = vld [vmem:[%s235 + $0x280] sm:$0xff]
      %v277 = vld [vmem:[%s235 + $0x288] sm:$0x1]
      %v278 = vld [vmem:[%s235 + $0x290] sm:$0xff]
      %v279 = vld [vmem:[%s235 + $0x298] sm:$0x1]
      %v280 = vld [vmem:[%s235 + $0x2a0] sm:$0xff]
      %v281 = vld [vmem:[%s235 + $0x2a8] sm:$0x1]
      %v282 = vld [vmem:[%s235 + $0x2b0] sm:$0xff]
      %v283 = vld [vmem:[%s235 + $0x2b8] sm:$0x1]
      %v284 = vld [vmem:[%s235 + $0x2c0] sm:$0xff]
      %v285 = vld [vmem:[%s235 + $0x2c8] sm:$0x1]
      %vm286 = vcmp.ge.f32.partialorder %v250, 0.0
      %vm287 = vcmp.ge.f32.partialorder %v251, 0.0
      %vm288 = vcmp.ge.f32.partialorder %v252, 0.0
      %vm289 = vcmp.ge.f32.partialorder %v253, 0.0
      %vm290 = vcmp.ge.f32.partialorder %v254, 0.0
      %vm291 = vcmp.ge.f32.partialorder %v255, 0.0
      %vm292 = vcmp.ge.f32.partialorder %v256, 0.0
      %vm293 = vcmp.ge.f32.partialorder %v257, 0.0
      %vm294 = vcmp.ge.f32.partialorder %v258, 0.0
      %vm295 = vcmp.ge.f32.partialorder %v259, 0.0
      %vm296 = vcmp.ge.f32.partialorder %v260, 0.0
      %vm297 = vcmp.ge.f32.partialorder %v261, 0.0
      %vm298 = vcmp.ge.f32.partialorder %v262, 0.0
      %vm299 = vcmp.ge.f32.partialorder %v263, 0.0
      %vm300 = vcmp.ge.f32.partialorder %v264, 0.0
      %vm301 = vcmp.ge.f32.partialorder %v265, 0.0
      %vm302 = vcmp.ge.f32.partialorder %v266, 0.0
      %vm303 = vcmp.ge.f32.partialorder %v267, 0.0
      %vm304 = vcmp.ge.f32.partialorder %v268, 0.0
      %vm305 = vcmp.ge.f32.partialorder %v269, 0.0
      %vm306 = vcmp.ge.f32.partialorder %v270, 0.0
      %vm307 = vcmp.ge.f32.partialorder %v271, 0.0
      %vm308 = vcmp.ge.f32.partialorder %v272, 0.0
      %vm309 = vcmp.ge.f32.partialorder %v273, 0.0
      %vm310 = vcmp.ge.f32.partialorder %v274, 0.0
      %vm311 = vcmp.ge.f32.partialorder %v275, 0.0
      %vm312 = vcmp.ge.f32.partialorder %v276, 0.0
      %vm313 = vcmp.ge.f32.partialorder %v277, 0.0
      %vm314 = vcmp.ge.f32.partialorder %v278, 0.0
      %vm315 = vcmp.ge.f32.partialorder %v279, 0.0
      %vm316 = vcmp.ge.f32.partialorder %v280, 0.0
      %vm317 = vcmp.ge.f32.partialorder %v281, 0.0
      %vm318 = vcmp.ge.f32.partialorder %v282, 0.0
      %vm319 = vcmp.ge.f32.partialorder %v283, 0.0
      %vm320 = vcmp.ge.f32.partialorder %v284, 0.0
      %vm321 = vcmp.ge.f32.partialorder %v285, 0.0
      %v322 = vmul.f32 %v250, 0.2
      %v323 = vmul.f32 %v251, 0.2
      %v324 = vmul.f32 %v252, 0.2
      %v325 = vmul.f32 %v253, 0.2
      %v326 = vmul.f32 %v254, 0.2
      %v327 = vmul.f32 %v255, 0.2
      %v328 = vmul.f32 %v256, 0.2
      %v329 = vmul.f32 %v257, 0.2
      %v330 = vmul.f32 %v258, 0.2
      %v331 = vmul.f32 %v259, 0.2
      %v332 = vmul.f32 %v260, 0.2
      %v333 = vmul.f32 %v261, 0.2
      %v334 = vmul.f32 %v262, 0.2
      %v335 = vmul.f32 %v263, 0.2
      %v336 = vmul.f32 %v264, 0.2
      %v337 = vmul.f32 %v265, 0.2
      %v338 = vmul.f32 %v266, 0.2
      %v339 = vmul.f32 %v267, 0.2
      %v340 = vmul.f32 %v268, 0.2
      %v341 = vmul.f32 %v269, 0.2
      %v342 = vmul.f32 %v270, 0.2
      %v343 = vmul.f32 %v271, 0.2
      %v344 = vmul.f32 %v272, 0.2
      %v345 = vmul.f32 %v273, 0.2
      %v346 = vmul.f32 %v274, 0.2
      %v347 = vmul.f32 %v275, 0.2
      %v348 = vmul.f32 %v276, 0.2
      %v349 = vmul.f32 %v277, 0.2
      %v350 = vmul.f32 %v278, 0.2
      %v351 = vmul.f32 %v279, 0.2
      %v352 = vmul.f32 %v280, 0.2
      %v353 = vmul.f32 %v281, 0.2
      %v354 = vmul.f32 %v282, 0.2
      %v355 = vmul.f32 %v283, 0.2
      %v356 = vmul.f32 %v284, 0.2
      %v357 = vmul.f32 %v285, 0.2
      %v358 = vsel %vm286, %v250, %v322
      %v359 = vsel %vm287, %v251, %v323
      %v360 = vsel %vm288, %v252, %v324
      %v361 = vsel %vm289, %v253, %v325
      %v362 = vsel %vm290, %v254, %v326
      %v363 = vsel %vm291, %v255, %v327
      %v364 = vsel %vm292, %v256, %v328
      %v365 = vsel %vm293, %v257, %v329
      %v366 = vsel %vm294, %v258, %v330
      %v367 = vsel %vm295, %v259, %v331
      %v368 = vsel %vm296, %v260, %v332
      %v369 = vsel %vm297, %v261, %v333
      %v370 = vsel %vm298, %v262, %v334
      %v371 = vsel %vm299, %v263, %v335
      %v372 = vsel %vm300, %v264, %v336
      %v373 = vsel %vm301, %v265, %v337
      %v374 = vsel %vm302, %v266, %v338
      %v375 = vsel %vm303, %v267, %v339
      %v376 = vsel %vm304, %v268, %v340
      %v377 = vsel %vm305, %v269, %v341
      %v378 = vsel %vm306, %v270, %v342
      %v379 = vsel %vm307, %v271, %v343
      %v380 = vsel %vm308, %v272, %v344
      %v381 = vsel %vm309, %v273, %v345
      %v382 = vsel %vm310, %v274, %v346
      %v383 = vsel %vm311, %v275, %v347
      %v384 = vsel %vm312, %v276, %v348
      %v385 = vsel %vm313, %v277, %v349
      %v386 = vsel %vm314, %v278, %v350
      %v387 = vsel %vm315, %v279, %v351
      %v388 = vsel %vm316, %v280, %v352
      %v389 = vsel %vm317, %v281, %v353
      %v390 = vsel %vm318, %v282, %v354
      %v391 = vsel %vm319, %v283, %v355
      %v392 = vsel %vm320, %v284, %v356
      %v393 = vsel %vm321, %v285, %v357
      %vm426 = vcmask 1046528
      %v427 = vrot.slane %v358, 1
      %v428 = vrot.slane %v359, 1
      %v429 = vsel %vm426, %v427, %v428
      %v430 = vrot.slane %v360, 1
      %v431 = vrot.slane %v361, 1
      %v432 = vsel %vm426, %v430, %v431
      %v433 = vrot.slane %v362, 1
      %v434 = vrot.slane %v363, 1
      %v435 = vsel %vm426, %v433, %v434
      %v436 = vrot.slane %v364, 1
      %v437 = vrot.slane %v365, 1
      %v438 = vsel %vm426, %v436, %v437
      %v439 = vrot.slane %v366, 1
      %v440 = vrot.slane %v367, 1
      %v441 = vsel %vm426, %v439, %v440
      %v442 = vrot.slane %v368, 1
      %v443 = vrot.slane %v369, 1
      %v444 = vsel %vm426, %v442, %v443
      %v445 = vrot.slane %v370, 1
      %v446 = vrot.slane %v371, 1
      %v447 = vsel %vm426, %v445, %v446
      %v448 = vrot.slane %v372, 1
      %v449 = vrot.slane %v373, 1
      %v450 = vsel %vm426, %v448, %v449
      %v451 = vrot.slane %v376, 1
      %v452 = vrot.slane %v377, 1
      %v453 = vsel %vm426, %v451, %v452
      %v454 = vrot.slane %v378, 1
      %v455 = vrot.slane %v379, 1
      %v456 = vsel %vm426, %v454, %v455
      %v457 = vrot.slane %v380, 1
      %v458 = vrot.slane %v381, 1
      %v459 = vsel %vm426, %v457, %v458
      %v460 = vrot.slane %v382, 1
      %v461 = vrot.slane %v383, 1
      %v462 = vsel %vm426, %v460, %v461
      %v463 = vrot.slane %v384, 1
      %v464 = vrot.slane %v385, 1
      %v465 = vsel %vm426, %v463, %v464
      %v466 = vrot.slane %v386, 1
      %v467 = vrot.slane %v387, 1
      %v468 = vsel %vm426, %v466, %v467
      %v469 = vrot.slane %v388, 1
      %v470 = vrot.slane %v389, 1
      %v471 = vsel %vm426, %v469, %v470
      %v472 = vrot.slane %v390, 1
      %v473 = vrot.slane %v391, 1
      %v474 = vsel %vm426, %v472, %v473
      %475 = vrot.lane.b32.xlu0 %v429, 4
      %v476 = vpop.permute.xlu0 %475
      %477 = vrot.lane.b32.xlu0 %v432, 4
      %v478 = vpop.permute.xlu0 %477
      %479 = vrot.lane.b32.xlu0 %v435, 4
      %v480 = vpop.permute.xlu0 %479
      %481 = vrot.lane.b32.xlu0 %v438, 4
      %v482 = vpop.permute.xlu0 %481
      %483 = vrot.lane.b32.xlu0 %v441, 4
      %v484 = vpop.permute.xlu0 %483
      %485 = vrot.lane.b32.xlu0 %v444, 4
      %v486 = vpop.permute.xlu0 %485
      %487 = vrot.lane.b32.xlu0 %v447, 4
      %v488 = vpop.permute.xlu0 %487
      %489 = vrot.lane.b32.xlu0 %v450, 4
      %v490 = vpop.permute.xlu0 %489
      %491 = vrot.lane.b32.xlu0 %v453, 4
      %v492 = vpop.permute.xlu0 %491
      %493 = vrot.lane.b32.xlu0 %v456, 4
      %v494 = vpop.permute.xlu0 %493
      %495 = vrot.lane.b32.xlu0 %v459, 4
      %v496 = vpop.permute.xlu0 %495
      %497 = vrot.lane.b32.xlu0 %v462, 4
      %v498 = vpop.permute.xlu0 %497
      %499 = vrot.lane.b32.xlu0 %v465, 4
      %v500 = vpop.permute.xlu0 %499
      %501 = vrot.lane.b32.xlu0 %v468, 4
      %v502 = vpop.permute.xlu0 %501
      %503 = vrot.lane.b32.xlu0 %v471, 4
      %v504 = vpop.permute.xlu0 %503
      %505 = vrot.lane.b32.xlu0 %v474, 4
      %v506 = vpop.permute.xlu0 %505
      %525 = vrot.lane.b32.xlu0 %v360, 8
      %v526 = vpop.permute.xlu0 %525
      %527 = vrot.lane.b32.xlu0 %v362, 8
      %v528 = vpop.permute.xlu0 %527
      %529 = vrot.lane.b32.xlu0 %v364, 8
      %v530 = vpop.permute.xlu0 %529
      %531 = vrot.lane.b32.xlu0 %v366, 8
      %v532 = vpop.permute.xlu0 %531
      %533 = vrot.lane.b32.xlu0 %v368, 8
      %v534 = vpop.permute.xlu0 %533
      %535 = vrot.lane.b32.xlu0 %v370, 8
      %v536 = vpop.permute.xlu0 %535
      %537 = vrot.lane.b32.xlu0 %v372, 8
      %v538 = vpop.permute.xlu0 %537
      %539 = vrot.lane.b32.xlu0 %v374, 8
      %v540 = vpop.permute.xlu0 %539
      %541 = vrot.lane.b32.xlu0 %v378, 8
      %v542 = vpop.permute.xlu0 %541
      %543 = vrot.lane.b32.xlu0 %v380, 8
      %v544 = vpop.permute.xlu0 %543
      %545 = vrot.lane.b32.xlu0 %v382, 8
      %v546 = vpop.permute.xlu0 %545
      %547 = vrot.lane.b32.xlu0 %v384, 8
      %v548 = vpop.permute.xlu0 %547
      %549 = vrot.lane.b32.xlu0 %v386, 8
      %v550 = vpop.permute.xlu0 %549
      %551 = vrot.lane.b32.xlu0 %v388, 8
      %v552 = vpop.permute.xlu0 %551
      %553 = vrot.lane.b32.xlu0 %v390, 8
      %v554 = vpop.permute.xlu0 %553
      %555 = vrot.lane.b32.xlu0 %v392, 8
      %v556 = vpop.permute.xlu0 %555
      %v575 = vrot.slane %v374, 1
      %v576 = vrot.slane %v375, 1
      %v577 = vsel %vm426, %v575, %v576
      %v578 = vrot.slane %v392, 1
      %v579 = vrot.slane %v393, 1
      %v580 = vsel %vm426, %v578, %v579
      %581 = vrot.lane.b32.xlu0 %v432, 12
      %v582 = vpop.permute.xlu0 %581
      %583 = vrot.lane.b32.xlu0 %v435, 12
      %v584 = vpop.permute.xlu0 %583
      %585 = vrot.lane.b32.xlu0 %v438, 12
      %v586 = vpop.permute.xlu0 %585
      %587 = vrot.lane.b32.xlu0 %v441, 12
      %v588 = vpop.permute.xlu0 %587
      %589 = vrot.lane.b32.xlu0 %v444, 12
      %v590 = vpop.permute.xlu0 %589
      %591 = vrot.lane.b32.xlu0 %v447, 12
      %v592 = vpop.permute.xlu0 %591
      %593 = vrot.lane.b32.xlu0 %v450, 12
      %v594 = vpop.permute.xlu0 %593
      %595 = vrot.lane.b32.xlu0 %v577, 12
      %v596 = vpop.permute.xlu0 %595
      %597 = vrot.lane.b32.xlu0 %v456, 12
      %v598 = vpop.permute.xlu0 %597
      %599 = vrot.lane.b32.xlu0 %v459, 12
      %v600 = vpop.permute.xlu0 %599
      %601 = vrot.lane.b32.xlu0 %v462, 12
      %v602 = vpop.permute.xlu0 %601
      %603 = vrot.lane.b32.xlu0 %v465, 12
      %v604 = vpop.permute.xlu0 %603
      %605 = vrot.lane.b32.xlu0 %v468, 12
      %v606 = vpop.permute.xlu0 %605
      %607 = vrot.lane.b32.xlu0 %v471, 12
      %v608 = vpop.permute.xlu0 %607
      %609 = vrot.lane.b32.xlu0 %v474, 12
      %v610 = vpop.permute.xlu0 %609
      %611 = vrot.lane.b32.xlu0 %v580, 12
      %v612 = vpop.permute.xlu0 %611
      %vm629 = vcmask 31744
      %v630 = vsel %vm629, %v358, %v476
      %v631 = vsel %vm629, %v360, %v478
      %v632 = vsel %vm629, %v362, %v480
      %v633 = vsel %vm629, %v364, %v482
      %v634 = vsel %vm629, %v366, %v484
      %v635 = vsel %vm629, %v368, %v486
      %v636 = vsel %vm629, %v370, %v488
      %v637 = vsel %vm629, %v372, %v490
      %v638 = vsel %vm629, %v376, %v492
      %v639 = vsel %vm629, %v378, %v494
      %v640 = vsel %vm629, %v380, %v496
      %v641 = vsel %vm629, %v382, %v498
      %v642 = vsel %vm629, %v384, %v500
      %v643 = vsel %vm629, %v386, %v502
      %v644 = vsel %vm629, %v388, %v504
      %v645 = vsel %vm629, %v390, %v506
      %vm646 = vcmask 64512
      %v647 = vsel %vm646, %v630, %v526
      %v648 = vsel %vm646, %v631, %v528
      %v649 = vsel %vm646, %v632, %v530
      %v650 = vsel %vm646, %v633, %v532
      %v651 = vsel %vm646, %v634, %v534
      %v652 = vsel %vm646, %v635, %v536
      %v653 = vsel %vm646, %v636, %v538
      %v654 = vsel %vm646, %v637, %v540
      %v655 = vsel %vm646, %v638, %v542
      %v656 = vsel %vm646, %v639, %v544
      %v657 = vsel %vm646, %v640, %v546
      %v658 = vsel %vm646, %v641, %v548
      %v659 = vsel %vm646, %v642, %v550
      %v660 = vsel %vm646, %v643, %v552
      %v661 = vsel %vm646, %v644, %v554
      %v662 = vsel %vm646, %v645, %v556
      %vm663 = vcmask 97280
      %v664 = vsel %vm663, %v647, %v582
      %v665 = vsel %vm663, %v648, %v584
      %v666 = vsel %vm663, %v649, %v586
      %v667 = vsel %vm663, %v650, %v588
      %v668 = vsel %vm663, %v651, %v590
      %v669 = vsel %vm663, %v652, %v592
      %v670 = vsel %vm663, %v653, %v594
      %v671 = vsel %vm663, %v654, %v596
      %v672 = vsel %vm663, %v655, %v598
      %v673 = vsel %vm663, %v656, %v600
      %v674 = vsel %vm663, %v657, %v602
      %v675 = vsel %vm663, %v658, %v604
      %v676 = vsel %vm663, %v659, %v606
      %v677 = vsel %vm663, %v660, %v608
      %v678 = vsel %vm663, %v661, %v610
      %v679 = vsel %vm663, %v662, %v612
      %v680 = vld [vmem:[%s1] sm:$0xff]
      %v681 = vld [vmem:[%s1 + $0x8] sm:$0xff]
      %s682 = scalar_lea.vmem %s235, 144
      %v683 = vld [vmem:[%s682] sm:$0xff]
      %v684 = vld [vmem:[%s682 + $0x8] sm:$0x1]
      %v685 = vld [vmem:[%s682 + $0x10] sm:$0xff]
      %v686 = vld [vmem:[%s682 + $0x18] sm:$0x1]
      %v687 = vld [vmem:[%s682 + $0x20] sm:$0xff]
      %v688 = vld [vmem:[%s682 + $0x28] sm:$0x1]
      %v689 = vld [vmem:[%s682 + $0x30] sm:$0xff]
      %v690 = vld [vmem:[%s682 + $0x38] sm:$0x1]
      %v691 = vld [vmem:[%s682 + $0x40] sm:$0xff]
      %v692 = vld [vmem:[%s682 + $0x48] sm:$0x1]
      %v693 = vld [vmem:[%s682 + $0x50] sm:$0xff]
      %v694 = vld [vmem:[%s682 + $0x58] sm:$0x1]
      %v695 = vld [vmem:[%s682 + $0x60] sm:$0xff]
      %v696 = vld [vmem:[%s682 + $0x68] sm:$0x1]
      %v697 = vld [vmem:[%s682 + $0x70] sm:$0xff]
      %v698 = vld [vmem:[%s682 + $0x78] sm:$0x1]
      %v699 = vld [vmem:[%s682 + $0x80] sm:$0xff]
      %v700 = vld [vmem:[%s682 + $0x88] sm:$0x1]
      %v701 = vld [vmem:[%s682 + $0x240] sm:$0xff]
      %v702 = vld [vmem:[%s682 + $0x248] sm:$0x1]
      %v703 = vld [vmem:[%s682 + $0x250] sm:$0xff]
      %v704 = vld [vmem:[%s682 + $0x258] sm:$0x1]
      %v705 = vld [vmem:[%s682 + $0x260] sm:$0xff]
      %v706 = vld [vmem:[%s682 + $0x268] sm:$0x1]
      %v707 = vld [vmem:[%s682 + $0x270] sm:$0xff]
      %v708 = vld [vmem:[%s682 + $0x278] sm:$0x1]
      %v709 = vld [vmem:[%s682 + $0x280] sm:$0xff]
      %v710 = vld [vmem:[%s682 + $0x288] sm:$0x1]
      %v711 = vld [vmem:[%s682 + $0x290] sm:$0xff]
      %v712 = vld [vmem:[%s682 + $0x298] sm:$0x1]
      %v713 = vld [vmem:[%s682 + $0x2a0] sm:$0xff]
      %v714 = vld [vmem:[%s682 + $0x2a8] sm:$0x1]
      %v715 = vld [vmem:[%s682 + $0x2b0] sm:$0xff]
      %v716 = vld [vmem:[%s682 + $0x2b8] sm:$0x1]
      %v717 = vld [vmem:[%s682 + $0x2c0] sm:$0xff]
      %v718 = vld [vmem:[%s682 + $0x2c8] sm:$0x1]
      %vm719 = vcmp.ge.f32.partialorder %v683, 0.0
      %vm720 = vcmp.ge.f32.partialorder %v684, 0.0
      %vm721 = vcmp.ge.f32.partialorder %v685, 0.0
      %vm722 = vcmp.ge.f32.partialorder %v686, 0.0
      %vm723 = vcmp.ge.f32.partialorder %v687, 0.0
      %vm724 = vcmp.ge.f32.partialorder %v688, 0.0
      %vm725 = vcmp.ge.f32.partialorder %v689, 0.0
      %vm726 = vcmp.ge.f32.partialorder %v690, 0.0
      %vm727 = vcmp.ge.f32.partialorder %v691, 0.0
      %vm728 = vcmp.ge.f32.partialorder %v692, 0.0
      %vm729 = vcmp.ge.f32.partialorder %v693, 0.0
      %vm730 = vcmp.ge.f32.partialorder %v694, 0.0
      %vm731 = vcmp.ge.f32.partialorder %v695, 0.0
      %vm732 = vcmp.ge.f32.partialorder %v696, 0.0
      %vm733 = vcmp.ge.f32.partialorder %v697, 0.0
      %vm734 = vcmp.ge.f32.partialorder %v698, 0.0
      %vm735 = vcmp.ge.f32.partialorder %v699, 0.0
      %vm736 = vcmp.ge.f32.partialorder %v700, 0.0
      %vm737 = vcmp.ge.f32.partialorder %v701, 0.0
      %vm738 = vcmp.ge.f32.partialorder %v702, 0.0
      %vm739 = vcmp.ge.f32.partialorder %v703, 0.0
      %vm740 = vcmp.ge.f32.partialorder %v704, 0.0
      %vm741 = vcmp.ge.f32.partialorder %v705, 0.0
      %vm742 = vcmp.ge.f32.partialorder %v706, 0.0
      %vm743 = vcmp.ge.f32.partialorder %v707, 0.0
      %vm744 = vcmp.ge.f32.partialorder %v708, 0.0
      %vm745 = vcmp.ge.f32.partialorder %v709, 0.0
      %vm746 = vcmp.ge.f32.partialorder %v710, 0.0
      %vm747 = vcmp.ge.f32.partialorder %v711, 0.0
      %vm748 = vcmp.ge.f32.partialorder %v712, 0.0
      %vm749 = vcmp.ge.f32.partialorder %v713, 0.0
      %vm750 = vcmp.ge.f32.partialorder %v714, 0.0
      %vm751 = vcmp.ge.f32.partialorder %v715, 0.0
      %vm752 = vcmp.ge.f32.partialorder %v716, 0.0
      %vm753 = vcmp.ge.f32.partialorder %v717, 0.0
      %vm754 = vcmp.ge.f32.partialorder %v718, 0.0
      %v755 = vmul.f32 %v683, 0.2
      %v756 = vmul.f32 %v684, 0.2
      %v757 = vmul.f32 %v685, 0.2
      %v758 = vmul.f32 %v686, 0.2
      %v759 = vmul.f32 %v687, 0.2
      %v760 = vmul.f32 %v688, 0.2
      %v761 = vmul.f32 %v689, 0.2
      %v762 = vmul.f32 %v690, 0.2
      %v763 = vmul.f32 %v691, 0.2
      %v764 = vmul.f32 %v692, 0.2
      %v765 = vmul.f32 %v693, 0.2
      %v766 = vmul.f32 %v694, 0.2
      %v767 = vmul.f32 %v695, 0.2
      %v768 = vmul.f32 %v696, 0.2
      %v769 = vmul.f32 %v697, 0.2
      %v770 = vmul.f32 %v698, 0.2
      %v771 = vmul.f32 %v699, 0.2
      %v772 = vmul.f32 %v700, 0.2
      %v773 = vmul.f32 %v701, 0.2
      %v774 = vmul.f32 %v702, 0.2
      %v775 = vmul.f32 %v703, 0.2
      %v776 = vmul.f32 %v704, 0.2
      %v777 = vmul.f32 %v705, 0.2
      %v778 = vmul.f32 %v706, 0.2
      %v779 = vmul.f32 %v707, 0.2
      %v780 = vmul.f32 %v708, 0.2
      %v781 = vmul.f32 %v709, 0.2
      %v782 = vmul.f32 %v710, 0.2
      %v783 = vmul.f32 %v711, 0.2
      %v784 = vmul.f32 %v712, 0.2
      %v785 = vmul.f32 %v713, 0.2
      %v786 = vmul.f32 %v714, 0.2
      %v787 = vmul.f32 %v715, 0.2
      %v788 = vmul.f32 %v716, 0.2
      %v789 = vmul.f32 %v717, 0.2
      %v790 = vmul.f32 %v718, 0.2
      %v791 = vsel %vm719, %v683, %v755
      %v792 = vsel %vm720, %v684, %v756
      %v793 = vsel %vm721, %v685, %v757
      %v794 = vsel %vm722, %v686, %v758
      %v795 = vsel %vm723, %v687, %v759
      %v796 = vsel %vm724, %v688, %v760
      %v797 = vsel %vm725, %v689, %v761
      %v798 = vsel %vm726, %v690, %v762
      %v799 = vsel %vm727, %v691, %v763
      %v800 = vsel %vm728, %v692, %v764
      %v801 = vsel %vm729, %v693, %v765
      %v802 = vsel %vm730, %v694, %v766
      %v803 = vsel %vm731, %v695, %v767
      %v804 = vsel %vm732, %v696, %v768
      %v805 = vsel %vm733, %v697, %v769
      %v806 = vsel %vm734, %v698, %v770
      %v807 = vsel %vm735, %v699, %v771
      %v808 = vsel %vm736, %v700, %v772
      %v809 = vsel %vm737, %v701, %v773
      %v810 = vsel %vm738, %v702, %v774
      %v811 = vsel %vm739, %v703, %v775
      %v812 = vsel %vm740, %v704, %v776
      %v813 = vsel %vm741, %v705, %v777
      %v814 = vsel %vm742, %v706, %v778
      %v815 = vsel %vm743, %v707, %v779
      %v816 = vsel %vm744, %v708, %v780
      %v817 = vsel %vm745, %v709, %v781
      %v818 = vsel %vm746, %v710, %v782
      %v819 = vsel %vm747, %v711, %v783
      %v820 = vsel %vm748, %v712, %v784
      %v821 = vsel %vm749, %v713, %v785
      %v822 = vsel %vm750, %v714, %v786
      %v823 = vsel %vm751, %v715, %v787
      %v824 = vsel %vm752, %v716, %v788
      %v825 = vsel %vm753, %v717, %v789
      %v826 = vsel %vm754, %v718, %v790
      %v859 = vrot.slane %v791, 1
      %v860 = vrot.slane %v792, 1
      %v861 = vsel %vm426, %v859, %v860
      %v862 = vrot.slane %v793, 1
      %v863 = vrot.slane %v794, 1
      %v864 = vsel %vm426, %v862, %v863
      %v865 = vrot.slane %v795, 1
      %v866 = vrot.slane %v796, 1
      %v867 = vsel %vm426, %v865, %v866
      %v868 = vrot.slane %v797, 1
      %v869 = vrot.slane %v798, 1
      %v870 = vsel %vm426, %v868, %v869
      %v871 = vrot.slane %v799, 1
      %v872 = vrot.slane %v800, 1
      %v873 = vsel %vm426, %v871, %v872
      %v874 = vrot.slane %v801, 1
      %v875 = vrot.slane %v802, 1
      %v876 = vsel %vm426, %v874, %v875
      %v877 = vrot.slane %v803, 1
      %v878 = vrot.slane %v804, 1
      %v879 = vsel %vm426, %v877, %v878
      %v880 = vrot.slane %v805, 1
      %v881 = vrot.slane %v806, 1
      %v882 = vsel %vm426, %v880, %v881
      %v883 = vrot.slane %v809, 1
      %v884 = vrot.slane %v810, 1
      %v885 = vsel %vm426, %v883, %v884
      %v886 = vrot.slane %v811, 1
      %v887 = vrot.slane %v812, 1
      %v888 = vsel %vm426, %v886, %v887
      %v889 = vrot.slane %v813, 1
      %v890 = vrot.slane %v814, 1
      %v891 = vsel %vm426, %v889, %v890
      %v892 = vrot.slane %v815, 1
      %v893 = vrot.slane %v816, 1
      %v894 = vsel %vm426, %v892, %v893
      %v895 = vrot.slane %v817, 1
      %v896 = vrot.slane %v818, 1
      %v897 = vsel %vm426, %v895, %v896
      %v898 = vrot.slane %v819, 1
      %v899 = vrot.slane %v820, 1
      %v900 = vsel %vm426, %v898, %v899
      %v901 = vrot.slane %v821, 1
      %v902 = vrot.slane %v822, 1
      %v903 = vsel %vm426, %v901, %v902
      %v904 = vrot.slane %v823, 1
      %v905 = vrot.slane %v824, 1
      %v906 = vsel %vm426, %v904, %v905
      %907 = vrot.lane.b32.xlu0 %v861, 4
      %v908 = vpop.permute.xlu0 %907
      %909 = vrot.lane.b32.xlu0 %v864, 4
      %v910 = vpop.permute.xlu0 %909
      %911 = vrot.lane.b32.xlu0 %v867, 4
      %v912 = vpop.permute.xlu0 %911
      %913 = vrot.lane.b32.xlu0 %v870, 4
      %v914 = vpop.permute.xlu0 %913
      %915 = vrot.lane.b32.xlu0 %v873, 4
      %v916 = vpop.permute.xlu0 %915
      %917 = vrot.lane.b32.xlu0 %v876, 4
      %v918 = vpop.permute.xlu0 %917
      %919 = vrot.lane.b32.xlu0 %v879, 4
      %v920 = vpop.permute.xlu0 %919
      %921 = vrot.lane.b32.xlu0 %v882, 4
      %v922 = vpop.permute.xlu0 %921
      %923 = vrot.lane.b32.xlu0 %v885, 4
      %v924 = vpop.permute.xlu0 %923
      %925 = vrot.lane.b32.xlu0 %v888, 4
      %v926 = vpop.permute.xlu0 %925
      %927 = vrot.lane.b32.xlu0 %v891, 4
      %v928 = vpop.permute.xlu0 %927
      %929 = vrot.lane.b32.xlu0 %v894, 4
      %v930 = vpop.permute.xlu0 %929
      %931 = vrot.lane.b32.xlu0 %v897, 4
      %v932 = vpop.permute.xlu0 %931
      %933 = vrot.lane.b32.xlu0 %v900, 4
      %v934 = vpop.permute.xlu0 %933
      %935 = vrot.lane.b32.xlu0 %v903, 4
      %v936 = vpop.permute.xlu0 %935
      %937 = vrot.lane.b32.xlu0 %v906, 4
      %v938 = vpop.permute.xlu0 %937
      %957 = vrot.lane.b32.xlu0 %v793, 8
      %v958 = vpop.permute.xlu0 %957
      %959 = vrot.lane.b32.xlu0 %v795, 8
      %v960 = vpop.permute.xlu0 %959
      %961 = vrot.lane.b32.xlu0 %v797, 8
      %v962 = vpop.permute.xlu0 %961
      %963 = vrot.lane.b32.xlu0 %v799, 8
      %v964 = vpop.permute.xlu0 %963
      %965 = vrot.lane.b32.xlu0 %v801, 8
      %v966 = vpop.permute.xlu0 %965
      %967 = vrot.lane.b32.xlu0 %v803, 8
      %v968 = vpop.permute.xlu0 %967
      %969 = vrot.lane.b32.xlu0 %v805, 8
      %v970 = vpop.permute.xlu0 %969
      %971 = vrot.lane.b32.xlu0 %v807, 8
      %v972 = vpop.permute.xlu0 %971
      %973 = vrot.lane.b32.xlu0 %v811, 8
      %v974 = vpop.permute.xlu0 %973
      %975 = vrot.lane.b32.xlu0 %v813, 8
      %v976 = vpop.permute.xlu0 %975
      %977 = vrot.lane.b32.xlu0 %v815, 8
      %v978 = vpop.permute.xlu0 %977
      %979 = vrot.lane.b32.xlu0 %v817, 8
      %v980 = vpop.permute.xlu0 %979
      %981 = vrot.lane.b32.xlu0 %v819, 8
      %v982 = vpop.permute.xlu0 %981
      %983 = vrot.lane.b32.xlu0 %v821, 8
      %v984 = vpop.permute.xlu0 %983
      %985 = vrot.lane.b32.xlu0 %v823, 8
      %v986 = vpop.permute.xlu0 %985
      %987 = vrot.lane.b32.xlu0 %v825, 8
      %v988 = vpop.permute.xlu0 %987
      %v1007 = vrot.slane %v807, 1
      %v1008 = vrot.slane %v808, 1
      %v1009 = vsel %vm426, %v1007, %v1008
      %v1010 = vrot.slane %v825, 1
      %v1011 = vrot.slane %v826, 1
      %v1012 = vsel %vm426, %v1010, %v1011
      %1013 = vrot.lane.b32.xlu0 %v864, 12
      %v1014 = vpop.permute.xlu0 %1013
      %1015 = vrot.lane.b32.xlu0 %v867, 12
      %v1016 = vpop.permute.xlu0 %1015
      %1017 = vrot.lane.b32.xlu0 %v870, 12
      %v1018 = vpop.permute.xlu0 %1017
      %1019 = vrot.lane.b32.xlu0 %v873, 12
      %v1020 = vpop.permute.xlu0 %1019
      %1021 = vrot.lane.b32.xlu0 %v876, 12
      %v1022 = vpop.permute.xlu0 %1021
      %1023 = vrot.lane.b32.xlu0 %v879, 12
      %v1024 = vpop.permute.xlu0 %1023
      %1025 = vrot.lane.b32.xlu0 %v882, 12
      %v1026 = vpop.permute.xlu0 %1025
      %1027 = vrot.lane.b32.xlu0 %v1009, 12
      %v1028 = vpop.permute.xlu0 %1027
      %1029 = vrot.lane.b32.xlu0 %v888, 12
      %v1030 = vpop.permute.xlu0 %1029
      %1031 = vrot.lane.b32.xlu0 %v891, 12
      %v1032 = vpop.permute.xlu0 %1031
      %1033 = vrot.lane.b32.xlu0 %v894, 12
      %v1034 = vpop.permute.xlu0 %1033
      %1035 = vrot.lane.b32.xlu0 %v897, 12
      %v1036 = vpop.permute.xlu0 %1035
      %1037 = vrot.lane.b32.xlu0 %v900, 12
      %v1038 = vpop.permute.xlu0 %1037
      %1039 = vrot.lane.b32.xlu0 %v903, 12
      %v1040 = vpop.permute.xlu0 %1039
      %1041 = vrot.lane.b32.xlu0 %v906, 12
      %v1042 = vpop.permute.xlu0 %1041
      %1043 = vrot.lane.b32.xlu0 %v1012, 12
      %v1044 = vpop.permute.xlu0 %1043
      %v1061 = vsel %vm629, %v791, %v908
      %v1062 = vsel %vm629, %v793, %v910
      %v1063 = vsel %vm629, %v795, %v912
      %v1064 = vsel %vm629, %v797, %v914
      %v1065 = vsel %vm629, %v799, %v916
      %v1066 = vsel %vm629, %v801, %v918
      %v1067 = vsel %vm629, %v803, %v920
      %v1068 = vsel %vm629, %v805, %v922
      %v1069 = vsel %vm629, %v809, %v924
      %v1070 = vsel %vm629, %v811, %v926
      %v1071 = vsel %vm629, %v813, %v928
      %v1072 = vsel %vm629, %v815, %v930
      %v1073 = vsel %vm629, %v817, %v932
      %v1074 = vsel %vm629, %v819, %v934
      %v1075 = vsel %vm629, %v821, %v936
      %v1076 = vsel %vm629, %v823, %v938
      %v1077 = vsel %vm646, %v1061, %v958
      %v1078 = vsel %vm646, %v1062, %v960
      %v1079 = vsel %vm646, %v1063, %v962
      %v1080 = vsel %vm646, %v1064, %v964
      %v1081 = vsel %vm646, %v1065, %v966
      %v1082 = vsel %vm646, %v1066, %v968
      %v1083 = vsel %vm646, %v1067, %v970
      %v1084 = vsel %vm646, %v1068, %v972
      %v1085 = vsel %vm646, %v1069, %v974
      %v1086 = vsel %vm646, %v1070, %v976
      %v1087 = vsel %vm646, %v1071, %v978
      %v1088 = vsel %vm646, %v1072, %v980
      %v1089 = vsel %vm646, %v1073, %v982
      %v1090 = vsel %vm646, %v1074, %v984
      %v1091 = vsel %vm646, %v1075, %v986
      %v1092 = vsel %vm646, %v1076, %v988
      %v1093 = vsel %vm663, %v1077, %v1014
      %v1094 = vsel %vm663, %v1078, %v1016
      %v1095 = vsel %vm663, %v1079, %v1018
      %v1096 = vsel %vm663, %v1080, %v1020
      %v1097 = vsel %vm663, %v1081, %v1022
      %v1098 = vsel %vm663, %v1082, %v1024
      %v1099 = vsel %vm663, %v1083, %v1026
      %v1100 = vsel %vm663, %v1084, %v1028
      %v1101 = vsel %vm663, %v1085, %v1030
      %v1102 = vsel %vm663, %v1086, %v1032
      %v1103 = vsel %vm663, %v1087, %v1034
      %v1104 = vsel %vm663, %v1088, %v1036
      %v1105 = vsel %vm663, %v1089, %v1038
      %v1106 = vsel %vm663, %v1090, %v1040
      %v1107 = vsel %vm663, %v1091, %v1042
      %v1108 = vsel %vm663, %v1092, %v1044
      %s1109 = scalar_lea.vmem %s1, 16
      %v1110 = vld [vmem:[%s1109] sm:$0xff]
      %v1111 = vld [vmem:[%s1109 + $0x8] sm:$0xff]
      %vm1112 = vcmask 130048
      %v1114 = vsel %vm1112, %v1093, 0
      %v1117 = vsel %vm1112, %v1094, 0
      %v1120 = vsel %vm1112, %v1095, 0
      %v1123 = vsel %vm1112, %v1096, 0
      %v1126 = vsel %vm1112, %v1097, 0
      %v1129 = vsel %vm1112, %v1098, 0
      %v1132 = vsel %vm1112, %v1099, 0
      %v1135 = vsel %vm1112, %v1100, 0
      %v1138 = vsel %vm1112, %v1101, 0
      %v1141 = vsel %vm1112, %v1102, 0
      %v1144 = vsel %vm1112, %v1103, 0
      %v1147 = vsel %vm1112, %v1104, 0
      %v1150 = vsel %vm1112, %v1105, 0
      %v1153 = vsel %vm1112, %v1106, 0
      %v1156 = vsel %vm1112, %v1107, 0
      %v1159 = vsel %vm1112, %v1108, 0
      %1161 = vmatpush.msra.mxu0 0.0
      %1162 = vmatpush.msra.mxu0 0.0
      %1163 = vmatpush.msra.mxu0 0.0
      %1164 = vmatpush.msra.mxu0 0.0
      %1165 = vmatpush.msra.mxu0 0.0
      %1166 = vmatpush.msra.mxu0 0.0
      %1167 = vmatpush.msra.mxu0 0.0
      %1168 = vmatpush.msra.mxu0 0.0
      %1169 = vmatpush.msra.mxu0 0.0
      %1170 = vmatpush.msra.mxu0 0.0
      %1171 = vmatpush.msra.mxu0 0.0
      %1172 = vmatpush.msra.mxu0 0.0
      %1173 = vmatpush.msra.mxu0 0.0
      %1174 = vmatpush.msra.mxu0 0.0
      %1175 = vmatpush.msra.mxu0 %v1111
      %1176 = vmatpush.msra.mxu0 %v1110
      %1177 = vmatmul.f32.gmra.mxu0 %v1114
      %v1178 = vpop.f32.mrf.mxu0
      %v1179 = vadd.f32 0.0, %v1178
      %1180 = vmatmul.f32.gmra.mxu0 %v1117
      %v1181 = vpop.f32.mrf.mxu0
      %v1182 = vadd.f32 0.0, %v1181
      %1183 = vmatmul.f32.gmra.mxu0 %v1120
      %v1184 = vpop.f32.mrf.mxu0
      %v1185 = vadd.f32 0.0, %v1184
      %1186 = vmatmul.f32.gmra.mxu0 %v1123
      %v1187 = vpop.f32.mrf.mxu0
      %v1188 = vadd.f32 0.0, %v1187
      %1189 = vmatmul.f32.gmra.mxu0 %v1126
      %v1190 = vpop.f32.mrf.mxu0
      %v1191 = vadd.f32 0.0, %v1190
      %1192 = vmatmul.f32.gmra.mxu0 %v1129
      %v1193 = vpop.f32.mrf.mxu0
      %v1194 = vadd.f32 0.0, %v1193
      %1195 = vmatmul.f32.gmra.mxu0 %v1132
      %v1196 = vpop.f32.mrf.mxu0
      %v1197 = vadd.f32 0.0, %v1196
      %1198 = vmatmul.f32.gmra.mxu0 %v1135
      %v1199 = vpop.f32.mrf.mxu0
      %v1200 = vadd.f32 0.0, %v1199
      %1201 = vmatmul.f32.gmra.mxu0 %v1138
      %v1202 = vpop.f32.mrf.mxu0
      %v1203 = vadd.f32 0.0, %v1202
      %1204 = vmatmul.f32.gmra.mxu0 %v1141
      %v1205 = vpop.f32.mrf.mxu0
      %v1206 = vadd.f32 0.0, %v1205
      %1207 = vmatmul.f32.gmra.mxu0 %v1144
      %v1208 = vpop.f32.mrf.mxu0
      %v1209 = vadd.f32 0.0, %v1208
      %1210 = vmatmul.f32.gmra.mxu0 %v1147
      %v1211 = vpop.f32.mrf.mxu0
      %v1212 = vadd.f32 0.0, %v1211
      %1213 = vmatmul.f32.gmra.mxu0 %v1150
      %v1214 = vpop.f32.mrf.mxu0
      %v1215 = vadd.f32 0.0, %v1214
      %1216 = vmatmul.f32.gmra.mxu0 %v1153
      %v1217 = vpop.f32.mrf.mxu0
      %v1218 = vadd.f32 0.0, %v1217
      %1219 = vmatmul.f32.gmra.mxu0 %v1156
      %v1220 = vpop.f32.mrf.mxu0
      %v1221 = vadd.f32 0.0, %v1220
      %1222 = vmatmul.f32.gmra.mxu0 %v1159
      %v1223 = vpop.f32.mrf.mxu0
      %v1224 = vadd.f32 0.0, %v1223
      %1225 = vdwg.mxu0
      %v1227 = vsel %vm1112, %v664, 0
      %v1230 = vsel %vm1112, %v665, 0
      %v1233 = vsel %vm1112, %v666, 0
      %v1236 = vsel %vm1112, %v667, 0
      %v1239 = vsel %vm1112, %v668, 0
      %v1242 = vsel %vm1112, %v669, 0
      %v1245 = vsel %vm1112, %v670, 0
      %v1248 = vsel %vm1112, %v671, 0
      %v1251 = vsel %vm1112, %v672, 0
      %v1254 = vsel %vm1112, %v673, 0
      %v1257 = vsel %vm1112, %v674, 0
      %v1260 = vsel %vm1112, %v675, 0
      %v1263 = vsel %vm1112, %v676, 0
      %v1266 = vsel %vm1112, %v677, 0
      %v1269 = vsel %vm1112, %v678, 0
      %v1272 = vsel %vm1112, %v679, 0
      %1274 = vmatpush.msra.mxu0 0.0
      %1275 = vmatpush.msra.mxu0 0.0
      %1276 = vmatpush.msra.mxu0 0.0
      %1277 = vmatpush.msra.mxu0 0.0
      %1278 = vmatpush.msra.mxu0 0.0
      %1279 = vmatpush.msra.mxu0 0.0
      %1280 = vmatpush.msra.mxu0 0.0
      %1281 = vmatpush.msra.mxu0 0.0
      %1282 = vmatpush.msra.mxu0 0.0
      %1283 = vmatpush.msra.mxu0 0.0
      %1284 = vmatpush.msra.mxu0 0.0
      %1285 = vmatpush.msra.mxu0 0.0
      %1286 = vmatpush.msra.mxu0 0.0
      %1287 = vmatpush.msra.mxu0 0.0
      %1288 = vmatpush.msra.mxu0 %v681
      %1289 = vmatpush.msra.mxu0 %v680
      %1290 = vmatmul.f32.gmra.mxu0 %v1227
      %v1291 = vpop.f32.mrf.mxu0
      %v1292 = vadd.f32 %v1179, %v1291
      %1293 = vmatmul.f32.gmra.mxu0 %v1230
      %v1294 = vpop.f32.mrf.mxu0
      %v1295 = vadd.f32 %v1182, %v1294
      %1296 = vmatmul.f32.gmra.mxu0 %v1233
      %v1297 = vpop.f32.mrf.mxu0
      %v1298 = vadd.f32 %v1185, %v1297
      %1299 = vmatmul.f32.gmra.mxu0 %v1236
      %v1300 = vpop.f32.mrf.mxu0
      %v1301 = vadd.f32 %v1188, %v1300
      %1302 = vmatmul.f32.gmra.mxu0 %v1239
      %v1303 = vpop.f32.mrf.mxu0
      %v1304 = vadd.f32 %v1191, %v1303
      %1305 = vmatmul.f32.gmra.mxu0 %v1242
      %v1306 = vpop.f32.mrf.mxu0
      %v1307 = vadd.f32 %v1194, %v1306
      %1308 = vmatmul.f32.gmra.mxu0 %v1245
      %v1309 = vpop.f32.mrf.mxu0
      %v1310 = vadd.f32 %v1197, %v1309
      %1311 = vmatmul.f32.gmra.mxu0 %v1248
      %v1312 = vpop.f32.mrf.mxu0
      %v1313 = vadd.f32 %v1200, %v1312
      %1314 = vmatmul.f32.gmra.mxu0 %v1251
      %v1315 = vpop.f32.mrf.mxu0
      %v1316 = vadd.f32 %v1203, %v1315
      %1317 = vmatmul.f32.gmra.mxu0 %v1254
      %v1318 = vpop.f32.mrf.mxu0
      %v1319 = vadd.f32 %v1206, %v1318
      %1320 = vmatmul.f32.gmra.mxu0 %v1257
      %v1321 = vpop.f32.mrf.mxu0
      %v1322 = vadd.f32 %v1209, %v1321
      %1323 = vmatmul.f32.gmra.mxu0 %v1260
      %v1324 = vpop.f32.mrf.mxu0
      %v1325 = vadd.f32 %v1212, %v1324
      %1326 = vmatmul.f32.gmra.mxu0 %v1263
      %v1327 = vpop.f32.mrf.mxu0
      %v1328 = vadd.f32 %v1215, %v1327
      %1329 = vmatmul.f32.gmra.mxu0 %v1266
      %v1330 = vpop.f32.mrf.mxu0
      %v1331 = vadd.f32 %v1218, %v1330
      %1332 = vmatmul.f32.gmra.mxu0 %v1269
      %v1333 = vpop.f32.mrf.mxu0
      %v1334 = vadd.f32 %v1221, %v1333
      %1335 = vmatmul.f32.gmra.mxu0 %v1272
      %v1336 = vpop.f32.mrf.mxu0
      %v1337 = vadd.f32 %v1224, %v1336
      %1338 = vdwg.mxu0
      %s1339 = scalar_lea.vmem %s235, 288
      %v1340 = vld [vmem:[%s1339] sm:$0xff]
      %v1341 = vld [vmem:[%s1339 + $0x8] sm:$0x1]
      %v1342 = vld [vmem:[%s1339 + $0x10] sm:$0xff]
      %v1343 = vld [vmem:[%s1339 + $0x18] sm:$0x1]
      %v1344 = vld [vmem:[%s1339 + $0x20] sm:$0xff]
      %v1345 = vld [vmem:[%s1339 + $0x28] sm:$0x1]
      %v1346 = vld [vmem:[%s1339 + $0x30] sm:$0xff]
      %v1347 = vld [vmem:[%s1339 + $0x38] sm:$0x1]
      %v1348 = vld [vmem:[%s1339 + $0x40] sm:$0xff]
      %v1349 = vld [vmem:[%s1339 + $0x48] sm:$0x1]
      %v1350 = vld [vmem:[%s1339 + $0x50] sm:$0xff]
      %v1351 = vld [vmem:[%s1339 + $0x58] sm:$0x1]
      %v1352 = vld [vmem:[%s1339 + $0x60] sm:$0xff]
      %v1353 = vld [vmem:[%s1339 + $0x68] sm:$0x1]
      %v1354 = vld [vmem:[%s1339 + $0x70] sm:$0xff]
      %v1355 = vld [vmem:[%s1339 + $0x78] sm:$0x1]
      %v1356 = vld [vmem:[%s1339 + $0x80] sm:$0xff]
      %v1357 = vld [vmem:[%s1339 + $0x88] sm:$0x1]
      %v1358 = vld [vmem:[%s1339 + $0x240] sm:$0xff]
      %v1359 = vld [vmem:[%s1339 + $0x248] sm:$0x1]
      %v1360 = vld [vmem:[%s1339 + $0x250] sm:$0xff]
      %v1361 = vld [vmem:[%s1339 + $0x258] sm:$0x1]
      %v1362 = vld [vmem:[%s1339 + $0x260] sm:$0xff]
      %v1363 = vld [vmem:[%s1339 + $0x268] sm:$0x1]
      %v1364 = vld [vmem:[%s1339 + $0x270] sm:$0xff]
      %v1365 = vld [vmem:[%s1339 + $0x278] sm:$0x1]
      %v1366 = vld [vmem:[%s1339 + $0x280] sm:$0xff]
      %v1367 = vld [vmem:[%s1339 + $0x288] sm:$0x1]
      %v1368 = vld [vmem:[%s1339 + $0x290] sm:$0xff]
      %v1369 = vld [vmem:[%s1339 + $0x298] sm:$0x1]
      %v1370 = vld [vmem:[%s1339 + $0x2a0] sm:$0xff]
      %v1371 = vld [vmem:[%s1339 + $0x2a8] sm:$0x1]
      %v1372 = vld [vmem:[%s1339 + $0x2b0] sm:$0xff]
      %v1373 = vld [vmem:[%s1339 + $0x2b8] sm:$0x1]
      %v1374 = vld [vmem:[%s1339 + $0x2c0] sm:$0xff]
      %v1375 = vld [vmem:[%s1339 + $0x2c8] sm:$0x1]
      %vm1376 = vcmp.ge.f32.partialorder %v1340, 0.0
      %vm1377 = vcmp.ge.f32.partialorder %v1341, 0.0
      %vm1378 = vcmp.ge.f32.partialorder %v1342, 0.0
      %vm1379 = vcmp.ge.f32.partialorder %v1343, 0.0
      %vm1380 = vcmp.ge.f32.partialorder %v1344, 0.0
      %vm1381 = vcmp.ge.f32.partialorder %v1345, 0.0
      %vm1382 = vcmp.ge.f32.partialorder %v1346, 0.0
      %vm1383 = vcmp.ge.f32.partialorder %v1347, 0.0
      %vm1384 = vcmp.ge.f32.partialorder %v1348, 0.0
      %vm1385 = vcmp.ge.f32.partialorder %v1349, 0.0
      %vm1386 = vcmp.ge.f32.partialorder %v1350, 0.0
      %vm1387 = vcmp.ge.f32.partialorder %v1351, 0.0
      %vm1388 = vcmp.ge.f32.partialorder %v1352, 0.0
      %vm1389 = vcmp.ge.f32.partialorder %v1353, 0.0
      %vm1390 = vcmp.ge.f32.partialorder %v1354, 0.0
      %vm1391 = vcmp.ge.f32.partialorder %v1355, 0.0
      %vm1392 = vcmp.ge.f32.partialorder %v1356, 0.0
      %vm1393 = vcmp.ge.f32.partialorder %v1357, 0.0
      %vm1394 = vcmp.ge.f32.partialorder %v1358, 0.0
      %vm1395 = vcmp.ge.f32.partialorder %v1359, 0.0
      %vm1396 = vcmp.ge.f32.partialorder %v1360, 0.0
      %vm1397 = vcmp.ge.f32.partialorder %v1361, 0.0
      %vm1398 = vcmp.ge.f32.partialorder %v1362, 0.0
      %vm1399 = vcmp.ge.f32.partialorder %v1363, 0.0
      %vm1400 = vcmp.ge.f32.partialorder %v1364, 0.0
      %vm1401 = vcmp.ge.f32.partialorder %v1365, 0.0
      %vm1402 = vcmp.ge.f32.partialorder %v1366, 0.0
      %vm1403 = vcmp.ge.f32.partialorder %v1367, 0.0
      %vm1404 = vcmp.ge.f32.partialorder %v1368, 0.0
      %vm1405 = vcmp.ge.f32.partialorder %v1369, 0.0
      %vm1406 = vcmp.ge.f32.partialorder %v1370, 0.0
      %vm1407 = vcmp.ge.f32.partialorder %v1371, 0.0
      %vm1408 = vcmp.ge.f32.partialorder %v1372, 0.0
      %vm1409 = vcmp.ge.f32.partialorder %v1373, 0.0
      %vm1410 = vcmp.ge.f32.partialorder %v1374, 0.0
      %vm1411 = vcmp.ge.f32.partialorder %v1375, 0.0
      %v1412 = vmul.f32 %v1340, 0.2
      %v1413 = vmul.f32 %v1341, 0.2
      %v1414 = vmul.f32 %v1342, 0.2
      %v1415 = vmul.f32 %v1343, 0.2
      %v1416 = vmul.f32 %v1344, 0.2
      %v1417 = vmul.f32 %v1345, 0.2
      %v1418 = vmul.f32 %v1346, 0.2
      %v1419 = vmul.f32 %v1347, 0.2
      %v1420 = vmul.f32 %v1348, 0.2
      %v1421 = vmul.f32 %v1349, 0.2
      %v1422 = vmul.f32 %v1350, 0.2
      %v1423 = vmul.f32 %v1351, 0.2
      %v1424 = vmul.f32 %v1352, 0.2
      %v1425 = vmul.f32 %v1353, 0.2
      %v1426 = vmul.f32 %v1354, 0.2
      %v1427 = vmul.f32 %v1355, 0.2
      %v1428 = vmul.f32 %v1356, 0.2
      %v1429 = vmul.f32 %v1357, 0.2
      %v1430 = vmul.f32 %v1358, 0.2
      %v1431 = vmul.f32 %v1359, 0.2
      %v1432 = vmul.f32 %v1360, 0.2
      %v1433 = vmul.f32 %v1361, 0.2
      %v1434 = vmul.f32 %v1362, 0.2
      %v1435 = vmul.f32 %v1363, 0.2
      %v1436 = vmul.f32 %v1364, 0.2
      %v1437 = vmul.f32 %v1365, 0.2
      %v1438 = vmul.f32 %v1366, 0.2
      %v1439 = vmul.f32 %v1367, 0.2
      %v1440 = vmul.f32 %v1368, 0.2
      %v1441 = vmul.f32 %v1369, 0.2
      %v1442 = vmul.f32 %v1370, 0.2
      %v1443 = vmul.f32 %v1371, 0.2
      %v1444 = vmul.f32 %v1372, 0.2
      %v1445 = vmul.f32 %v1373, 0.2
      %v1446 = vmul.f32 %v1374, 0.2
      %v1447 = vmul.f32 %v1375, 0.2
      %v1448 = vsel %vm1376, %v1340, %v1412
      %v1449 = vsel %vm1377, %v1341, %v1413
      %v1450 = vsel %vm1378, %v1342, %v1414
      %v1451 = vsel %vm1379, %v1343, %v1415
      %v1452 = vsel %vm1380, %v1344, %v1416
      %v1453 = vsel %vm1381, %v1345, %v1417
      %v1454 = vsel %vm1382, %v1346, %v1418
      %v1455 = vsel %vm1383, %v1347, %v1419
      %v1456 = vsel %vm1384, %v1348, %v1420
      %v1457 = vsel %vm1385, %v1349, %v1421
      %v1458 = vsel %vm1386, %v1350, %v1422
      %v1459 = vsel %vm1387, %v1351, %v1423
      %v1460 = vsel %vm1388, %v1352, %v1424
      %v1461 = vsel %vm1389, %v1353, %v1425
      %v1462 = vsel %vm1390, %v1354, %v1426
      %v1463 = vsel %vm1391, %v1355, %v1427
      %v1464 = vsel %vm1392, %v1356, %v1428
      %v1465 = vsel %vm1393, %v1357, %v1429
      %v1466 = vsel %vm1394, %v1358, %v1430
      %v1467 = vsel %vm1395, %v1359, %v1431
      %v1468 = vsel %vm1396, %v1360, %v1432
      %v1469 = vsel %vm1397, %v1361, %v1433
      %v1470 = vsel %vm1398, %v1362, %v1434
      %v1471 = vsel %vm1399, %v1363, %v1435
      %v1472 = vsel %vm1400, %v1364, %v1436
      %v1473 = vsel %vm1401, %v1365, %v1437
      %v1474 = vsel %vm1402, %v1366, %v1438
      %v1475 = vsel %vm1403, %v1367, %v1439
      %v1476 = vsel %vm1404, %v1368, %v1440
      %v1477 = vsel %vm1405, %v1369, %v1441
      %v1478 = vsel %vm1406, %v1370, %v1442
      %v1479 = vsel %vm1407, %v1371, %v1443
      %v1480 = vsel %vm1408, %v1372, %v1444
      %v1481 = vsel %vm1409, %v1373, %v1445
      %v1482 = vsel %vm1410, %v1374, %v1446
      %v1483 = vsel %vm1411, %v1375, %v1447
      %v1516 = vrot.slane %v1448, 1
      %v1517 = vrot.slane %v1449, 1
      %v1518 = vsel %vm426, %v1516, %v1517
      %v1519 = vrot.slane %v1450, 1
      %v1520 = vrot.slane %v1451, 1
      %v1521 = vsel %vm426, %v1519, %v1520
      %v1522 = vrot.slane %v1452, 1
      %v1523 = vrot.slane %v1453, 1
      %v1524 = vsel %vm426, %v1522, %v1523
      %v1525 = vrot.slane %v1454, 1
      %v1526 = vrot.slane %v1455, 1
      %v1527 = vsel %vm426, %v1525, %v1526
      %v1528 = vrot.slane %v1456, 1
      %v1529 = vrot.slane %v1457, 1
      %v1530 = vsel %vm426, %v1528, %v1529
      %v1531 = vrot.slane %v1458, 1
      %v1532 = vrot.slane %v1459, 1
      %v1533 = vsel %vm426, %v1531, %v1532
      %v1534 = vrot.slane %v1460, 1
      %v1535 = vrot.slane %v1461, 1
      %v1536 = vsel %vm426, %v1534, %v1535
      %v1537 = vrot.slane %v1462, 1
      %v1538 = vrot.slane %v1463, 1
      %v1539 = vsel %vm426, %v1537, %v1538
      %v1540 = vrot.slane %v1466, 1
      %v1541 = vrot.slane %v1467, 1
      %v1542 = vsel %vm426, %v1540, %v1541
      %v1543 = vrot.slane %v1468, 1
      %v1544 = vrot.slane %v1469, 1
      %v1545 = vsel %vm426, %v1543, %v1544
      %v1546 = vrot.slane %v1470, 1
      %v1547 = vrot.slane %v1471, 1
      %v1548 = vsel %vm426, %v1546, %v1547
      %v1549 = vrot.slane %v1472, 1
      %v1550 = vrot.slane %v1473, 1
      %v1551 = vsel %vm426, %v1549, %v1550
      %v1552 = vrot.slane %v1474, 1
      %v1553 = vrot.slane %v1475, 1
      %v1554 = vsel %vm426, %v1552, %v1553
      %v1555 = vrot.slane %v1476, 1
      %v1556 = vrot.slane %v1477, 1
      %v1557 = vsel %vm426, %v1555, %v1556
      %v1558 = vrot.slane %v1478, 1
      %v1559 = vrot.slane %v1479, 1
      %v1560 = vsel %vm426, %v1558, %v1559
      %v1561 = vrot.slane %v1480, 1
      %v1562 = vrot.slane %v1481, 1
      %v1563 = vsel %vm426, %v1561, %v1562
      %1564 = vrot.lane.b32.xlu0 %v1518, 4
      %v1565 = vpop.permute.xlu0 %1564
      %1566 = vrot.lane.b32.xlu0 %v1521, 4
      %v1567 = vpop.permute.xlu0 %1566
      %1568 = vrot.lane.b32.xlu0 %v1524, 4
      %v1569 = vpop.permute.xlu0 %1568
      %1570 = vrot.lane.b32.xlu0 %v1527, 4
      %v1571 = vpop.permute.xlu0 %1570
      %1572 = vrot.lane.b32.xlu0 %v1530, 4
      %v1573 = vpop.permute.xlu0 %1572
      %1574 = vrot.lane.b32.xlu0 %v1533, 4
      %v1575 = vpop.permute.xlu0 %1574
      %1576 = vrot.lane.b32.xlu0 %v1536, 4
      %v1577 = vpop.permute.xlu0 %1576
      %1578 = vrot.lane.b32.xlu0 %v1539, 4
      %v1579 = vpop.permute.xlu0 %1578
      %1580 = vrot.lane.b32.xlu0 %v1542, 4
      %v1581 = vpop.permute.xlu0 %1580
      %1582 = vrot.lane.b32.xlu0 %v1545, 4
      %v1583 = vpop.permute.xlu0 %1582
      %1584 = vrot.lane.b32.xlu0 %v1548, 4
      %v1585 = vpop.permute.xlu0 %1584
      %1586 = vrot.lane.b32.xlu0 %v1551, 4
      %v1587 = vpop.permute.xlu0 %1586
      %1588 = vrot.lane.b32.xlu0 %v1554, 4
      %v1589 = vpop.permute.xlu0 %1588
      %1590 = vrot.lane.b32.xlu0 %v1557, 4
      %v1591 = vpop.permute.xlu0 %1590
      %1592 = vrot.lane.b32.xlu0 %v1560, 4
      %v1593 = vpop.permute.xlu0 %1592
      %1594 = vrot.lane.b32.xlu0 %v1563, 4
      %v1595 = vpop.permute.xlu0 %1594
      %1614 = vrot.lane.b32.xlu0 %v1450, 8
      %v1615 = vpop.permute.xlu0 %1614
      %1616 = vrot.lane.b32.xlu0 %v1452, 8
      %v1617 = vpop.permute.xlu0 %1616
      %1618 = vrot.lane.b32.xlu0 %v1454, 8
      %v1619 = vpop.permute.xlu0 %1618
      %1620 = vrot.lane.b32.xlu0 %v1456, 8
      %v1621 = vpop.permute.xlu0 %1620
      %1622 = vrot.lane.b32.xlu0 %v1458, 8
      %v1623 = vpop.permute.xlu0 %1622
      %1624 = vrot.lane.b32.xlu0 %v1460, 8
      %v1625 = vpop.permute.xlu0 %1624
      %1626 = vrot.lane.b32.xlu0 %v1462, 8
      %v1627 = vpop.permute.xlu0 %1626
      %1628 = vrot.lane.b32.xlu0 %v1464, 8
      %v1629 = vpop.permute.xlu0 %1628
      %1630 = vrot.lane.b32.xlu0 %v1468, 8
      %v1631 = vpop.permute.xlu0 %1630
      %1632 = vrot.lane.b32.xlu0 %v1470, 8
      %v1633 = vpop.permute.xlu0 %1632
      %1634 = vrot.lane.b32.xlu0 %v1472, 8
      %v1635 = vpop.permute.xlu0 %1634
      %1636 = vrot.lane.b32.xlu0 %v1474, 8
      %v1637 = vpop.permute.xlu0 %1636
      %1638 = vrot.lane.b32.xlu0 %v1476, 8
      %v1639 = vpop.permute.xlu0 %1638
      %1640 = vrot.lane.b32.xlu0 %v1478, 8
      %v1641 = vpop.permute.xlu0 %1640
      %1642 = vrot.lane.b32.xlu0 %v1480, 8
      %v1643 = vpop.permute.xlu0 %1642
      %1644 = vrot.lane.b32.xlu0 %v1482, 8
      %v1645 = vpop.permute.xlu0 %1644
      %v1664 = vrot.slane %v1464, 1
      %v1665 = vrot.slane %v1465, 1
      %v1666 = vsel %vm426, %v1664, %v1665
      %v1667 = vrot.slane %v1482, 1
      %v1668 = vrot.slane %v1483, 1
      %v1669 = vsel %vm426, %v1667, %v1668
      %1670 = vrot.lane.b32.xlu0 %v1521, 12
      %v1671 = vpop.permute.xlu0 %1670
      %1672 = vrot.lane.b32.xlu0 %v1524, 12
      %v1673 = vpop.permute.xlu0 %1672
      %1674 = vrot.lane.b32.xlu0 %v1527, 12
      %v1675 = vpop.permute.xlu0 %1674
      %1676 = vrot.lane.b32.xlu0 %v1530, 12
      %v1677 = vpop.permute.xlu0 %1676
      %1678 = vrot.lane.b32.xlu0 %v1533, 12
      %v1679 = vpop.permute.xlu0 %1678
      %1680 = vrot.lane.b32.xlu0 %v1536, 12
      %v1681 = vpop.permute.xlu0 %1680
      %1682 = vrot.lane.b32.xlu0 %v1539, 12
      %v1683 = vpop.permute.xlu0 %1682
      %1684 = vrot.lane.b32.xlu0 %v1666, 12
      %v1685 = vpop.permute.xlu0 %1684
      %1686 = vrot.lane.b32.xlu0 %v1545, 12
      %v1687 = vpop.permute.xlu0 %1686
      %1688 = vrot.lane.b32.xlu0 %v1548, 12
      %v1689 = vpop.permute.xlu0 %1688
      %1690 = vrot.lane.b32.xlu0 %v1551, 12
      %v1691 = vpop.permute.xlu0 %1690
      %1692 = vrot.lane.b32.xlu0 %v1554, 12
      %v1693 = vpop.permute.xlu0 %1692
      %1694 = vrot.lane.b32.xlu0 %v1557, 12
      %v1695 = vpop.permute.xlu0 %1694
      %1696 = vrot.lane.b32.xlu0 %v1560, 12
      %v1697 = vpop.permute.xlu0 %1696
      %1698 = vrot.lane.b32.xlu0 %v1563, 12
      %v1699 = vpop.permute.xlu0 %1698
      %1700 = vrot.lane.b32.xlu0 %v1669, 12
      %v1701 = vpop.permute.xlu0 %1700
      %v1718 = vsel %vm629, %v1448, %v1565
      %v1719 = vsel %vm629, %v1450, %v1567
      %v1720 = vsel %vm629, %v1452, %v1569
      %v1721 = vsel %vm629, %v1454, %v1571
      %v1722 = vsel %vm629, %v1456, %v1573
      %v1723 = vsel %vm629, %v1458, %v1575
      %v1724 = vsel %vm629, %v1460, %v1577
      %v1725 = vsel %vm629, %v1462, %v1579
      %v1726 = vsel %vm629, %v1466, %v1581
      %v1727 = vsel %vm629, %v1468, %v1583
      %v1728 = vsel %vm629, %v1470, %v1585
      %v1729 = vsel %vm629, %v1472, %v1587
      %v1730 = vsel %vm629, %v1474, %v1589
      %v1731 = vsel %vm629, %v1476, %v1591
      %v1732 = vsel %vm629, %v1478, %v1593
      %v1733 = vsel %vm629, %v1480, %v1595
      %v1734 = vsel %vm646, %v1718, %v1615
      %v1735 = vsel %vm646, %v1719, %v1617
      %v1736 = vsel %vm646, %v1720, %v1619
      %v1737 = vsel %vm646, %v1721, %v1621
      %v1738 = vsel %vm646, %v1722, %v1623
      %v1739 = vsel %vm646, %v1723, %v1625
      %v1740 = vsel %vm646, %v1724, %v1627
      %v1741 = vsel %vm646, %v1725, %v1629
      %v1742 = vsel %vm646, %v1726, %v1631
      %v1743 = vsel %vm646, %v1727, %v1633
      %v1744 = vsel %vm646, %v1728, %v1635
      %v1745 = vsel %vm646, %v1729, %v1637
      %v1746 = vsel %vm646, %v1730, %v1639
      %v1747 = vsel %vm646, %v1731, %v1641
      %v1748 = vsel %vm646, %v1732, %v1643
      %v1749 = vsel %vm646, %v1733, %v1645
      %v1750 = vsel %vm663, %v1734, %v1671
      %v1751 = vsel %vm663, %v1735, %v1673
      %v1752 = vsel %vm663, %v1736, %v1675
      %v1753 = vsel %vm663, %v1737, %v1677
      %v1754 = vsel %vm663, %v1738, %v1679
      %v1755 = vsel %vm663, %v1739, %v1681
      %v1756 = vsel %vm663, %v1740, %v1683
      %v1757 = vsel %vm663, %v1741, %v1685
      %v1758 = vsel %vm663, %v1742, %v1687
      %v1759 = vsel %vm663, %v1743, %v1689
      %v1760 = vsel %vm663, %v1744, %v1691
      %v1761 = vsel %vm663, %v1745, %v1693
      %v1762 = vsel %vm663, %v1746, %v1695
      %v1763 = vsel %vm663, %v1747, %v1697
      %v1764 = vsel %vm663, %v1748, %v1699
      %v1765 = vsel %vm663, %v1749, %v1701
      %s1766 = scalar_lea.vmem %s1, 32
      %v1767 = vld [vmem:[%s1766] sm:$0xff]
      %v1768 = vld [vmem:[%s1766 + $0x8] sm:$0xff]
      %v1770 = vsel %vm1112, %v1750, 0
      %v1773 = vsel %vm1112, %v1751, 0
      %v1776 = vsel %vm1112, %v1752, 0
      %v1779 = vsel %vm1112, %v1753, 0
      %v1782 = vsel %vm1112, %v1754, 0
      %v1785 = vsel %vm1112, %v1755, 0
      %v1788 = vsel %vm1112, %v1756, 0
      %v1791 = vsel %vm1112, %v1757, 0
      %v1794 = vsel %vm1112, %v1758, 0
      %v1797 = vsel %vm1112, %v1759, 0
      %v1800 = vsel %vm1112, %v1760, 0
      %v1803 = vsel %vm1112, %v1761, 0
      %v1806 = vsel %vm1112, %v1762, 0
      %v1809 = vsel %vm1112, %v1763, 0
      %v1812 = vsel %vm1112, %v1764, 0
      %v1815 = vsel %vm1112, %v1765, 0
      %1817 = vmatpush.msra.mxu0 0.0
      %1818 = vmatpush.msra.mxu0 0.0
      %1819 = vmatpush.msra.mxu0 0.0
      %1820 = vmatpush.msra.mxu0 0.0
      %1821 = vmatpush.msra.mxu0 0.0
      %1822 = vmatpush.msra.mxu0 0.0
      %1823 = vmatpush.msra.mxu0 0.0
      %1824 = vmatpush.msra.mxu0 0.0
      %1825 = vmatpush.msra.mxu0 0.0
      %1826 = vmatpush.msra.mxu0 0.0
      %1827 = vmatpush.msra.mxu0 0.0
      %1828 = vmatpush.msra.mxu0 0.0
      %1829 = vmatpush.msra.mxu0 0.0
      %1830 = vmatpush.msra.mxu0 0.0
      %1831 = vmatpush.msra.mxu0 %v1768
      %1832 = vmatpush.msra.mxu0 %v1767
      %1833 = vmatmul.f32.gmra.mxu0 %v1770
      %v1834 = vpop.f32.mrf.mxu0
      %v1835 = vadd.f32 0.0, %v1834
      %1836 = vmatmul.f32.gmra.mxu0 %v1773
      %v1837 = vpop.f32.mrf.mxu0
      %v1838 = vadd.f32 0.0, %v1837
      %1839 = vmatmul.f32.gmra.mxu0 %v1776
      %v1840 = vpop.f32.mrf.mxu0
      %v1841 = vadd.f32 0.0, %v1840
      %1842 = vmatmul.f32.gmra.mxu0 %v1779
      %v1843 = vpop.f32.mrf.mxu0
      %v1844 = vadd.f32 0.0, %v1843
      %1845 = vmatmul.f32.gmra.mxu0 %v1782
      %v1846 = vpop.f32.mrf.mxu0
      %v1847 = vadd.f32 0.0, %v1846
      %1848 = vmatmul.f32.gmra.mxu0 %v1785
      %v1849 = vpop.f32.mrf.mxu0
      %v1850 = vadd.f32 0.0, %v1849
      %1851 = vmatmul.f32.gmra.mxu0 %v1788
      %v1852 = vpop.f32.mrf.mxu0
      %v1853 = vadd.f32 0.0, %v1852
      %1854 = vmatmul.f32.gmra.mxu0 %v1791
      %v1855 = vpop.f32.mrf.mxu0
      %v1856 = vadd.f32 0.0, %v1855
      %1857 = vmatmul.f32.gmra.mxu0 %v1794
      %v1858 = vpop.f32.mrf.mxu0
      %v1859 = vadd.f32 0.0, %v1858
      %1860 = vmatmul.f32.gmra.mxu0 %v1797
      %v1861 = vpop.f32.mrf.mxu0
      %v1862 = vadd.f32 0.0, %v1861
      %1863 = vmatmul.f32.gmra.mxu0 %v1800
      %v1864 = vpop.f32.mrf.mxu0
      %v1865 = vadd.f32 0.0, %v1864
      %1866 = vmatmul.f32.gmra.mxu0 %v1803
      %v1867 = vpop.f32.mrf.mxu0
      %v1868 = vadd.f32 0.0, %v1867
      %1869 = vmatmul.f32.gmra.mxu0 %v1806
      %v1870 = vpop.f32.mrf.mxu0
      %v1871 = vadd.f32 0.0, %v1870
      %1872 = vmatmul.f32.gmra.mxu0 %v1809
      %v1873 = vpop.f32.mrf.mxu0
      %v1874 = vadd.f32 0.0, %v1873
      %1875 = vmatmul.f32.gmra.mxu0 %v1812
      %v1876 = vpop.f32.mrf.mxu0
      %v1877 = vadd.f32 0.0, %v1876
      %1878 = vmatmul.f32.gmra.mxu0 %v1815
      %v1879 = vpop.f32.mrf.mxu0
      %v1880 = vadd.f32 0.0, %v1879
      %1881 = vdwg.mxu0
      %v1882 = vadd.f32 %v1292, %v1835
      %v1883 = vadd.f32 %v1295, %v1838
      %v1884 = vadd.f32 %v1298, %v1841
      %v1885 = vadd.f32 %v1301, %v1844
      %v1886 = vadd.f32 %v1304, %v1847
      %v1887 = vadd.f32 %v1307, %v1850
      %v1888 = vadd.f32 %v1310, %v1853
      %v1889 = vadd.f32 %v1313, %v1856
      %v1890 = vadd.f32 %v1316, %v1859
      %v1891 = vadd.f32 %v1319, %v1862
      %v1892 = vadd.f32 %v1322, %v1865
      %v1893 = vadd.f32 %v1325, %v1868
      %v1894 = vadd.f32 %v1328, %v1871
      %v1895 = vadd.f32 %v1331, %v1874
      %v1896 = vadd.f32 %v1334, %v1877
      %v1897 = vadd.f32 %v1337, %v1880
      %s1898 = scalar_lea.vmem %s235, 432
      %v1899 = vld [vmem:[%s1898] sm:$0xff]
      %v1900 = vld [vmem:[%s1898 + $0x8] sm:$0x1]
      %v1901 = vld [vmem:[%s1898 + $0x10] sm:$0xff]
      %v1902 = vld [vmem:[%s1898 + $0x18] sm:$0x1]
      %v1903 = vld [vmem:[%s1898 + $0x20] sm:$0xff]
      %v1904 = vld [vmem:[%s1898 + $0x28] sm:$0x1]
      %v1905 = vld [vmem:[%s1898 + $0x30] sm:$0xff]
      %v1906 = vld [vmem:[%s1898 + $0x38] sm:$0x1]
      %v1907 = vld [vmem:[%s1898 + $0x40] sm:$0xff]
      %v1908 = vld [vmem:[%s1898 + $0x48] sm:$0x1]
      %v1909 = vld [vmem:[%s1898 + $0x50] sm:$0xff]
      %v1910 = vld [vmem:[%s1898 + $0x58] sm:$0x1]
      %v1911 = vld [vmem:[%s1898 + $0x60] sm:$0xff]
      %v1912 = vld [vmem:[%s1898 + $0x68] sm:$0x1]
      %v1913 = vld [vmem:[%s1898 + $0x70] sm:$0xff]
      %v1914 = vld [vmem:[%s1898 + $0x78] sm:$0x1]
      %v1915 = vld [vmem:[%s1898 + $0x80] sm:$0xff]
      %v1916 = vld [vmem:[%s1898 + $0x88] sm:$0x1]
      %v1917 = vld [vmem:[%s1898 + $0x240] sm:$0xff]
      %v1918 = vld [vmem:[%s1898 + $0x248] sm:$0x1]
      %v1919 = vld [vmem:[%s1898 + $0x250] sm:$0xff]
      %v1920 = vld [vmem:[%s1898 + $0x258] sm:$0x1]
      %v1921 = vld [vmem:[%s1898 + $0x260] sm:$0xff]
      %v1922 = vld [vmem:[%s1898 + $0x268] sm:$0x1]
      %v1923 = vld [vmem:[%s1898 + $0x270] sm:$0xff]
      %v1924 = vld [vmem:[%s1898 + $0x278] sm:$0x1]
      %v1925 = vld [vmem:[%s1898 + $0x280] sm:$0xff]
      %v1926 = vld [vmem:[%s1898 + $0x288] sm:$0x1]
      %v1927 = vld [vmem:[%s1898 + $0x290] sm:$0xff]
      %v1928 = vld [vmem:[%s1898 + $0x298] sm:$0x1]
      %v1929 = vld [vmem:[%s1898 + $0x2a0] sm:$0xff]
      %v1930 = vld [vmem:[%s1898 + $0x2a8] sm:$0x1]
      %v1931 = vld [vmem:[%s1898 + $0x2b0] sm:$0xff]
      %v1932 = vld [vmem:[%s1898 + $0x2b8] sm:$0x1]
      %v1933 = vld [vmem:[%s1898 + $0x2c0] sm:$0xff]
      %v1934 = vld [vmem:[%s1898 + $0x2c8] sm:$0x1]
      %vm1935 = vcmp.ge.f32.partialorder %v1899, 0.0
      %vm1936 = vcmp.ge.f32.partialorder %v1900, 0.0
      %vm1937 = vcmp.ge.f32.partialorder %v1901, 0.0
      %vm1938 = vcmp.ge.f32.partialorder %v1902, 0.0
      %vm1939 = vcmp.ge.f32.partialorder %v1903, 0.0
      %vm1940 = vcmp.ge.f32.partialorder %v1904, 0.0
      %vm1941 = vcmp.ge.f32.partialorder %v1905, 0.0
      %vm1942 = vcmp.ge.f32.partialorder %v1906, 0.0
      %vm1943 = vcmp.ge.f32.partialorder %v1907, 0.0
      %vm1944 = vcmp.ge.f32.partialorder %v1908, 0.0
      %vm1945 = vcmp.ge.f32.partialorder %v1909, 0.0
      %vm1946 = vcmp.ge.f32.partialorder %v1910, 0.0
      %vm1947 = vcmp.ge.f32.partialorder %v1911, 0.0
      %vm1948 = vcmp.ge.f32.partialorder %v1912, 0.0
      %vm1949 = vcmp.ge.f32.partialorder %v1913, 0.0
      %vm1950 = vcmp.ge.f32.partialorder %v1914, 0.0
      %vm1951 = vcmp.ge.f32.partialorder %v1915, 0.0
      %vm1952 = vcmp.ge.f32.partialorder %v1916, 0.0
      %vm1953 = vcmp.ge.f32.partialorder %v1917, 0.0
      %vm1954 = vcmp.ge.f32.partialorder %v1918, 0.0
      %vm1955 = vcmp.ge.f32.partialorder %v1919, 0.0
      %vm1956 = vcmp.ge.f32.partialorder %v1920, 0.0
      %vm1957 = vcmp.ge.f32.partialorder %v1921, 0.0
      %vm1958 = vcmp.ge.f32.partialorder %v1922, 0.0
      %vm1959 = vcmp.ge.f32.partialorder %v1923, 0.0
      %vm1960 = vcmp.ge.f32.partialorder %v1924, 0.0
      %vm1961 = vcmp.ge.f32.partialorder %v1925, 0.0
      %vm1962 = vcmp.ge.f32.partialorder %v1926, 0.0
      %vm1963 = vcmp.ge.f32.partialorder %v1927, 0.0
      %vm1964 = vcmp.ge.f32.partialorder %v1928, 0.0
      %vm1965 = vcmp.ge.f32.partialorder %v1929, 0.0
      %vm1966 = vcmp.ge.f32.partialorder %v1930, 0.0
      %vm1967 = vcmp.ge.f32.partialorder %v1931, 0.0
      %vm1968 = vcmp.ge.f32.partialorder %v1932, 0.0
      %vm1969 = vcmp.ge.f32.partialorder %v1933, 0.0
      %vm1970 = vcmp.ge.f32.partialorder %v1934, 0.0
      %v1971 = vmul.f32 %v1899, 0.2
      %v1972 = vmul.f32 %v1900, 0.2
      %v1973 = vmul.f32 %v1901, 0.2
      %v1974 = vmul.f32 %v1902, 0.2
      %v1975 = vmul.f32 %v1903, 0.2
      %v1976 = vmul.f32 %v1904, 0.2
      %v1977 = vmul.f32 %v1905, 0.2
      %v1978 = vmul.f32 %v1906, 0.2
      %v1979 = vmul.f32 %v1907, 0.2
      %v1980 = vmul.f32 %v1908, 0.2
      %v1981 = vmul.f32 %v1909, 0.2
      %v1982 = vmul.f32 %v1910, 0.2
      %v1983 = vmul.f32 %v1911, 0.2
      %v1984 = vmul.f32 %v1912, 0.2
      %v1985 = vmul.f32 %v1913, 0.2
      %v1986 = vmul.f32 %v1914, 0.2
      %v1987 = vmul.f32 %v1915, 0.2
      %v1988 = vmul.f32 %v1916, 0.2
      %v1989 = vmul.f32 %v1917, 0.2
      %v1990 = vmul.f32 %v1918, 0.2
      %v1991 = vmul.f32 %v1919, 0.2
      %v1992 = vmul.f32 %v1920, 0.2
      %v1993 = vmul.f32 %v1921, 0.2
      %v1994 = vmul.f32 %v1922, 0.2
      %v1995 = vmul.f32 %v1923, 0.2
      %v1996 = vmul.f32 %v1924, 0.2
      %v1997 = vmul.f32 %v1925, 0.2
      %v1998 = vmul.f32 %v1926, 0.2
      %v1999 = vmul.f32 %v1927, 0.2
      %v2000 = vmul.f32 %v1928, 0.2
      %v2001 = vmul.f32 %v1929, 0.2
      %v2002 = vmul.f32 %v1930, 0.2
      %v2003 = vmul.f32 %v1931, 0.2
      %v2004 = vmul.f32 %v1932, 0.2
      %v2005 = vmul.f32 %v1933, 0.2
      %v2006 = vmul.f32 %v1934, 0.2
      %v2007 = vsel %vm1935, %v1899, %v1971
      %v2008 = vsel %vm1936, %v1900, %v1972
      %v2009 = vsel %vm1937, %v1901, %v1973
      %v2010 = vsel %vm1938, %v1902, %v1974
      %v2011 = vsel %vm1939, %v1903, %v1975
      %v2012 = vsel %vm1940, %v1904, %v1976
      %v2013 = vsel %vm1941, %v1905, %v1977
      %v2014 = vsel %vm1942, %v1906, %v1978
      %v2015 = vsel %vm1943, %v1907, %v1979
      %v2016 = vsel %vm1944, %v1908, %v1980
      %v2017 = vsel %vm1945, %v1909, %v1981
      %v2018 = vsel %vm1946, %v1910, %v1982
      %v2019 = vsel %vm1947, %v1911, %v1983
      %v2020 = vsel %vm1948, %v1912, %v1984
      %v2021 = vsel %vm1949, %v1913, %v1985
      %v2022 = vsel %vm1950, %v1914, %v1986
      %v2023 = vsel %vm1951, %v1915, %v1987
      %v2024 = vsel %vm1952, %v1916, %v1988
      %v2025 = vsel %vm1953, %v1917, %v1989
      %v2026 = vsel %vm1954, %v1918, %v1990
      %v2027 = vsel %vm1955, %v1919, %v1991
      %v2028 = vsel %vm1956, %v1920, %v1992
      %v2029 = vsel %vm1957, %v1921, %v1993
      %v2030 = vsel %vm1958, %v1922, %v1994
      %v2031 = vsel %vm1959, %v1923, %v1995
      %v2032 = vsel %vm1960, %v1924, %v1996
      %v2033 = vsel %vm1961, %v1925, %v1997
      %v2034 = vsel %vm1962, %v1926, %v1998
      %v2035 = vsel %vm1963, %v1927, %v1999
      %v2036 = vsel %vm1964, %v1928, %v2000
      %v2037 = vsel %vm1965, %v1929, %v2001
      %v2038 = vsel %vm1966, %v1930, %v2002
      %v2039 = vsel %vm1967, %v1931, %v2003
      %v2040 = vsel %vm1968, %v1932, %v2004
      %v2041 = vsel %vm1969, %v1933, %v2005
      %v2042 = vsel %vm1970, %v1934, %v2006
      %v2075 = vrot.slane %v2007, 1
      %v2076 = vrot.slane %v2008, 1
      %v2077 = vsel %vm426, %v2075, %v2076
      %v2078 = vrot.slane %v2009, 1
      %v2079 = vrot.slane %v2010, 1
      %v2080 = vsel %vm426, %v2078, %v2079
      %v2081 = vrot.slane %v2011, 1
      %v2082 = vrot.slane %v2012, 1
      %v2083 = vsel %vm426, %v2081, %v2082
      %v2084 = vrot.slane %v2013, 1
      %v2085 = vrot.slane %v2014, 1
      %v2086 = vsel %vm426, %v2084, %v2085
      %v2087 = vrot.slane %v2015, 1
      %v2088 = vrot.slane %v2016, 1
      %v2089 = vsel %vm426, %v2087, %v2088
      %v2090 = vrot.slane %v2017, 1
      %v2091 = vrot.slane %v2018, 1
      %v2092 = vsel %vm426, %v2090, %v2091
      %v2093 = vrot.slane %v2019, 1
      %v2094 = vrot.slane %v2020, 1
      %v2095 = vsel %vm426, %v2093, %v2094
      %v2096 = vrot.slane %v2021, 1
      %v2097 = vrot.slane %v2022, 1
      %v2098 = vsel %vm426, %v2096, %v2097
      %v2099 = vrot.slane %v2025, 1
      %v2100 = vrot.slane %v2026, 1
      %v2101 = vsel %vm426, %v2099, %v2100
      %v2102 = vrot.slane %v2027, 1
      %v2103 = vrot.slane %v2028, 1
      %v2104 = vsel %vm426, %v2102, %v2103
      %v2105 = vrot.slane %v2029, 1
      %v2106 = vrot.slane %v2030, 1
      %v2107 = vsel %vm426, %v2105, %v2106
      %v2108 = vrot.slane %v2031, 1
      %v2109 = vrot.slane %v2032, 1
      %v2110 = vsel %vm426, %v2108, %v2109
      %v2111 = vrot.slane %v2033, 1
      %v2112 = vrot.slane %v2034, 1
      %v2113 = vsel %vm426, %v2111, %v2112
      %v2114 = vrot.slane %v2035, 1
      %v2115 = vrot.slane %v2036, 1
      %v2116 = vsel %vm426, %v2114, %v2115
      %v2117 = vrot.slane %v2037, 1
      %v2118 = vrot.slane %v2038, 1
      %v2119 = vsel %vm426, %v2117, %v2118
      %v2120 = vrot.slane %v2039, 1
      %v2121 = vrot.slane %v2040, 1
      %v2122 = vsel %vm426, %v2120, %v2121
      %2123 = vrot.lane.b32.xlu0 %v2077, 4
      %v2124 = vpop.permute.xlu0 %2123
      %2125 = vrot.lane.b32.xlu0 %v2080, 4
      %v2126 = vpop.permute.xlu0 %2125
      %2127 = vrot.lane.b32.xlu0 %v2083, 4
      %v2128 = vpop.permute.xlu0 %2127
      %2129 = vrot.lane.b32.xlu0 %v2086, 4
      %v2130 = vpop.permute.xlu0 %2129
      %2131 = vrot.lane.b32.xlu0 %v2089, 4
      %v2132 = vpop.permute.xlu0 %2131
      %2133 = vrot.lane.b32.xlu0 %v2092, 4
      %v2134 = vpop.permute.xlu0 %2133
      %2135 = vrot.lane.b32.xlu0 %v2095, 4
      %v2136 = vpop.permute.xlu0 %2135
      %2137 = vrot.lane.b32.xlu0 %v2098, 4
      %v2138 = vpop.permute.xlu0 %2137
      %2139 = vrot.lane.b32.xlu0 %v2101, 4
      %v2140 = vpop.permute.xlu0 %2139
      %2141 = vrot.lane.b32.xlu0 %v2104, 4
      %v2142 = vpop.permute.xlu0 %2141
      %2143 = vrot.lane.b32.xlu0 %v2107, 4
      %v2144 = vpop.permute.xlu0 %2143
      %2145 = vrot.lane.b32.xlu0 %v2110, 4
      %v2146 = vpop.permute.xlu0 %2145
      %2147 = vrot.lane.b32.xlu0 %v2113, 4
      %v2148 = vpop.permute.xlu0 %2147
      %2149 = vrot.lane.b32.xlu0 %v2116, 4
      %v2150 = vpop.permute.xlu0 %2149
      %2151 = vrot.lane.b32.xlu0 %v2119, 4
      %v2152 = vpop.permute.xlu0 %2151
      %2153 = vrot.lane.b32.xlu0 %v2122, 4
      %v2154 = vpop.permute.xlu0 %2153
      %2173 = vrot.lane.b32.xlu0 %v2009, 8
      %v2174 = vpop.permute.xlu0 %2173
      %2175 = vrot.lane.b32.xlu0 %v2011, 8
      %v2176 = vpop.permute.xlu0 %2175
      %2177 = vrot.lane.b32.xlu0 %v2013, 8
      %v2178 = vpop.permute.xlu0 %2177
      %2179 = vrot.lane.b32.xlu0 %v2015, 8
      %v2180 = vpop.permute.xlu0 %2179
      %2181 = vrot.lane.b32.xlu0 %v2017, 8
      %v2182 = vpop.permute.xlu0 %2181
      %2183 = vrot.lane.b32.xlu0 %v2019, 8
      %v2184 = vpop.permute.xlu0 %2183
      %2185 = vrot.lane.b32.xlu0 %v2021, 8
      %v2186 = vpop.permute.xlu0 %2185
      %2187 = vrot.lane.b32.xlu0 %v2023, 8
      %v2188 = vpop.permute.xlu0 %2187
      %2189 = vrot.lane.b32.xlu0 %v2027, 8
      %v2190 = vpop.permute.xlu0 %2189
      %2191 = vrot.lane.b32.xlu0 %v2029, 8
      %v2192 = vpop.permute.xlu0 %2191
      %2193 = vrot.lane.b32.xlu0 %v2031, 8
      %v2194 = vpop.permute.xlu0 %2193
      %2195 = vrot.lane.b32.xlu0 %v2033, 8
      %v2196 = vpop.permute.xlu0 %2195
      %2197 = vrot.lane.b32.xlu0 %v2035, 8
      %v2198 = vpop.permute.xlu0 %2197
      %2199 = vrot.lane.b32.xlu0 %v2037, 8
      %v2200 = vpop.permute.xlu0 %2199
      %2201 = vrot.lane.b32.xlu0 %v2039, 8
      %v2202 = vpop.permute.xlu0 %2201
      %2203 = vrot.lane.b32.xlu0 %v2041, 8
      %v2204 = vpop.permute.xlu0 %2203
      %v2223 = vrot.slane %v2023, 1
      %v2224 = vrot.slane %v2024, 1
      %v2225 = vsel %vm426, %v2223, %v2224
      %v2226 = vrot.slane %v2041, 1
      %v2227 = vrot.slane %v2042, 1
      %v2228 = vsel %vm426, %v2226, %v2227
      %2229 = vrot.lane.b32.xlu0 %v2080, 12
      %v2230 = vpop.permute.xlu0 %2229
      %2231 = vrot.lane.b32.xlu0 %v2083, 12
      %v2232 = vpop.permute.xlu0 %2231
      %2233 = vrot.lane.b32.xlu0 %v2086, 12
      %v2234 = vpop.permute.xlu0 %2233
      %2235 = vrot.lane.b32.xlu0 %v2089, 12
      %v2236 = vpop.permute.xlu0 %2235
      %2237 = vrot.lane.b32.xlu0 %v2092, 12
      %v2238 = vpop.permute.xlu0 %2237
      %2239 = vrot.lane.b32.xlu0 %v2095, 12
      %v2240 = vpop.permute.xlu0 %2239
      %2241 = vrot.lane.b32.xlu0 %v2098, 12
      %v2242 = vpop.permute.xlu0 %2241
      %2243 = vrot.lane.b32.xlu0 %v2225, 12
      %v2244 = vpop.permute.xlu0 %2243
      %2245 = vrot.lane.b32.xlu0 %v2104, 12
      %v2246 = vpop.permute.xlu0 %2245
      %2247 = vrot.lane.b32.xlu0 %v2107, 12
      %v2248 = vpop.permute.xlu0 %2247
      %2249 = vrot.lane.b32.xlu0 %v2110, 12
      %v2250 = vpop.permute.xlu0 %2249
      %2251 = vrot.lane.b32.xlu0 %v2113, 12
      %v2252 = vpop.permute.xlu0 %2251
      %2253 = vrot.lane.b32.xlu0 %v2116, 12
      %v2254 = vpop.permute.xlu0 %2253
      %2255 = vrot.lane.b32.xlu0 %v2119, 12
      %v2256 = vpop.permute.xlu0 %2255
      %2257 = vrot.lane.b32.xlu0 %v2122, 12
      %v2258 = vpop.permute.xlu0 %2257
      %2259 = vrot.lane.b32.xlu0 %v2228, 12
      %v2260 = vpop.permute.xlu0 %2259
      %v2277 = vsel %vm629, %v2007, %v2124
      %v2278 = vsel %vm629, %v2009, %v2126
      %v2279 = vsel %vm629, %v2011, %v2128
      %v2280 = vsel %vm629, %v2013, %v2130
      %v2281 = vsel %vm629, %v2015, %v2132
      %v2282 = vsel %vm629, %v2017, %v2134
      %v2283 = vsel %vm629, %v2019, %v2136
      %v2284 = vsel %vm629, %v2021, %v2138
      %v2285 = vsel %vm629, %v2025, %v2140
      %v2286 = vsel %vm629, %v2027, %v2142
      %v2287 = vsel %vm629, %v2029, %v2144
      %v2288 = vsel %vm629, %v2031, %v2146
      %v2289 = vsel %vm629, %v2033, %v2148
      %v2290 = vsel %vm629, %v2035, %v2150
      %v2291 = vsel %vm629, %v2037, %v2152
      %v2292 = vsel %vm629, %v2039, %v2154
      %v2293 = vsel %vm646, %v2277, %v2174
      %v2294 = vsel %vm646, %v2278, %v2176
      %v2295 = vsel %vm646, %v2279, %v2178
      %v2296 = vsel %vm646, %v2280, %v2180
      %v2297 = vsel %vm646, %v2281, %v2182
      %v2298 = vsel %vm646, %v2282, %v2184
      %v2299 = vsel %vm646, %v2283, %v2186
      %v2300 = vsel %vm646, %v2284, %v2188
      %v2301 = vsel %vm646, %v2285, %v2190
      %v2302 = vsel %vm646, %v2286, %v2192
      %v2303 = vsel %vm646, %v2287, %v2194
      %v2304 = vsel %vm646, %v2288, %v2196
      %v2305 = vsel %vm646, %v2289, %v2198
      %v2306 = vsel %vm646, %v2290, %v2200
      %v2307 = vsel %vm646, %v2291, %v2202
      %v2308 = vsel %vm646, %v2292, %v2204
      %v2309 = vsel %vm663, %v2293, %v2230
      %v2310 = vsel %vm663, %v2294, %v2232
      %v2311 = vsel %vm663, %v2295, %v2234
      %v2312 = vsel %vm663, %v2296, %v2236
      %v2313 = vsel %vm663, %v2297, %v2238
      %v2314 = vsel %vm663, %v2298, %v2240
      %v2315 = vsel %vm663, %v2299, %v2242
      %v2316 = vsel %vm663, %v2300, %v2244
      %v2317 = vsel %vm663, %v2301, %v2246
      %v2318 = vsel %vm663, %v2302, %v2248
      %v2319 = vsel %vm663, %v2303, %v2250
      %v2320 = vsel %vm663, %v2304, %v2252
      %v2321 = vsel %vm663, %v2305, %v2254
      %v2322 = vsel %vm663, %v2306, %v2256
      %v2323 = vsel %vm663, %v2307, %v2258
      %v2324 = vsel %vm663, %v2308, %v2260
      %s2325 = scalar_lea.vmem %s1, 48
      %v2326 = vld [vmem:[%s2325] sm:$0xff]
      %v2327 = vld [vmem:[%s2325 + $0x8] sm:$0xff]
      %v2329 = vsel %vm1112, %v2309, 0
      %v2332 = vsel %vm1112, %v2310, 0
      %v2335 = vsel %vm1112, %v2311, 0
      %v2338 = vsel %vm1112, %v2312, 0
      %v2341 = vsel %vm1112, %v2313, 0
      %v2344 = vsel %vm1112, %v2314, 0
      %v2347 = vsel %vm1112, %v2315, 0
      %v2350 = vsel %vm1112, %v2316, 0
      %v2353 = vsel %vm1112, %v2317, 0
      %v2356 = vsel %vm1112, %v2318, 0
      %v2359 = vsel %vm1112, %v2319, 0
      %v2362 = vsel %vm1112, %v2320, 0
      %v2365 = vsel %vm1112, %v2321, 0
      %v2368 = vsel %vm1112, %v2322, 0
      %v2371 = vsel %vm1112, %v2323, 0
      %v2374 = vsel %vm1112, %v2324, 0
      %2376 = vmatpush.msra.mxu0 0.0
      %2377 = vmatpush.msra.mxu0 0.0
      %2378 = vmatpush.msra.mxu0 0.0
      %2379 = vmatpush.msra.mxu0 0.0
      %2380 = vmatpush.msra.mxu0 0.0
      %2381 = vmatpush.msra.mxu0 0.0
      %2382 = vmatpush.msra.mxu0 0.0
      %2383 = vmatpush.msra.mxu0 0.0
      %2384 = vmatpush.msra.mxu0 0.0
      %2385 = vmatpush.msra.mxu0 0.0
      %2386 = vmatpush.msra.mxu0 0.0
      %2387 = vmatpush.msra.mxu0 0.0
      %2388 = vmatpush.msra.mxu0 0.0
      %2389 = vmatpush.msra.mxu0 0.0
      %2390 = vmatpush.msra.mxu0 %v2327
      %2391 = vmatpush.msra.mxu0 %v2326
      %2392 = vmatmul.f32.gmra.mxu0 %v2329
      %v2393 = vpop.f32.mrf.mxu0
      %v2394 = vadd.f32 0.0, %v2393
      %2395 = vmatmul.f32.gmra.mxu0 %v2332
      %v2396 = vpop.f32.mrf.mxu0
      %v2397 = vadd.f32 0.0, %v2396
      %2398 = vmatmul.f32.gmra.mxu0 %v2335
      %v2399 = vpop.f32.mrf.mxu0
      %v2400 = vadd.f32 0.0, %v2399
      %2401 = vmatmul.f32.gmra.mxu0 %v2338
      %v2402 = vpop.f32.mrf.mxu0
      %v2403 = vadd.f32 0.0, %v2402
      %2404 = vmatmul.f32.gmra.mxu0 %v2341
      %v2405 = vpop.f32.mrf.mxu0
      %v2406 = vadd.f32 0.0, %v2405
      %2407 = vmatmul.f32.gmra.mxu0 %v2344
      %v2408 = vpop.f32.mrf.mxu0
      %v2409 = vadd.f32 0.0, %v2408
      %2410 = vmatmul.f32.gmra.mxu0 %v2347
      %v2411 = vpop.f32.mrf.mxu0
      %v2412 = vadd.f32 0.0, %v2411
      %2413 = vmatmul.f32.gmra.mxu0 %v2350
      %v2414 = vpop.f32.mrf.mxu0
      %v2415 = vadd.f32 0.0, %v2414
      %2416 = vmatmul.f32.gmra.mxu0 %v2353
      %v2417 = vpop.f32.mrf.mxu0
      %v2418 = vadd.f32 0.0, %v2417
      %2419 = vmatmul.f32.gmra.mxu0 %v2356
      %v2420 = vpop.f32.mrf.mxu0
      %v2421 = vadd.f32 0.0, %v2420
      %2422 = vmatmul.f32.gmra.mxu0 %v2359
      %v2423 = vpop.f32.mrf.mxu0
      %v2424 = vadd.f32 0.0, %v2423
      %2425 = vmatmul.f32.gmra.mxu0 %v2362
      %v2426 = vpop.f32.mrf.mxu0
      %v2427 = vadd.f32 0.0, %v2426
      %2428 = vmatmul.f32.gmra.mxu0 %v2365
      %v2429 = vpop.f32.mrf.mxu0
      %v2430 = vadd.f32 0.0, %v2429
      %2431 = vmatmul.f32.gmra.mxu0 %v2368
      %v2432 = vpop.f32.mrf.mxu0
      %v2433 = vadd.f32 0.0, %v2432
      %2434 = vmatmul.f32.gmra.mxu0 %v2371
      %v2435 = vpop.f32.mrf.mxu0
      %v2436 = vadd.f32 0.0, %v2435
      %2437 = vmatmul.f32.gmra.mxu0 %v2374
      %v2438 = vpop.f32.mrf.mxu0
      %v2439 = vadd.f32 0.0, %v2438
      %2440 = vdwg.mxu0
      %v2441 = vadd.f32 %v1882, %v2394
      %v2442 = vadd.f32 %v1883, %v2397
      %v2443 = vadd.f32 %v1884, %v2400
      %v2444 = vadd.f32 %v1885, %v2403
      %v2445 = vadd.f32 %v1886, %v2406
      %v2446 = vadd.f32 %v1887, %v2409
      %v2447 = vadd.f32 %v1888, %v2412
      %v2448 = vadd.f32 %v1889, %v2415
      %v2449 = vadd.f32 %v1890, %v2418
      %v2450 = vadd.f32 %v1891, %v2421
      %v2451 = vadd.f32 %v1892, %v2424
      %v2452 = vadd.f32 %v1893, %v2427
      %v2453 = vadd.f32 %v1894, %v2430
      %v2454 = vadd.f32 %v1895, %v2433
      %v2455 = vadd.f32 %v1896, %v2436
      %v2456 = vadd.f32 %v1897, %v2439
      %v2457 = vmax.f32 %v2441, 0.0
      %v2458 = vmax.f32 %v2442, 0.0
      %v2459 = vmax.f32 %v2443, 0.0
      %v2460 = vmax.f32 %v2444, 0.0
      %v2461 = vmax.f32 %v2445, 0.0
      %v2462 = vmax.f32 %v2446, 0.0
      %v2463 = vmax.f32 %v2447, 0.0
      %v2464 = vmax.f32 %v2448, 0.0
      %v2465 = vmax.f32 %v2449, 0.0
      %v2466 = vmax.f32 %v2450, 0.0
      %v2467 = vmax.f32 %v2451, 0.0
      %v2468 = vmax.f32 %v2452, 0.0
      %v2469 = vmax.f32 %v2453, 0.0
      %v2470 = vmax.f32 %v2454, 0.0
      %v2471 = vmax.f32 %v2455, 0.0
      %v2472 = vmax.f32 %v2456, 0.0
      %2473 = vst.msk [vmem:[#allocation2] sm:$0xff] %vm646, 0.0
      %vm2474 = vcmask 58368
      %2475 = vst.msk [vmem:[#allocation2 + $0x8] sm:$0x3] %vm2474, 0.0
      %2476 = vst.msk [vmem:[#allocation2 + $0xa0] sm:$0xff] %vm646, 0.0
      %2477 = vst.msk [vmem:[#allocation2 + $0xa8] sm:$0x3] %vm2474, 0.0
      %s2478 = scalar_lea.vmem [#allocation2], 144
      %2479 = vst.msk [vmem:[%s2478] sm:$0xff] %vm646, 0.0
      %2480 = vst.msk [vmem:[%s2478 + $0x8] sm:$0x3] %vm2474, 0.0
      %2481 = vst.msk [vmem:[%s2478 + $0xa0] sm:$0xff] %vm646, 0.0
      %2482 = vst.msk [vmem:[%s2478 + $0xa8] sm:$0x3] %vm2474, 0.0
      %vm2483 = vcmask 57344
      %2484 = vst.msk [vmem:[#allocation2] sm:$0x1] %vm2483, 0.0
      %2485 = vst.msk [vmem:[#allocation2 + $0x10] sm:$0x1] %vm2483, 0.0
      %2486 = vst.msk [vmem:[#allocation2 + $0x20] sm:$0x1] %vm2483, 0.0
      %2487 = vst.msk [vmem:[#allocation2 + $0x30] sm:$0x1] %vm2483, 0.0
      %2488 = vst.msk [vmem:[#allocation2 + $0x40] sm:$0x1] %vm2483, 0.0
      %2489 = vst.msk [vmem:[#allocation2 + $0x50] sm:$0x1] %vm2483, 0.0
      %2490 = vst.msk [vmem:[#allocation2 + $0x60] sm:$0x1] %vm2483, 0.0
      %2491 = vst.msk [vmem:[#allocation2 + $0x70] sm:$0x1] %vm2483, 0.0
      %2492 = vst.msk [vmem:[#allocation2 + $0x80] sm:$0x1] %vm2483, 0.0
      %2493 = vst.msk [vmem:[#allocation2 + $0x90] sm:$0x1] %vm2483, 0.0
      %2494 = vst.msk [vmem:[#allocation2 + $0xa0] sm:$0x1] %vm2483, 0.0
      %2495 = vst.msk [vmem:[#allocation2 + $0xb0] sm:$0x1] %vm2483, 0.0
      %2496 = vst.msk [vmem:[#allocation2 + $0xc0] sm:$0x1] %vm2483, 0.0
      %2497 = vst.msk [vmem:[#allocation2 + $0xd0] sm:$0x1] %vm2483, 0.0
      %2498 = vst.msk [vmem:[#allocation2 + $0xe0] sm:$0x1] %vm2483, 0.0
      %2499 = vst.msk [vmem:[#allocation2 + $0xf0] sm:$0x1] %vm2483, 0.0
      %2500 = vst.msk [vmem:[#allocation2 + $0x100] sm:$0x1] %vm2483, 0.0
      %2501 = vst.msk [vmem:[#allocation2 + $0x110] sm:$0x1] %vm2483, 0.0
      %2502 = vst.msk [vmem:[#allocation2 + $0x120] sm:$0x1] %vm2483, 0.0
      %2503 = vst.msk [vmem:[#allocation2 + $0x130] sm:$0x1] %vm2483, 0.0
      %2504 = vst.msk [vmem:[#allocation2 + $0x9] sm:$0x1] %vm2483, 0.0
      %2505 = vst.msk [vmem:[#allocation2 + $0x19] sm:$0x1] %vm2483, 0.0
      %2506 = vst.msk [vmem:[#allocation2 + $0x29] sm:$0x1] %vm2483, 0.0
      %2507 = vst.msk [vmem:[#allocation2 + $0x39] sm:$0x1] %vm2483, 0.0
      %2508 = vst.msk [vmem:[#allocation2 + $0x49] sm:$0x1] %vm2483, 0.0
      %2509 = vst.msk [vmem:[#allocation2 + $0x59] sm:$0x1] %vm2483, 0.0
      %2510 = vst.msk [vmem:[#allocation2 + $0x69] sm:$0x1] %vm2483, 0.0
      %2511 = vst.msk [vmem:[#allocation2 + $0x79] sm:$0x1] %vm2483, 0.0
      %2512 = vst.msk [vmem:[#allocation2 + $0x89] sm:$0x1] %vm2483, 0.0
      %2513 = vst.msk [vmem:[#allocation2 + $0x99] sm:$0x1] %vm2483, 0.0
      %2514 = vst.msk [vmem:[#allocation2 + $0xa9] sm:$0x1] %vm2483, 0.0
      %2515 = vst.msk [vmem:[#allocation2 + $0xb9] sm:$0x1] %vm2483, 0.0
      %2516 = vst.msk [vmem:[#allocation2 + $0xc9] sm:$0x1] %vm2483, 0.0
      %2517 = vst.msk [vmem:[#allocation2 + $0xd9] sm:$0x1] %vm2483, 0.0
      %2518 = vst.msk [vmem:[#allocation2 + $0xe9] sm:$0x1] %vm2483, 0.0
      %2519 = vst.msk [vmem:[#allocation2 + $0xf9] sm:$0x1] %vm2483, 0.0
      %2520 = vst.msk [vmem:[#allocation2 + $0x109] sm:$0x1] %vm2483, 0.0
      %2521 = vst.msk [vmem:[#allocation2 + $0x119] sm:$0x1] %vm2483, 0.0
      %2522 = vst.msk [vmem:[#allocation2 + $0x129] sm:$0x1] %vm2483, 0.0
      %2523 = vst.msk [vmem:[#allocation2 + $0x139] sm:$0x1] %vm2483, 0.0
      %s2524 = scalar_lea.vmem [#allocation2], 16
      %2525 = vst.msk [vmem:[%s2524 + $0x1] sm:$0xff] %vm646, %v2457
      %2526 = vst.msk [vmem:[%s2524 + $0x11] sm:$0xff] %vm646, %v2458
      %2527 = vst.msk [vmem:[%s2524 + $0x21] sm:$0xff] %vm646, %v2459
      %2528 = vst.msk [vmem:[%s2524 + $0x31] sm:$0xff] %vm646, %v2460
      %2529 = vst.msk [vmem:[%s2524 + $0x41] sm:$0xff] %vm646, %v2461
      %2530 = vst.msk [vmem:[%s2524 + $0x51] sm:$0xff] %vm646, %v2462
      %2531 = vst.msk [vmem:[%s2524 + $0x61] sm:$0xff] %vm646, %v2463
      %2532 = vst.msk [vmem:[%s2524 + $0x71] sm:$0xff] %vm646, %v2464
      %2533 = vst.msk [vmem:[%s2524 + $0xa1] sm:$0xff] %vm646, %v2465
      %2534 = vst.msk [vmem:[%s2524 + $0xb1] sm:$0xff] %vm646, %v2466
      %2535 = vst.msk [vmem:[%s2524 + $0xc1] sm:$0xff] %vm646, %v2467
      %2536 = vst.msk [vmem:[%s2524 + $0xd1] sm:$0xff] %vm646, %v2468
      %2537 = vst.msk [vmem:[%s2524 + $0xe1] sm:$0xff] %vm646, %v2469
      %2538 = vst.msk [vmem:[%s2524 + $0xf1] sm:$0xff] %vm646, %v2470
      %2539 = vst.msk [vmem:[%s2524 + $0x101] sm:$0xff] %vm646, %v2471
      %2540 = vst.msk [vmem:[%s2524 + $0x111] sm:$0xff] %vm646, %v2472
      %v2541 = vld [vmem:[#allocation2] sm:$0xff]
      %v2542 = vld [vmem:[#allocation2 + $0x10] sm:$0xff]
      %v2543 = vld [vmem:[#allocation2 + $0x20] sm:$0xff]
      %v2544 = vld [vmem:[#allocation2 + $0x30] sm:$0xff]
      %v2545 = vld [vmem:[#allocation2 + $0x40] sm:$0xff]
      %v2546 = vld [vmem:[#allocation2 + $0x50] sm:$0xff]
      %v2547 = vld [vmem:[#allocation2 + $0x60] sm:$0xff]
      %v2548 = vld [vmem:[#allocation2 + $0x70] sm:$0xff]
      %v2549 = vld [vmem:[#allocation2 + $0xa0] sm:$0xff]
      %v2550 = vld [vmem:[#allocation2 + $0xb0] sm:$0xff]
      %v2551 = vld [vmem:[#allocation2 + $0xc0] sm:$0xff]
      %v2552 = vld [vmem:[#allocation2 + $0xd0] sm:$0xff]
      %v2553 = vld [vmem:[#allocation2 + $0xe0] sm:$0xff]
      %v2554 = vld [vmem:[#allocation2 + $0xf0] sm:$0xff]
      %v2555 = vld [vmem:[#allocation2 + $0x100] sm:$0xff]
      %v2556 = vld [vmem:[#allocation2 + $0x110] sm:$0xff]
      %v2557 = vld [vmem:[#allocation2 + $0x1] sm:$0xff]
      %v2558 = vld [vmem:[#allocation2 + $0x11] sm:$0xff]
      %v2559 = vld [vmem:[#allocation2 + $0x21] sm:$0xff]
      %v2560 = vld [vmem:[#allocation2 + $0x31] sm:$0xff]
      %v2561 = vld [vmem:[#allocation2 + $0x41] sm:$0xff]
      %v2562 = vld [vmem:[#allocation2 + $0x51] sm:$0xff]
      %v2563 = vld [vmem:[#allocation2 + $0x61] sm:$0xff]
      %v2564 = vld [vmem:[#allocation2 + $0x71] sm:$0xff]
      %v2565 = vld [vmem:[#allocation2 + $0xa1] sm:$0xff]
      %v2566 = vld [vmem:[#allocation2 + $0xb1] sm:$0xff]
      %v2567 = vld [vmem:[#allocation2 + $0xc1] sm:$0xff]
      %v2568 = vld [vmem:[#allocation2 + $0xd1] sm:$0xff]
      %v2569 = vld [vmem:[#allocation2 + $0xe1] sm:$0xff]
      %v2570 = vld [vmem:[#allocation2 + $0xf1] sm:$0xff]
      %v2571 = vld [vmem:[#allocation2 + $0x101] sm:$0xff]
      %v2572 = vld [vmem:[#allocation2 + $0x111] sm:$0xff]
      %v2573 = vld [vmem:[%s2524] sm:$0xff]
      %v2574 = vld [vmem:[%s2524 + $0x10] sm:$0xff]
      %v2575 = vld [vmem:[%s2524 + $0x20] sm:$0xff]
      %v2576 = vld [vmem:[%s2524 + $0x30] sm:$0xff]
      %v2577 = vld [vmem:[%s2524 + $0x40] sm:$0xff]
      %v2578 = vld [vmem:[%s2524 + $0x50] sm:$0xff]
      %v2579 = vld [vmem:[%s2524 + $0x60] sm:$0xff]
      %v2580 = vld [vmem:[%s2524 + $0x70] sm:$0xff]
      %v2581 = vld [vmem:[%s2524 + $0xa0] sm:$0xff]
      %v2582 = vld [vmem:[%s2524 + $0xb0] sm:$0xff]
      %v2583 = vld [vmem:[%s2524 + $0xc0] sm:$0xff]
      %v2584 = vld [vmem:[%s2524 + $0xd0] sm:$0xff]
      %v2585 = vld [vmem:[%s2524 + $0xe0] sm:$0xff]
      %v2586 = vld [vmem:[%s2524 + $0xf0] sm:$0xff]
      %v2587 = vld [vmem:[%s2524 + $0x100] sm:$0xff]
      %v2588 = vld [vmem:[%s2524 + $0x110] sm:$0xff]
      %v2589 = vld [vmem:[%s2524 + $0x1] sm:$0xff]
      %v2590 = vld [vmem:[%s2524 + $0x11] sm:$0xff]
      %v2591 = vld [vmem:[%s2524 + $0x21] sm:$0xff]
      %v2592 = vld [vmem:[%s2524 + $0x31] sm:$0xff]
      %v2593 = vld [vmem:[%s2524 + $0x41] sm:$0xff]
      %v2594 = vld [vmem:[%s2524 + $0x51] sm:$0xff]
      %v2595 = vld [vmem:[%s2524 + $0x61] sm:$0xff]
      %v2596 = vld [vmem:[%s2524 + $0x71] sm:$0xff]
      %v2597 = vld [vmem:[%s2524 + $0xa1] sm:$0xff]
      %v2598 = vld [vmem:[%s2524 + $0xb1] sm:$0xff]
      %v2599 = vld [vmem:[%s2524 + $0xc1] sm:$0xff]
      %v2600 = vld [vmem:[%s2524 + $0xd1] sm:$0xff]
      %v2601 = vld [vmem:[%s2524 + $0xe1] sm:$0xff]
      %v2602 = vld [vmem:[%s2524 + $0xf1] sm:$0xff]
      %v2603 = vld [vmem:[%s2524 + $0x101] sm:$0xff]
      %v2604 = vld [vmem:[%s2524 + $0x111] sm:$0xff]
      %2621 = vrot.lane.b32.xlu0 %v2557, 8
      %v2622 = vpop.permute.xlu0 %2621
      %2623 = vrot.lane.b32.xlu0 %v2558, 8
      %v2624 = vpop.permute.xlu0 %2623
      %2625 = vrot.lane.b32.xlu0 %v2559, 8
      %v2626 = vpop.permute.xlu0 %2625
      %2627 = vrot.lane.b32.xlu0 %v2560, 8
      %v2628 = vpop.permute.xlu0 %2627
      %2629 = vrot.lane.b32.xlu0 %v2561, 8
      %v2630 = vpop.permute.xlu0 %2629
      %2631 = vrot.lane.b32.xlu0 %v2562, 8
      %v2632 = vpop.permute.xlu0 %2631
      %2633 = vrot.lane.b32.xlu0 %v2563, 8
      %v2634 = vpop.permute.xlu0 %2633
      %2635 = vrot.lane.b32.xlu0 %v2564, 8
      %v2636 = vpop.permute.xlu0 %2635
      %2637 = vrot.lane.b32.xlu0 %v2565, 8
      %v2638 = vpop.permute.xlu0 %2637
      %2639 = vrot.lane.b32.xlu0 %v2566, 8
      %v2640 = vpop.permute.xlu0 %2639
      %2641 = vrot.lane.b32.xlu0 %v2567, 8
      %v2642 = vpop.permute.xlu0 %2641
      %2643 = vrot.lane.b32.xlu0 %v2568, 8
      %v2644 = vpop.permute.xlu0 %2643
      %2645 = vrot.lane.b32.xlu0 %v2569, 8
      %v2646 = vpop.permute.xlu0 %2645
      %2647 = vrot.lane.b32.xlu0 %v2570, 8
      %v2648 = vpop.permute.xlu0 %2647
      %2649 = vrot.lane.b32.xlu0 %v2571, 8
      %v2650 = vpop.permute.xlu0 %2649
      %2651 = vrot.lane.b32.xlu0 %v2572, 8
      %v2652 = vpop.permute.xlu0 %2651
      %2685 = vrot.lane.b32.xlu0 %v2573, 16
      %v2686 = vpop.permute.xlu0 %2685
      %2687 = vrot.lane.b32.xlu0 %v2574, 16
      %v2688 = vpop.permute.xlu0 %2687
      %2689 = vrot.lane.b32.xlu0 %v2575, 16
      %v2690 = vpop.permute.xlu0 %2689
      %2691 = vrot.lane.b32.xlu0 %v2576, 16
      %v2692 = vpop.permute.xlu0 %2691
      %2693 = vrot.lane.b32.xlu0 %v2577, 16
      %v2694 = vpop.permute.xlu0 %2693
      %2695 = vrot.lane.b32.xlu0 %v2578, 16
      %v2696 = vpop.permute.xlu0 %2695
      %2697 = vrot.lane.b32.xlu0 %v2579, 16
      %v2698 = vpop.permute.xlu0 %2697
      %2699 = vrot.lane.b32.xlu0 %v2580, 16
      %v2700 = vpop.permute.xlu0 %2699
      %2701 = vrot.lane.b32.xlu0 %v2581, 16
      %v2702 = vpop.permute.xlu0 %2701
      %2703 = vrot.lane.b32.xlu0 %v2582, 16
      %v2704 = vpop.permute.xlu0 %2703
      %2705 = vrot.lane.b32.xlu0 %v2583, 16
      %v2706 = vpop.permute.xlu0 %2705
      %2707 = vrot.lane.b32.xlu0 %v2584, 16
      %v2708 = vpop.permute.xlu0 %2707
      %2709 = vrot.lane.b32.xlu0 %v2585, 16
      %v2710 = vpop.permute.xlu0 %2709
      %2711 = vrot.lane.b32.xlu0 %v2586, 16
      %v2712 = vpop.permute.xlu0 %2711
      %2713 = vrot.lane.b32.xlu0 %v2587, 16
      %v2714 = vpop.permute.xlu0 %2713
      %2715 = vrot.lane.b32.xlu0 %v2588, 16
      %v2716 = vpop.permute.xlu0 %2715
      %2749 = vrot.lane.b32.xlu0 %v2589, 24
      %v2750 = vpop.permute.xlu0 %2749
      %2751 = vrot.lane.b32.xlu0 %v2590, 24
      %v2752 = vpop.permute.xlu0 %2751
      %2753 = vrot.lane.b32.xlu0 %v2591, 24
      %v2754 = vpop.permute.xlu0 %2753
      %2755 = vrot.lane.b32.xlu0 %v2592, 24
      %v2756 = vpop.permute.xlu0 %2755
      %2757 = vrot.lane.b32.xlu0 %v2593, 24
      %v2758 = vpop.permute.xlu0 %2757
      %2759 = vrot.lane.b32.xlu0 %v2594, 24
      %v2760 = vpop.permute.xlu0 %2759
      %2761 = vrot.lane.b32.xlu0 %v2595, 24
      %v2762 = vpop.permute.xlu0 %2761
      %2763 = vrot.lane.b32.xlu0 %v2596, 24
      %v2764 = vpop.permute.xlu0 %2763
      %2765 = vrot.lane.b32.xlu0 %v2597, 24
      %v2766 = vpop.permute.xlu0 %2765
      %2767 = vrot.lane.b32.xlu0 %v2598, 24
      %v2768 = vpop.permute.xlu0 %2767
      %2769 = vrot.lane.b32.xlu0 %v2599, 24
      %v2770 = vpop.permute.xlu0 %2769
      %2771 = vrot.lane.b32.xlu0 %v2600, 24
      %v2772 = vpop.permute.xlu0 %2771
      %2773 = vrot.lane.b32.xlu0 %v2601, 24
      %v2774 = vpop.permute.xlu0 %2773
      %2775 = vrot.lane.b32.xlu0 %v2602, 24
      %v2776 = vpop.permute.xlu0 %2775
      %2777 = vrot.lane.b32.xlu0 %v2603, 24
      %v2778 = vpop.permute.xlu0 %2777
      %2779 = vrot.lane.b32.xlu0 %v2604, 24
      %v2780 = vpop.permute.xlu0 %2779
      %v2797 = vsel %vm646, %v2541, %v2622
      %v2798 = vsel %vm646, %v2542, %v2624
      %v2799 = vsel %vm646, %v2543, %v2626
      %v2800 = vsel %vm646, %v2544, %v2628
      %v2801 = vsel %vm646, %v2545, %v2630
      %v2802 = vsel %vm646, %v2546, %v2632
      %v2803 = vsel %vm646, %v2547, %v2634
      %v2804 = vsel %vm646, %v2548, %v2636
      %v2805 = vsel %vm646, %v2549, %v2638
      %v2806 = vsel %vm646, %v2550, %v2640
      %v2807 = vsel %vm646, %v2551, %v2642
      %v2808 = vsel %vm646, %v2552, %v2644
      %v2809 = vsel %vm646, %v2553, %v2646
      %v2810 = vsel %vm646, %v2554, %v2648
      %v2811 = vsel %vm646, %v2555, %v2650
      %v2812 = vsel %vm646, %v2556, %v2652
      %v2813 = vsel %vm1112, %v2797, %v2686
      %v2814 = vsel %vm1112, %v2798, %v2688
      %v2815 = vsel %vm1112, %v2799, %v2690
      %v2816 = vsel %vm1112, %v2800, %v2692
      %v2817 = vsel %vm1112, %v2801, %v2694
      %v2818 = vsel %vm1112, %v2802, %v2696
      %v2819 = vsel %vm1112, %v2803, %v2698
      %v2820 = vsel %vm1112, %v2804, %v2700
      %v2821 = vsel %vm1112, %v2805, %v2702
      %v2822 = vsel %vm1112, %v2806, %v2704
      %v2823 = vsel %vm1112, %v2807, %v2706
      %v2824 = vsel %vm1112, %v2808, %v2708
      %v2825 = vsel %vm1112, %v2809, %v2710
      %v2826 = vsel %vm1112, %v2810, %v2712
      %v2827 = vsel %vm1112, %v2811, %v2714
      %v2828 = vsel %vm1112, %v2812, %v2716
      %vm2829 = vcmask 195584
      %v2830 = vsel %vm2829, %v2813, %v2750
      %v2831 = vsel %vm2829, %v2814, %v2752
      %v2832 = vsel %vm2829, %v2815, %v2754
      %v2833 = vsel %vm2829, %v2816, %v2756
      %v2834 = vsel %vm2829, %v2817, %v2758
      %v2835 = vsel %vm2829, %v2818, %v2760
      %v2836 = vsel %vm2829, %v2819, %v2762
      %v2837 = vsel %vm2829, %v2820, %v2764
      %v2838 = vsel %vm2829, %v2821, %v2766
      %v2839 = vsel %vm2829, %v2822, %v2768
      %v2840 = vsel %vm2829, %v2823, %v2770
      %v2841 = vsel %vm2829, %v2824, %v2772
      %v2842 = vsel %vm2829, %v2825, %v2774
      %v2843 = vsel %vm2829, %v2826, %v2776
      %v2844 = vsel %vm2829, %v2827, %v2778
      %v2845 = vsel %vm2829, %v2828, %v2780
      %v2846 = vld [vmem:[%s2] sm:$0xff]
      %v2847 = vld [vmem:[%s2 + $0x8] sm:$0xff]
      %v2848 = vld [vmem:[%s2 + $0x10] sm:$0xff]
      %v2849 = vld [vmem:[%s2 + $0x18] sm:$0xff]
      %vm2850 = vcmask 261120
      %v2852 = vsel %vm2850, %v2830, 0
      %v2855 = vsel %vm2850, %v2831, 0
      %v2858 = vsel %vm2850, %v2832, 0
      %v2861 = vsel %vm2850, %v2833, 0
      %v2864 = vsel %vm2850, %v2834, 0
      %v2867 = vsel %vm2850, %v2835, 0
      %v2870 = vsel %vm2850, %v2836, 0
      %v2873 = vsel %vm2850, %v2837, 0
      %v2876 = vsel %vm2850, %v2838, 0
      %v2879 = vsel %vm2850, %v2839, 0
      %v2882 = vsel %vm2850, %v2840, 0
      %v2885 = vsel %vm2850, %v2841, 0
      %v2888 = vsel %vm2850, %v2842, 0
      %v2891 = vsel %vm2850, %v2843, 0
      %v2894 = vsel %vm2850, %v2844, 0
      %v2897 = vsel %vm2850, %v2845, 0
      %2899 = vmatpush.msra.mxu0 0.0
      %2900 = vmatpush.msra.mxu0 0.0
      %2901 = vmatpush.msra.mxu0 0.0
      %2902 = vmatpush.msra.mxu0 0.0
      %2903 = vmatpush.msra.mxu0 0.0
      %2904 = vmatpush.msra.mxu0 0.0
      %2905 = vmatpush.msra.mxu0 0.0
      %2906 = vmatpush.msra.mxu0 0.0
      %2907 = vmatpush.msra.mxu0 0.0
      %2908 = vmatpush.msra.mxu0 0.0
      %2909 = vmatpush.msra.mxu0 0.0
      %2910 = vmatpush.msra.mxu0 0.0
      %2911 = vmatpush.msra.mxu0 %v2849
      %2912 = vmatpush.msra.mxu0 %v2848
      %2913 = vmatpush.msra.mxu0 %v2847
      %2914 = vmatpush.msra.mxu0 %v2846
      %2915 = vmatmul.f32.gmra.mxu0 %v2852
      %v2916 = vpop.f32.mrf.mxu0
      %v2917 = vadd.f32 0.0, %v2916
      %2918 = vmatmul.f32.gmra.mxu0 %v2855
      %v2919 = vpop.f32.mrf.mxu0
      %v2920 = vadd.f32 0.0, %v2919
      %2921 = vmatmul.f32.gmra.mxu0 %v2858
      %v2922 = vpop.f32.mrf.mxu0
      %v2923 = vadd.f32 0.0, %v2922
      %2924 = vmatmul.f32.gmra.mxu0 %v2861
      %v2925 = vpop.f32.mrf.mxu0
      %v2926 = vadd.f32 0.0, %v2925
      %2927 = vmatmul.f32.gmra.mxu0 %v2864
      %v2928 = vpop.f32.mrf.mxu0
      %v2929 = vadd.f32 0.0, %v2928
      %2930 = vmatmul.f32.gmra.mxu0 %v2867
      %v2931 = vpop.f32.mrf.mxu0
      %v2932 = vadd.f32 0.0, %v2931
      %2933 = vmatmul.f32.gmra.mxu0 %v2870
      %v2934 = vpop.f32.mrf.mxu0
      %v2935 = vadd.f32 0.0, %v2934
      %2936 = vmatmul.f32.gmra.mxu0 %v2873
      %v2937 = vpop.f32.mrf.mxu0
      %v2938 = vadd.f32 0.0, %v2937
      %2939 = vmatmul.f32.gmra.mxu0 %v2876
      %v2940 = vpop.f32.mrf.mxu0
      %v2941 = vadd.f32 0.0, %v2940
      %2942 = vmatmul.f32.gmra.mxu0 %v2879
      %v2943 = vpop.f32.mrf.mxu0
      %v2944 = vadd.f32 0.0, %v2943
      %2945 = vmatmul.f32.gmra.mxu0 %v2882
      %v2946 = vpop.f32.mrf.mxu0
      %v2947 = vadd.f32 0.0, %v2946
      %2948 = vmatmul.f32.gmra.mxu0 %v2885
      %v2949 = vpop.f32.mrf.mxu0
      %v2950 = vadd.f32 0.0, %v2949
      %2951 = vmatmul.f32.gmra.mxu0 %v2888
      %v2952 = vpop.f32.mrf.mxu0
      %v2953 = vadd.f32 0.0, %v2952
      %2954 = vmatmul.f32.gmra.mxu0 %v2891
      %v2955 = vpop.f32.mrf.mxu0
      %v2956 = vadd.f32 0.0, %v2955
      %2957 = vmatmul.f32.gmra.mxu0 %v2894
      %v2958 = vpop.f32.mrf.mxu0
      %v2959 = vadd.f32 0.0, %v2958
      %2960 = vmatmul.f32.gmra.mxu0 %v2897
      %v2961 = vpop.f32.mrf.mxu0
      %v2962 = vadd.f32 0.0, %v2961
      %2963 = vdwg.mxu0
      %2964 = vst.msk [vmem:[%s242] sm:$0xff] %vm629, %v2917
      %2965 = vst.msk [vmem:[%s242 + $0x10] sm:$0xff] %vm629, %v2920
      %2966 = vst.msk [vmem:[%s242 + $0x20] sm:$0xff] %vm629, %v2923
      %2967 = vst.msk [vmem:[%s242 + $0x30] sm:$0xff] %vm629, %v2926
      %2968 = vst.msk [vmem:[%s242 + $0x40] sm:$0xff] %vm629, %v2929
      %2969 = vst.msk [vmem:[%s242 + $0x50] sm:$0xff] %vm629, %v2932
      %2970 = vst.msk [vmem:[%s242 + $0x60] sm:$0xff] %vm629, %v2935
      %2971 = vst.msk [vmem:[%s242 + $0x70] sm:$0xff] %vm629, %v2938
      %2972 = vst.msk [vmem:[%s242 + $0x80] sm:$0xff] %vm629, %v2941
      %2973 = vst.msk [vmem:[%s242 + $0x90] sm:$0xff] %vm629, %v2944
      %2974 = vst.msk [vmem:[%s242 + $0xa0] sm:$0xff] %vm629, %v2947
      %2975 = vst.msk [vmem:[%s242 + $0xb0] sm:$0xff] %vm629, %v2950
      %2976 = vst.msk [vmem:[%s242 + $0xc0] sm:$0xff] %vm629, %v2953
      %2977 = vst.msk [vmem:[%s242 + $0xd0] sm:$0xff] %vm629, %v2956
      %2978 = vst.msk [vmem:[%s242 + $0xe0] sm:$0xff] %vm629, %v2959
      %2979 = vst.msk [vmem:[%s242 + $0xf0] sm:$0xff] %vm629, %v2962
      %v2980 = vsel %vm629, %v2917, 0.0
      %v2981 = vsel %vm629, %v2920, 0.0
      %v2982 = vadd.f32 %v2980, %v2981
      %v2983 = vsel %vm629, %v2923, 0.0
      %v2984 = vadd.f32 %v2982, %v2983
      %v2985 = vsel %vm629, %v2926, 0.0
      %v2986 = vadd.f32 %v2984, %v2985
      %v2987 = vsel %vm629, %v2929, 0.0
      %v2988 = vadd.f32 %v2986, %v2987
      %v2989 = vsel %vm629, %v2932, 0.0
      %v2990 = vadd.f32 %v2988, %v2989
      %v2991 = vsel %vm629, %v2935, 0.0
      %v2992 = vadd.f32 %v2990, %v2991
      %v2993 = vsel %vm629, %v2938, 0.0
      %v2994 = vadd.f32 %v2992, %v2993
      %v2995 = vsel %vm629, %v2941, 0.0
      %v2996 = vadd.f32 %v2994, %v2995
      %v2997 = vsel %vm629, %v2944, 0.0
      %v2998 = vadd.f32 %v2996, %v2997
      %v2999 = vsel %vm629, %v2947, 0.0
      %v3000 = vadd.f32 %v2998, %v2999
      %v3001 = vsel %vm629, %v2950, 0.0
      %v3002 = vadd.f32 %v3000, %v3001
      %v3003 = vsel %vm629, %v2953, 0.0
      %v3004 = vadd.f32 %v3002, %v3003
      %v3005 = vsel %vm629, %v2956, 0.0
      %v3006 = vadd.f32 %v3004, %v3005
      %v3007 = vsel %vm629, %v2959, 0.0
      %v3008 = vadd.f32 %v3006, %v3007
      %v3009 = vsel %vm629, %v2962, 0.0
      %v3010 = vadd.f32 %v3008, %v3009
      %v3011 = vrot.slane %v3010, 4
      %v3012 = vadd.f32 %v3010, %v3011
      %v3013 = vrot.slane %v3012, 2
      %v3014 = vadd.f32 %v3012, %v3013
      %v3015 = vrot.slane %v3014, 1
      %v3016 = vadd.f32 %v3014, %v3015
      %v3017 = vadd.f32 %v3016, 0.0
      %v3018 = vmul.f32 %v2917, %v2917
      %v3019 = vmul.f32 %v2920, %v2920
      %v3020 = vmul.f32 %v2923, %v2923
      %v3021 = vmul.f32 %v2926, %v2926
      %v3022 = vmul.f32 %v2929, %v2929
      %v3023 = vmul.f32 %v2932, %v2932
      %v3024 = vmul.f32 %v2935, %v2935
      %v3025 = vmul.f32 %v2938, %v2938
      %v3026 = vmul.f32 %v2941, %v2941
      %v3027 = vmul.f32 %v2944, %v2944
      %v3028 = vmul.f32 %v2947, %v2947
      %v3029 = vmul.f32 %v2950, %v2950
      %v3030 = vmul.f32 %v2953, %v2953
      %v3031 = vmul.f32 %v2956, %v2956
      %v3032 = vmul.f32 %v2959, %v2959
      %v3033 = vmul.f32 %v2962, %v2962
      %v3034 = vsel %vm629, %v3018, 0.0
      %v3035 = vsel %vm629, %v3019, 0.0
      %v3036 = vadd.f32 %v3034, %v3035
      %v3037 = vsel %vm629, %v3020, 0.0
      %v3038 = vadd.f32 %v3036, %v3037
      %v3039 = vsel %vm629, %v3021, 0.0
      %v3040 = vadd.f32 %v3038, %v3039
      %v3041 = vsel %vm629, %v3022, 0.0
      %v3042 = vadd.f32 %v3040, %v3041
      %v3043 = vsel %vm629, %v3023, 0.0
      %v3044 = vadd.f32 %v3042, %v3043
      %v3045 = vsel %vm629, %v3024, 0.0
      %v3046 = vadd.f32 %v3044, %v3045
      %v3047 = vsel %vm629, %v3025, 0.0
      %v3048 = vadd.f32 %v3046, %v3047
      %v3049 = vsel %vm629, %v3026, 0.0
      %v3050 = vadd.f32 %v3048, %v3049
      %v3051 = vsel %vm629, %v3027, 0.0
      %v3052 = vadd.f32 %v3050, %v3051
      %v3053 = vsel %vm629, %v3028, 0.0
      %v3054 = vadd.f32 %v3052, %v3053
      %v3055 = vsel %vm629, %v3029, 0.0
      %v3056 = vadd.f32 %v3054, %v3055
      %v3057 = vsel %vm629, %v3030, 0.0
      %v3058 = vadd.f32 %v3056, %v3057
      %v3059 = vsel %vm629, %v3031, 0.0
      %v3060 = vadd.f32 %v3058, %v3059
      %v3061 = vsel %vm629, %v3032, 0.0
      %v3062 = vadd.f32 %v3060, %v3061
      %v3063 = vsel %vm629, %v3033, 0.0
      %v3064 = vadd.f32 %v3062, %v3063
      %v3065 = vrot.slane %v3064, 4
      %v3066 = vadd.f32 %v3064, %v3065
      %v3067 = vrot.slane %v3066, 2
      %v3068 = vadd.f32 %v3066, %v3067
      %v3069 = vrot.slane %v3068, 1
      %v3070 = vadd.f32 %v3068, %v3069
      %v3071 = vadd.f32 %v3070, 0.0
      %v3072 = vld [vmem:[#allocation2 + $0x1] sm:$0xff]
      %v3073 = vld [vmem:[#allocation2 + $0x11] sm:$0xff]
      %v3074 = vld [vmem:[#allocation2 + $0x21] sm:$0xff]
      %v3075 = vld [vmem:[#allocation2 + $0x31] sm:$0xff]
      %v3076 = vld [vmem:[#allocation2 + $0x41] sm:$0xff]
      %v3077 = vld [vmem:[#allocation2 + $0x51] sm:$0xff]
      %v3078 = vld [vmem:[#allocation2 + $0x61] sm:$0xff]
      %v3079 = vld [vmem:[#allocation2 + $0x71] sm:$0xff]
      %v3080 = vld [vmem:[#allocation2 + $0xa1] sm:$0xff]
      %v3081 = vld [vmem:[#allocation2 + $0xb1] sm:$0xff]
      %v3082 = vld [vmem:[#allocation2 + $0xc1] sm:$0xff]
      %v3083 = vld [vmem:[#allocation2 + $0xd1] sm:$0xff]
      %v3084 = vld [vmem:[#allocation2 + $0xe1] sm:$0xff]
      %v3085 = vld [vmem:[#allocation2 + $0xf1] sm:$0xff]
      %v3086 = vld [vmem:[#allocation2 + $0x101] sm:$0xff]
      %v3087 = vld [vmem:[#allocation2 + $0x111] sm:$0xff]
      %v3088 = vld [vmem:[#allocation2 + $0x2] sm:$0xff]
      %v3089 = vld [vmem:[#allocation2 + $0x12] sm:$0xff]
      %v3090 = vld [vmem:[#allocation2 + $0x22] sm:$0xff]
      %v3091 = vld [vmem:[#allocation2 + $0x32] sm:$0xff]
      %v3092 = vld [vmem:[#allocation2 + $0x42] sm:$0xff]
      %v3093 = vld [vmem:[#allocation2 + $0x52] sm:$0xff]
      %v3094 = vld [vmem:[#allocation2 + $0x62] sm:$0xff]
      %v3095 = vld [vmem:[#allocation2 + $0x72] sm:$0xff]
      %v3096 = vld [vmem:[#allocation2 + $0xa2] sm:$0xff]
      %v3097 = vld [vmem:[#allocation2 + $0xb2] sm:$0xff]
      %v3098 = vld [vmem:[#allocation2 + $0xc2] sm:$0xff]
      %v3099 = vld [vmem:[#allocation2 + $0xd2] sm:$0xff]
      %v3100 = vld [vmem:[#allocation2 + $0xe2] sm:$0xff]
      %v3101 = vld [vmem:[#allocation2 + $0xf2] sm:$0xff]
      %v3102 = vld [vmem:[#allocation2 + $0x102] sm:$0xff]
      %v3103 = vld [vmem:[#allocation2 + $0x112] sm:$0xff]
      %v3104 = vld [vmem:[%s2524 + $0x1] sm:$0xff]
      %v3105 = vld [vmem:[%s2524 + $0x11] sm:$0xff]
      %v3106 = vld [vmem:[%s2524 + $0x21] sm:$0xff]
      %v3107 = vld [vmem:[%s2524 + $0x31] sm:$0xff]
      %v3108 = vld [vmem:[%s2524 + $0x41] sm:$0xff]
      %v3109 = vld [vmem:[%s2524 + $0x51] sm:$0xff]
      %v3110 = vld [vmem:[%s2524 + $0x61] sm:$0xff]
      %v3111 = vld [vmem:[%s2524 + $0x71] sm:$0xff]
      %v3112 = vld [vmem:[%s2524 + $0xa1] sm:$0xff]
      %v3113 = vld [vmem:[%s2524 + $0xb1] sm:$0xff]
      %v3114 = vld [vmem:[%s2524 + $0xc1] sm:$0xff]
      %v3115 = vld [vmem:[%s2524 + $0xd1] sm:$0xff]
      %v3116 = vld [vmem:[%s2524 + $0xe1] sm:$0xff]
      %v3117 = vld [vmem:[%s2524 + $0xf1] sm:$0xff]
      %v3118 = vld [vmem:[%s2524 + $0x101] sm:$0xff]
      %v3119 = vld [vmem:[%s2524 + $0x111] sm:$0xff]
      %v3120 = vld [vmem:[%s2524 + $0x2] sm:$0xff]
      %v3121 = vld [vmem:[%s2524 + $0x12] sm:$0xff]
      %v3122 = vld [vmem:[%s2524 + $0x22] sm:$0xff]
      %v3123 = vld [vmem:[%s2524 + $0x32] sm:$0xff]
      %v3124 = vld [vmem:[%s2524 + $0x42] sm:$0xff]
      %v3125 = vld [vmem:[%s2524 + $0x52] sm:$0xff]
      %v3126 = vld [vmem:[%s2524 + $0x62] sm:$0xff]
      %v3127 = vld [vmem:[%s2524 + $0x72] sm:$0xff]
      %v3128 = vld [vmem:[%s2524 + $0xa2] sm:$0xff]
      %v3129 = vld [vmem:[%s2524 + $0xb2] sm:$0xff]
      %v3130 = vld [vmem:[%s2524 + $0xc2] sm:$0xff]
      %v3131 = vld [vmem:[%s2524 + $0xd2] sm:$0xff]
      %v3132 = vld [vmem:[%s2524 + $0xe2] sm:$0xff]
      %v3133 = vld [vmem:[%s2524 + $0xf2] sm:$0xff]
      %v3134 = vld [vmem:[%s2524 + $0x102] sm:$0xff]
      %v3135 = vld [vmem:[%s2524 + $0x112] sm:$0xff]
      %3152 = vrot.lane.b32.xlu0 %v3088, 8
      %v3153 = vpop.permute.xlu0 %3152
      %3154 = vrot.lane.b32.xlu0 %v3089, 8
      %v3155 = vpop.permute.xlu0 %3154
      %3156 = vrot.lane.b32.xlu0 %v3090, 8
      %v3157 = vpop.permute.xlu0 %3156
      %3158 = vrot.lane.b32.xlu0 %v3091, 8
      %v3159 = vpop.permute.xlu0 %3158
      %3160 = vrot.lane.b32.xlu0 %v3092, 8
      %v3161 = vpop.permute.xlu0 %3160
      %3162 = vrot.lane.b32.xlu0 %v3093, 8
      %v3163 = vpop.permute.xlu0 %3162
      %3164 = vrot.lane.b32.xlu0 %v3094, 8
      %v3165 = vpop.permute.xlu0 %3164
      %3166 = vrot.lane.b32.xlu0 %v3095, 8
      %v3167 = vpop.permute.xlu0 %3166
      %3168 = vrot.lane.b32.xlu0 %v3096, 8
      %v3169 = vpop.permute.xlu0 %3168
      %3170 = vrot.lane.b32.xlu0 %v3097, 8
      %v3171 = vpop.permute.xlu0 %3170
      %3172 = vrot.lane.b32.xlu0 %v3098, 8
      %v3173 = vpop.permute.xlu0 %3172
      %3174 = vrot.lane.b32.xlu0 %v3099, 8
      %v3175 = vpop.permute.xlu0 %3174
      %3176 = vrot.lane.b32.xlu0 %v3100, 8
      %v3177 = vpop.permute.xlu0 %3176
      %3178 = vrot.lane.b32.xlu0 %v3101, 8
      %v3179 = vpop.permute.xlu0 %3178
      %3180 = vrot.lane.b32.xlu0 %v3102, 8
      %v3181 = vpop.permute.xlu0 %3180
      %3182 = vrot.lane.b32.xlu0 %v3103, 8
      %v3183 = vpop.permute.xlu0 %3182
      %3216 = vrot.lane.b32.xlu0 %v3104, 16
      %v3217 = vpop.permute.xlu0 %3216
      %3218 = vrot.lane.b32.xlu0 %v3105, 16
      %v3219 = vpop.permute.xlu0 %3218
      %3220 = vrot.lane.b32.xlu0 %v3106, 16
      %v3221 = vpop.permute.xlu0 %3220
      %3222 = vrot.lane.b32.xlu0 %v3107, 16
      %v3223 = vpop.permute.xlu0 %3222
      %3224 = vrot.lane.b32.xlu0 %v3108, 16
      %v3225 = vpop.permute.xlu0 %3224
      %3226 = vrot.lane.b32.xlu0 %v3109, 16
      %v3227 = vpop.permute.xlu0 %3226
      %3228 = vrot.lane.b32.xlu0 %v3110, 16
      %v3229 = vpop.permute.xlu0 %3228
      %3230 = vrot.lane.b32.xlu0 %v3111, 16
      %v3231 = vpop.permute.xlu0 %3230
      %3232 = vrot.lane.b32.xlu0 %v3112, 16
      %v3233 = vpop.permute.xlu0 %3232
      %3234 = vrot.lane.b32.xlu0 %v3113, 16
      %v3235 = vpop.permute.xlu0 %3234
      %3236 = vrot.lane.b32.xlu0 %v3114, 16
      %v3237 = vpop.permute.xlu0 %3236
      %3238 = vrot.lane.b32.xlu0 %v3115, 16
      %v3239 = vpop.permute.xlu0 %3238
      %3240 = vrot.lane.b32.xlu0 %v3116, 16
      %v3241 = vpop.permute.xlu0 %3240
      %3242 = vrot.lane.b32.xlu0 %v3117, 16
      %v3243 = vpop.permute.xlu0 %3242
      %3244 = vrot.lane.b32.xlu0 %v3118, 16
      %v3245 = vpop.permute.xlu0 %3244
      %3246 = vrot.lane.b32.xlu0 %v3119, 16
      %v3247 = vpop.permute.xlu0 %3246
      %3280 = vrot.lane.b32.xlu0 %v3120, 24
      %v3281 = vpop.permute.xlu0 %3280
      %3282 = vrot.lane.b32.xlu0 %v3121, 24
      %v3283 = vpop.permute.xlu0 %3282
      %3284 = vrot.lane.b32.xlu0 %v3122, 24
      %v3285 = vpop.permute.xlu0 %3284
      %3286 = vrot.lane.b32.xlu0 %v3123, 24
      %v3287 = vpop.permute.xlu0 %3286
      %3288 = vrot.lane.b32.xlu0 %v3124, 24
      %v3289 = vpop.permute.xlu0 %3288
      %3290 = vrot.lane.b32.xlu0 %v3125, 24
      %v3291 = vpop.permute.xlu0 %3290
      %3292 = vrot.lane.b32.xlu0 %v3126, 24
      %v3293 = vpop.permute.xlu0 %3292
      %3294 = vrot.lane.b32.xlu0 %v3127, 24
      %v3295 = vpop.permute.xlu0 %3294
      %3296 = vrot.lane.b32.xlu0 %v3128, 24
      %v3297 = vpop.permute.xlu0 %3296
      %3298 = vrot.lane.b32.xlu0 %v3129, 24
      %v3299 = vpop.permute.xlu0 %3298
      %3300 = vrot.lane.b32.xlu0 %v3130, 24
      %v3301 = vpop.permute.xlu0 %3300
      %3302 = vrot.lane.b32.xlu0 %v3131, 24
      %v3303 = vpop.permute.xlu0 %3302
      %3304 = vrot.lane.b32.xlu0 %v3132, 24
      %v3305 = vpop.permute.xlu0 %3304
      %3306 = vrot.lane.b32.xlu0 %v3133, 24
      %v3307 = vpop.permute.xlu0 %3306
      %3308 = vrot.lane.b32.xlu0 %v3134, 24
      %v3309 = vpop.permute.xlu0 %3308
      %3310 = vrot.lane.b32.xlu0 %v3135, 24
      %v3311 = vpop.permute.xlu0 %3310
      %v3328 = vsel %vm646, %v3072, %v3153
      %v3329 = vsel %vm646, %v3073, %v3155
      %v3330 = vsel %vm646, %v3074, %v3157
      %v3331 = vsel %vm646, %v3075, %v3159
      %v3332 = vsel %vm646, %v3076, %v3161
      %v3333 = vsel %vm646, %v3077, %v3163
      %v3334 = vsel %vm646, %v3078, %v3165
      %v3335 = vsel %vm646, %v3079, %v3167
      %v3336 = vsel %vm646, %v3080, %v3169
      %v3337 = vsel %vm646, %v3081, %v3171
      %v3338 = vsel %vm646, %v3082, %v3173
      %v3339 = vsel %vm646, %v3083, %v3175
      %v3340 = vsel %vm646, %v3084, %v3177
      %v3341 = vsel %vm646, %v3085, %v3179
      %v3342 = vsel %vm646, %v3086, %v3181
      %v3343 = vsel %vm646, %v3087, %v3183
      %v3344 = vsel %vm1112, %v3328, %v3217
      %v3345 = vsel %vm1112, %v3329, %v3219
      %v3346 = vsel %vm1112, %v3330, %v3221
      %v3347 = vsel %vm1112, %v3331, %v3223
      %v3348 = vsel %vm1112, %v3332, %v3225
      %v3349 = vsel %vm1112, %v3333, %v3227
      %v3350 = vsel %vm1112, %v3334, %v3229
      %v3351 = vsel %vm1112, %v3335, %v3231
      %v3352 = vsel %vm1112, %v3336, %v3233
      %v3353 = vsel %vm1112, %v3337, %v3235
      %v3354 = vsel %vm1112, %v3338, %v3237
      %v3355 = vsel %vm1112, %v3339, %v3239
      %v3356 = vsel %vm1112, %v3340, %v3241
      %v3357 = vsel %vm1112, %v3341, %v3243
      %v3358 = vsel %vm1112, %v3342, %v3245
      %v3359 = vsel %vm1112, %v3343, %v3247
      %v3360 = vsel %vm2829, %v3344, %v3281
      %v3361 = vsel %vm2829, %v3345, %v3283
      %v3362 = vsel %vm2829, %v3346, %v3285
      %v3363 = vsel %vm2829, %v3347, %v3287
      %v3364 = vsel %vm2829, %v3348, %v3289
      %v3365 = vsel %vm2829, %v3349, %v3291
      %v3366 = vsel %vm2829, %v3350, %v3293
      %v3367 = vsel %vm2829, %v3351, %v3295
      %v3368 = vsel %vm2829, %v3352, %v3297
      %v3369 = vsel %vm2829, %v3353, %v3299
      %v3370 = vsel %vm2829, %v3354, %v3301
      %v3371 = vsel %vm2829, %v3355, %v3303
      %v3372 = vsel %vm2829, %v3356, %v3305
      %v3373 = vsel %vm2829, %v3357, %v3307
      %v3374 = vsel %vm2829, %v3358, %v3309
      %v3375 = vsel %vm2829, %v3359, %v3311
      %s3376 = scalar_lea.vmem %s2, 32
      %v3377 = vld [vmem:[%s3376] sm:$0xff]
      %v3378 = vld [vmem:[%s3376 + $0x8] sm:$0xff]
      %v3379 = vld [vmem:[%s3376 + $0x10] sm:$0xff]
      %v3380 = vld [vmem:[%s3376 + $0x18] sm:$0xff]
      %v3382 = vsel %vm2850, %v3360, 0
      %v3385 = vsel %vm2850, %v3361, 0
      %v3388 = vsel %vm2850, %v3362, 0
      %v3391 = vsel %vm2850, %v3363, 0
      %v3394 = vsel %vm2850, %v3364, 0
      %v3397 = vsel %vm2850, %v3365, 0
      %v3400 = vsel %vm2850, %v3366, 0
      %v3403 = vsel %vm2850, %v3367, 0
      %v3406 = vsel %vm2850, %v3368, 0
      %v3409 = vsel %vm2850, %v3369, 0
      %v3412 = vsel %vm2850, %v3370, 0
      %v3415 = vsel %vm2850, %v3371, 0
      %v3418 = vsel %vm2850, %v3372, 0
      %v3421 = vsel %vm2850, %v3373, 0
      %v3424 = vsel %vm2850, %v3374, 0
      %v3427 = vsel %vm2850, %v3375, 0
      %3429 = vmatpush.msra.mxu0 0.0
      %3430 = vmatpush.msra.mxu0 0.0
      %3431 = vmatpush.msra.mxu0 0.0
      %3432 = vmatpush.msra.mxu0 0.0
      %3433 = vmatpush.msra.mxu0 0.0
      %3434 = vmatpush.msra.mxu0 0.0
      %3435 = vmatpush.msra.mxu0 0.0
      %3436 = vmatpush.msra.mxu0 0.0
      %3437 = vmatpush.msra.mxu0 0.0
      %3438 = vmatpush.msra.mxu0 0.0
      %3439 = vmatpush.msra.mxu0 0.0
      %3440 = vmatpush.msra.mxu0 0.0
      %3441 = vmatpush.msra.mxu0 %v3380
      %3442 = vmatpush.msra.mxu0 %v3379
      %3443 = vmatpush.msra.mxu0 %v3378
      %3444 = vmatpush.msra.mxu0 %v3377
      %3445 = vmatmul.f32.gmra.mxu0 %v3382
      %v3446 = vpop.f32.mrf.mxu0
      %v3447 = vadd.f32 0.0, %v3446
      %3448 = vmatmul.f32.gmra.mxu0 %v3385
      %v3449 = vpop.f32.mrf.mxu0
      %v3450 = vadd.f32 0.0, %v3449
      %3451 = vmatmul.f32.gmra.mxu0 %v3388
      %v3452 = vpop.f32.mrf.mxu0
      %v3453 = vadd.f32 0.0, %v3452
      %3454 = vmatmul.f32.gmra.mxu0 %v3391
      %v3455 = vpop.f32.mrf.mxu0
      %v3456 = vadd.f32 0.0, %v3455
      %3457 = vmatmul.f32.gmra.mxu0 %v3394
      %v3458 = vpop.f32.mrf.mxu0
      %v3459 = vadd.f32 0.0, %v3458
      %3460 = vmatmul.f32.gmra.mxu0 %v3397
      %v3461 = vpop.f32.mrf.mxu0
      %v3462 = vadd.f32 0.0, %v3461
      %3463 = vmatmul.f32.gmra.mxu0 %v3400
      %v3464 = vpop.f32.mrf.mxu0
      %v3465 = vadd.f32 0.0, %v3464
      %3466 = vmatmul.f32.gmra.mxu0 %v3403
      %v3467 = vpop.f32.mrf.mxu0
      %v3468 = vadd.f32 0.0, %v3467
      %3469 = vmatmul.f32.gmra.mxu0 %v3406
      %v3470 = vpop.f32.mrf.mxu0
      %v3471 = vadd.f32 0.0, %v3470
      %3472 = vmatmul.f32.gmra.mxu0 %v3409
      %v3473 = vpop.f32.mrf.mxu0
      %v3474 = vadd.f32 0.0, %v3473
      %3475 = vmatmul.f32.gmra.mxu0 %v3412
      %v3476 = vpop.f32.mrf.mxu0
      %v3477 = vadd.f32 0.0, %v3476
      %3478 = vmatmul.f32.gmra.mxu0 %v3415
      %v3479 = vpop.f32.mrf.mxu0
      %v3480 = vadd.f32 0.0, %v3479
      %3481 = vmatmul.f32.gmra.mxu0 %v3418
      %v3482 = vpop.f32.mrf.mxu0
      %v3483 = vadd.f32 0.0, %v3482
      %3484 = vmatmul.f32.gmra.mxu0 %v3421
      %v3485 = vpop.f32.mrf.mxu0
      %v3486 = vadd.f32 0.0, %v3485
      %3487 = vmatmul.f32.gmra.mxu0 %v3424
      %v3488 = vpop.f32.mrf.mxu0
      %v3489 = vadd.f32 0.0, %v3488
      %3490 = vmatmul.f32.gmra.mxu0 %v3427
      %v3491 = vpop.f32.mrf.mxu0
      %v3492 = vadd.f32 0.0, %v3491
      %3493 = vdwg.mxu0
      %3510 = vrot.lane.b32.xlu0 %v3447, 4
      %v3511 = vpop.permute.xlu0 %3510
      %3512 = vrot.lane.b32.xlu0 %v3450, 4
      %v3513 = vpop.permute.xlu0 %3512
      %3514 = vrot.lane.b32.xlu0 %v3453, 4
      %v3515 = vpop.permute.xlu0 %3514
      %3516 = vrot.lane.b32.xlu0 %v3456, 4
      %v3517 = vpop.permute.xlu0 %3516
      %3518 = vrot.lane.b32.xlu0 %v3459, 4
      %v3519 = vpop.permute.xlu0 %3518
      %3520 = vrot.lane.b32.xlu0 %v3462, 4
      %v3521 = vpop.permute.xlu0 %3520
      %3522 = vrot.lane.b32.xlu0 %v3465, 4
      %v3523 = vpop.permute.xlu0 %3522
      %3524 = vrot.lane.b32.xlu0 %v3468, 4
      %v3525 = vpop.permute.xlu0 %3524
      %3526 = vrot.lane.b32.xlu0 %v3471, 4
      %v3527 = vpop.permute.xlu0 %3526
      %3528 = vrot.lane.b32.xlu0 %v3474, 4
      %v3529 = vpop.permute.xlu0 %3528
      %3530 = vrot.lane.b32.xlu0 %v3477, 4
      %v3531 = vpop.permute.xlu0 %3530
      %3532 = vrot.lane.b32.xlu0 %v3480, 4
      %v3533 = vpop.permute.xlu0 %3532
      %3534 = vrot.lane.b32.xlu0 %v3483, 4
      %v3535 = vpop.permute.xlu0 %3534
      %3536 = vrot.lane.b32.xlu0 %v3486, 4
      %v3537 = vpop.permute.xlu0 %3536
      %3538 = vrot.lane.b32.xlu0 %v3489, 4
      %v3539 = vpop.permute.xlu0 %3538
      %3540 = vrot.lane.b32.xlu0 %v3492, 4
      %v3541 = vpop.permute.xlu0 %3540
      %vm3558 = vcmask 64544
      %3559 = vst.msk [vmem:[%s242] sm:$0xff] %vm3558, %v3511
      %3560 = vst.msk [vmem:[%s242 + $0x10] sm:$0xff] %vm3558, %v3513
      %3561 = vst.msk [vmem:[%s242 + $0x20] sm:$0xff] %vm3558, %v3515
      %3562 = vst.msk [vmem:[%s242 + $0x30] sm:$0xff] %vm3558, %v3517
      %3563 = vst.msk [vmem:[%s242 + $0x40] sm:$0xff] %vm3558, %v3519
      %3564 = vst.msk [vmem:[%s242 + $0x50] sm:$0xff] %vm3558, %v3521
      %3565 = vst.msk [vmem:[%s242 + $0x60] sm:$0xff] %vm3558, %v3523
      %3566 = vst.msk [vmem:[%s242 + $0x70] sm:$0xff] %vm3558, %v3525
      %3567 = vst.msk [vmem:[%s242 + $0x80] sm:$0xff] %vm3558, %v3527
      %3568 = vst.msk [vmem:[%s242 + $0x90] sm:$0xff] %vm3558, %v3529
      %3569 = vst.msk [vmem:[%s242 + $0xa0] sm:$0xff] %vm3558, %v3531
      %3570 = vst.msk [vmem:[%s242 + $0xb0] sm:$0xff] %vm3558, %v3533
      %3571 = vst.msk [vmem:[%s242 + $0xc0] sm:$0xff] %vm3558, %v3535
      %3572 = vst.msk [vmem:[%s242 + $0xd0] sm:$0xff] %vm3558, %v3537
      %3573 = vst.msk [vmem:[%s242 + $0xe0] sm:$0xff] %vm3558, %v3539
      %3574 = vst.msk [vmem:[%s242 + $0xf0] sm:$0xff] %vm3558, %v3541
      %v3575 = vsel %vm629, %v3447, 0.0
      %v3576 = vsel %vm629, %v3450, 0.0
      %v3577 = vadd.f32 %v3575, %v3576
      %v3578 = vsel %vm629, %v3453, 0.0
      %v3579 = vadd.f32 %v3577, %v3578
      %v3580 = vsel %vm629, %v3456, 0.0
      %v3581 = vadd.f32 %v3579, %v3580
      %v3582 = vsel %vm629, %v3459, 0.0
      %v3583 = vadd.f32 %v3581, %v3582
      %v3584 = vsel %vm629, %v3462, 0.0
      %v3585 = vadd.f32 %v3583, %v3584
      %v3586 = vsel %vm629, %v3465, 0.0
      %v3587 = vadd.f32 %v3585, %v3586
      %v3588 = vsel %vm629, %v3468, 0.0
      %v3589 = vadd.f32 %v3587, %v3588
      %v3590 = vsel %vm629, %v3471, 0.0
      %v3591 = vadd.f32 %v3589, %v3590
      %v3592 = vsel %vm629, %v3474, 0.0
      %v3593 = vadd.f32 %v3591, %v3592
      %v3594 = vsel %vm629, %v3477, 0.0
      %v3595 = vadd.f32 %v3593, %v3594
      %v3596 = vsel %vm629, %v3480, 0.0
      %v3597 = vadd.f32 %v3595, %v3596
      %v3598 = vsel %vm629, %v3483, 0.0
      %v3599 = vadd.f32 %v3597, %v3598
      %v3600 = vsel %vm629, %v3486, 0.0
      %v3601 = vadd.f32 %v3599, %v3600
      %v3602 = vsel %vm629, %v3489, 0.0
      %v3603 = vadd.f32 %v3601, %v3602
      %v3604 = vsel %vm629, %v3492, 0.0
      %v3605 = vadd.f32 %v3603, %v3604
      %v3606 = vrot.slane %v3605, 4
      %v3607 = vadd.f32 %v3605, %v3606
      %v3608 = vrot.slane %v3607, 2
      %v3609 = vadd.f32 %v3607, %v3608
      %v3610 = vrot.slane %v3609, 1
      %v3611 = vadd.f32 %v3609, %v3610
      %v3612 = vadd.f32 %v3017, %v3611
      %v3613 = vmul.f32 %v3447, %v3447
      %v3614 = vmul.f32 %v3450, %v3450
      %v3615 = vmul.f32 %v3453, %v3453
      %v3616 = vmul.f32 %v3456, %v3456
      %v3617 = vmul.f32 %v3459, %v3459
      %v3618 = vmul.f32 %v3462, %v3462
      %v3619 = vmul.f32 %v3465, %v3465
      %v3620 = vmul.f32 %v3468, %v3468
      %v3621 = vmul.f32 %v3471, %v3471
      %v3622 = vmul.f32 %v3474, %v3474
      %v3623 = vmul.f32 %v3477, %v3477
      %v3624 = vmul.f32 %v3480, %v3480
      %v3625 = vmul.f32 %v3483, %v3483
      %v3626 = vmul.f32 %v3486, %v3486
      %v3627 = vmul.f32 %v3489, %v3489
      %v3628 = vmul.f32 %v3492, %v3492
      %v3629 = vsel %vm629, %v3613, 0.0
      %v3630 = vsel %vm629, %v3614, 0.0
      %v3631 = vadd.f32 %v3629, %v3630
      %v3632 = vsel %vm629, %v3615, 0.0
      %v3633 = vadd.f32 %v3631, %v3632
      %v3634 = vsel %vm629, %v3616, 0.0
      %v3635 = vadd.f32 %v3633, %v3634
      %v3636 = vsel %vm629, %v3617, 0.0
      %v3637 = vadd.f32 %v3635, %v3636
      %v3638 = vsel %vm629, %v3618, 0.0
      %v3639 = vadd.f32 %v3637, %v3638
      %v3640 = vsel %vm629, %v3619, 0.0
      %v3641 = vadd.f32 %v3639, %v3640
      %v3642 = vsel %vm629, %v3620, 0.0
      %v3643 = vadd.f32 %v3641, %v3642
      %v3644 = vsel %vm629, %v3621, 0.0
      %v3645 = vadd.f32 %v3643, %v3644
      %v3646 = vsel %vm629, %v3622, 0.0
      %v3647 = vadd.f32 %v3645, %v3646
      %v3648 = vsel %vm629, %v3623, 0.0
      %v3649 = vadd.f32 %v3647, %v3648
      %v3650 = vsel %vm629, %v3624, 0.0
      %v3651 = vadd.f32 %v3649, %v3650
      %v3652 = vsel %vm629, %v3625, 0.0
      %v3653 = vadd.f32 %v3651, %v3652
      %v3654 = vsel %vm629, %v3626, 0.0
      %v3655 = vadd.f32 %v3653, %v3654
      %v3656 = vsel %vm629, %v3627, 0.0
      %v3657 = vadd.f32 %v3655, %v3656
      %v3658 = vsel %vm629, %v3628, 0.0
      %v3659 = vadd.f32 %v3657, %v3658
      %v3660 = vrot.slane %v3659, 4
      %v3661 = vadd.f32 %v3659, %v3660
      %v3662 = vrot.slane %v3661, 2
      %v3663 = vadd.f32 %v3661, %v3662
      %v3664 = vrot.slane %v3663, 1
      %v3665 = vadd.f32 %v3663, %v3664
      %v3666 = vadd.f32 %v3071, %v3665
      %v3667 = vld [vmem:[%s2524] sm:$0xff]
      %v3668 = vld [vmem:[%s2524 + $0x10] sm:$0xff]
      %v3669 = vld [vmem:[%s2524 + $0x20] sm:$0xff]
      %v3670 = vld [vmem:[%s2524 + $0x30] sm:$0xff]
      %v3671 = vld [vmem:[%s2524 + $0x40] sm:$0xff]
      %v3672 = vld [vmem:[%s2524 + $0x50] sm:$0xff]
      %v3673 = vld [vmem:[%s2524 + $0x60] sm:$0xff]
      %v3674 = vld [vmem:[%s2524 + $0x70] sm:$0xff]
      %v3675 = vld [vmem:[%s2524 + $0xa0] sm:$0xff]
      %v3676 = vld [vmem:[%s2524 + $0xb0] sm:$0xff]
      %v3677 = vld [vmem:[%s2524 + $0xc0] sm:$0xff]
      %v3678 = vld [vmem:[%s2524 + $0xd0] sm:$0xff]
      %v3679 = vld [vmem:[%s2524 + $0xe0] sm:$0xff]
      %v3680 = vld [vmem:[%s2524 + $0xf0] sm:$0xff]
      %v3681 = vld [vmem:[%s2524 + $0x100] sm:$0xff]
      %v3682 = vld [vmem:[%s2524 + $0x110] sm:$0xff]
      %v3683 = vld [vmem:[%s2524 + $0x1] sm:$0xff]
      %v3684 = vld [vmem:[%s2524 + $0x11] sm:$0xff]
      %v3685 = vld [vmem:[%s2524 + $0x21] sm:$0xff]
      %v3686 = vld [vmem:[%s2524 + $0x31] sm:$0xff]
      %v3687 = vld [vmem:[%s2524 + $0x41] sm:$0xff]
      %v3688 = vld [vmem:[%s2524 + $0x51] sm:$0xff]
      %v3689 = vld [vmem:[%s2524 + $0x61] sm:$0xff]
      %v3690 = vld [vmem:[%s2524 + $0x71] sm:$0xff]
      %v3691 = vld [vmem:[%s2524 + $0xa1] sm:$0xff]
      %v3692 = vld [vmem:[%s2524 + $0xb1] sm:$0xff]
      %v3693 = vld [vmem:[%s2524 + $0xc1] sm:$0xff]
      %v3694 = vld [vmem:[%s2524 + $0xd1] sm:$0xff]
      %v3695 = vld [vmem:[%s2524 + $0xe1] sm:$0xff]
      %v3696 = vld [vmem:[%s2524 + $0xf1] sm:$0xff]
      %v3697 = vld [vmem:[%s2524 + $0x101] sm:$0xff]
      %v3698 = vld [vmem:[%s2524 + $0x111] sm:$0xff]
      %s3699 = scalar_lea.vmem [#allocation2], 32
      %v3700 = vld [vmem:[%s3699] sm:$0xff]
      %v3701 = vld [vmem:[%s3699 + $0x10] sm:$0xff]
      %v3702 = vld [vmem:[%s3699 + $0x20] sm:$0xff]
      %v3703 = vld [vmem:[%s3699 + $0x30] sm:$0xff]
      %v3704 = vld [vmem:[%s3699 + $0x40] sm:$0xff]
      %v3705 = vld [vmem:[%s3699 + $0x50] sm:$0xff]
      %v3706 = vld [vmem:[%s3699 + $0x60] sm:$0xff]
      %v3707 = vld [vmem:[%s3699 + $0x70] sm:$0xff]
      %v3708 = vld [vmem:[%s3699 + $0xa0] sm:$0xff]
      %v3709 = vld [vmem:[%s3699 + $0xb0] sm:$0xff]
      %v3710 = vld [vmem:[%s3699 + $0xc0] sm:$0xff]
      %v3711 = vld [vmem:[%s3699 + $0xd0] sm:$0xff]
      %v3712 = vld [vmem:[%s3699 + $0xe0] sm:$0xff]
      %v3713 = vld [vmem:[%s3699 + $0xf0] sm:$0xff]
      %v3714 = vld [vmem:[%s3699 + $0x100] sm:$0xff]
      %v3715 = vld [vmem:[%s3699 + $0x110] sm:$0xff]
      %v3716 = vld [vmem:[%s3699 + $0x1] sm:$0xff]
      %v3717 = vld [vmem:[%s3699 + $0x11] sm:$0xff]
      %v3718 = vld [vmem:[%s3699 + $0x21] sm:$0xff]
      %v3719 = vld [vmem:[%s3699 + $0x31] sm:$0xff]
      %v3720 = vld [vmem:[%s3699 + $0x41] sm:$0xff]
      %v3721 = vld [vmem:[%s3699 + $0x51] sm:$0xff]
      %v3722 = vld [vmem:[%s3699 + $0x61] sm:$0xff]
      %v3723 = vld [vmem:[%s3699 + $0x71] sm:$0xff]
      %v3724 = vld [vmem:[%s3699 + $0xa1] sm:$0xff]
      %v3725 = vld [vmem:[%s3699 + $0xb1] sm:$0xff]
      %v3726 = vld [vmem:[%s3699 + $0xc1] sm:$0xff]
      %v3727 = vld [vmem:[%s3699 + $0xd1] sm:$0xff]
      %v3728 = vld [vmem:[%s3699 + $0xe1] sm:$0xff]
      %v3729 = vld [vmem:[%s3699 + $0xf1] sm:$0xff]
      %v3730 = vld [vmem:[%s3699 + $0x101] sm:$0xff]
      %v3731 = vld [vmem:[%s3699 + $0x111] sm:$0xff]
      %3748 = vrot.lane.b32.xlu0 %v3683, 8
      %v3749 = vpop.permute.xlu0 %3748
      %3750 = vrot.lane.b32.xlu0 %v3684, 8
      %v3751 = vpop.permute.xlu0 %3750
      %3752 = vrot.lane.b32.xlu0 %v3685, 8
      %v3753 = vpop.permute.xlu0 %3752
      %3754 = vrot.lane.b32.xlu0 %v3686, 8
      %v3755 = vpop.permute.xlu0 %3754
      %3756 = vrot.lane.b32.xlu0 %v3687, 8
      %v3757 = vpop.permute.xlu0 %3756
      %3758 = vrot.lane.b32.xlu0 %v3688, 8
      %v3759 = vpop.permute.xlu0 %3758
      %3760 = vrot.lane.b32.xlu0 %v3689, 8
      %v3761 = vpop.permute.xlu0 %3760
      %3762 = vrot.lane.b32.xlu0 %v3690, 8
      %v3763 = vpop.permute.xlu0 %3762
      %3764 = vrot.lane.b32.xlu0 %v3691, 8
      %v3765 = vpop.permute.xlu0 %3764
      %3766 = vrot.lane.b32.xlu0 %v3692, 8
      %v3767 = vpop.permute.xlu0 %3766
      %3768 = vrot.lane.b32.xlu0 %v3693, 8
      %v3769 = vpop.permute.xlu0 %3768
      %3770 = vrot.lane.b32.xlu0 %v3694, 8
      %v3771 = vpop.permute.xlu0 %3770
      %3772 = vrot.lane.b32.xlu0 %v3695, 8
      %v3773 = vpop.permute.xlu0 %3772
      %3774 = vrot.lane.b32.xlu0 %v3696, 8
      %v3775 = vpop.permute.xlu0 %3774
      %3776 = vrot.lane.b32.xlu0 %v3697, 8
      %v3777 = vpop.permute.xlu0 %3776
      %3778 = vrot.lane.b32.xlu0 %v3698, 8
      %v3779 = vpop.permute.xlu0 %3778
      %3812 = vrot.lane.b32.xlu0 %v3700, 16
      %v3813 = vpop.permute.xlu0 %3812
      %3814 = vrot.lane.b32.xlu0 %v3701, 16
      %v3815 = vpop.permute.xlu0 %3814
      %3816 = vrot.lane.b32.xlu0 %v3702, 16
      %v3817 = vpop.permute.xlu0 %3816
      %3818 = vrot.lane.b32.xlu0 %v3703, 16
      %v3819 = vpop.permute.xlu0 %3818
      %3820 = vrot.lane.b32.xlu0 %v3704, 16
      %v3821 = vpop.permute.xlu0 %3820
      %3822 = vrot.lane.b32.xlu0 %v3705, 16
      %v3823 = vpop.permute.xlu0 %3822
      %3824 = vrot.lane.b32.xlu0 %v3706, 16
      %v3825 = vpop.permute.xlu0 %3824
      %3826 = vrot.lane.b32.xlu0 %v3707, 16
      %v3827 = vpop.permute.xlu0 %3826
      %3828 = vrot.lane.b32.xlu0 %v3708, 16
      %v3829 = vpop.permute.xlu0 %3828
      %3830 = vrot.lane.b32.xlu0 %v3709, 16
      %v3831 = vpop.permute.xlu0 %3830
      %3832 = vrot.lane.b32.xlu0 %v3710, 16
      %v3833 = vpop.permute.xlu0 %3832
      %3834 = vrot.lane.b32.xlu0 %v3711, 16
      %v3835 = vpop.permute.xlu0 %3834
      %3836 = vrot.lane.b32.xlu0 %v3712, 16
      %v3837 = vpop.permute.xlu0 %3836
      %3838 = vrot.lane.b32.xlu0 %v3713, 16
      %v3839 = vpop.permute.xlu0 %3838
      %3840 = vrot.lane.b32.xlu0 %v3714, 16
      %v3841 = vpop.permute.xlu0 %3840
      %3842 = vrot.lane.b32.xlu0 %v3715, 16
      %v3843 = vpop.permute.xlu0 %3842
      %3876 = vrot.lane.b32.xlu0 %v3716, 24
      %v3877 = vpop.permute.xlu0 %3876
      %3878 = vrot.lane.b32.xlu0 %v3717, 24
      %v3879 = vpop.permute.xlu0 %3878
      %3880 = vrot.lane.b32.xlu0 %v3718, 24
      %v3881 = vpop.permute.xlu0 %3880
      %3882 = vrot.lane.b32.xlu0 %v3719, 24
      %v3883 = vpop.permute.xlu0 %3882
      %3884 = vrot.lane.b32.xlu0 %v3720, 24
      %v3885 = vpop.permute.xlu0 %3884
      %3886 = vrot.lane.b32.xlu0 %v3721, 24
      %v3887 = vpop.permute.xlu0 %3886
      %3888 = vrot.lane.b32.xlu0 %v3722, 24
      %v3889 = vpop.permute.xlu0 %3888
      %3890 = vrot.lane.b32.xlu0 %v3723, 24
      %v3891 = vpop.permute.xlu0 %3890
      %3892 = vrot.lane.b32.xlu0 %v3724, 24
      %v3893 = vpop.permute.xlu0 %3892
      %3894 = vrot.lane.b32.xlu0 %v3725, 24
      %v3895 = vpop.permute.xlu0 %3894
      %3896 = vrot.lane.b32.xlu0 %v3726, 24
      %v3897 = vpop.permute.xlu0 %3896
      %3898 = vrot.lane.b32.xlu0 %v3727, 24
      %v3899 = vpop.permute.xlu0 %3898
      %3900 = vrot.lane.b32.xlu0 %v3728, 24
      %v3901 = vpop.permute.xlu0 %3900
      %3902 = vrot.lane.b32.xlu0 %v3729, 24
      %v3903 = vpop.permute.xlu0 %3902
      %3904 = vrot.lane.b32.xlu0 %v3730, 24
      %v3905 = vpop.permute.xlu0 %3904
      %3906 = vrot.lane.b32.xlu0 %v3731, 24
      %v3907 = vpop.permute.xlu0 %3906
      %v3924 = vsel %vm646, %v3667, %v3749
      %v3925 = vsel %vm646, %v3668, %v3751
      %v3926 = vsel %vm646, %v3669, %v3753
      %v3927 = vsel %vm646, %v3670, %v3755
      %v3928 = vsel %vm646, %v3671, %v3757
      %v3929 = vsel %vm646, %v3672, %v3759
      %v3930 = vsel %vm646, %v3673, %v3761
      %v3931 = vsel %vm646, %v3674, %v3763
      %v3932 = vsel %vm646, %v3675, %v3765
      %v3933 = vsel %vm646, %v3676, %v3767
      %v3934 = vsel %vm646, %v3677, %v3769
      %v3935 = vsel %vm646, %v3678, %v3771
      %v3936 = vsel %vm646, %v3679, %v3773
      %v3937 = vsel %vm646, %v3680, %v3775
      %v3938 = vsel %vm646, %v3681, %v3777
      %v3939 = vsel %vm646, %v3682, %v3779
      %v3940 = vsel %vm1112, %v3924, %v3813
      %v3941 = vsel %vm1112, %v3925, %v3815
      %v3942 = vsel %vm1112, %v3926, %v3817
      %v3943 = vsel %vm1112, %v3927, %v3819
      %v3944 = vsel %vm1112, %v3928, %v3821
      %v3945 = vsel %vm1112, %v3929, %v3823
      %v3946 = vsel %vm1112, %v3930, %v3825
      %v3947 = vsel %vm1112, %v3931, %v3827
      %v3948 = vsel %vm1112, %v3932, %v3829
      %v3949 = vsel %vm1112, %v3933, %v3831
      %v3950 = vsel %vm1112, %v3934, %v3833
      %v3951 = vsel %vm1112, %v3935, %v3835
      %v3952 = vsel %vm1112, %v3936, %v3837
      %v3953 = vsel %vm1112, %v3937, %v3839
      %v3954 = vsel %vm1112, %v3938, %v3841
      %v3955 = vsel %vm1112, %v3939, %v3843
      %v3956 = vsel %vm2829, %v3940, %v3877
      %v3957 = vsel %vm2829, %v3941, %v3879
      %v3958 = vsel %vm2829, %v3942, %v3881
      %v3959 = vsel %vm2829, %v3943, %v3883
      %v3960 = vsel %vm2829, %v3944, %v3885
      %v3961 = vsel %vm2829, %v3945, %v3887
      %v3962 = vsel %vm2829, %v3946, %v3889
      %v3963 = vsel %vm2829, %v3947, %v3891
      %v3964 = vsel %vm2829, %v3948, %v3893
      %v3965 = vsel %vm2829, %v3949, %v3895
      %v3966 = vsel %vm2829, %v3950, %v3897
      %v3967 = vsel %vm2829, %v3951, %v3899
      %v3968 = vsel %vm2829, %v3952, %v3901
      %v3969 = vsel %vm2829, %v3953, %v3903
      %v3970 = vsel %vm2829, %v3954, %v3905
      %v3971 = vsel %vm2829, %v3955, %v3907
      %s3972 = scalar_lea.vmem %s2, 64
      %v3973 = vld [vmem:[%s3972] sm:$0xff]
      %v3974 = vld [vmem:[%s3972 + $0x8] sm:$0xff]
      %v3975 = vld [vmem:[%s3972 + $0x10] sm:$0xff]
      %v3976 = vld [vmem:[%s3972 + $0x18] sm:$0xff]
      %v3978 = vsel %vm2850, %v3956, 0
      %v3981 = vsel %vm2850, %v3957, 0
      %v3984 = vsel %vm2850, %v3958, 0
      %v3987 = vsel %vm2850, %v3959, 0
      %v3990 = vsel %vm2850, %v3960, 0
      %v3993 = vsel %vm2850, %v3961, 0
      %v3996 = vsel %vm2850, %v3962, 0
      %v3999 = vsel %vm2850, %v3963, 0
      %v4002 = vsel %vm2850, %v3964, 0
      %v4005 = vsel %vm2850, %v3965, 0
      %v4008 = vsel %vm2850, %v3966, 0
      %v4011 = vsel %vm2850, %v3967, 0
      %v4014 = vsel %vm2850, %v3968, 0
      %v4017 = vsel %vm2850, %v3969, 0
      %v4020 = vsel %vm2850, %v3970, 0
      %v4023 = vsel %vm2850, %v3971, 0
      %4025 = vmatpush.msra.mxu0 0.0
      %4026 = vmatpush.msra.mxu0 0.0
      %4027 = vmatpush.msra.mxu0 0.0
      %4028 = vmatpush.msra.mxu0 0.0
      %4029 = vmatpush.msra.mxu0 0.0
      %4030 = vmatpush.msra.mxu0 0.0
      %4031 = vmatpush.msra.mxu0 0.0
      %4032 = vmatpush.msra.mxu0 0.0
      %4033 = vmatpush.msra.mxu0 0.0
      %4034 = vmatpush.msra.mxu0 0.0
      %4035 = vmatpush.msra.mxu0 0.0
      %4036 = vmatpush.msra.mxu0 0.0
      %4037 = vmatpush.msra.mxu0 %v3976
      %4038 = vmatpush.msra.mxu0 %v3975
      %4039 = vmatpush.msra.mxu0 %v3974
      %4040 = vmatpush.msra.mxu0 %v3973
      %4041 = vmatmul.f32.gmra.mxu0 %v3978
      %v4042 = vpop.f32.mrf.mxu0
      %v4043 = vadd.f32 0.0, %v4042
      %4044 = vmatmul.f32.gmra.mxu0 %v3981
      %v4045 = vpop.f32.mrf.mxu0
      %v4046 = vadd.f32 0.0, %v4045
      %4047 = vmatmul.f32.gmra.mxu0 %v3984
      %v4048 = vpop.f32.mrf.mxu0
      %v4049 = vadd.f32 0.0, %v4048
      %4050 = vmatmul.f32.gmra.mxu0 %v3987
      %v4051 = vpop.f32.mrf.mxu0
      %v4052 = vadd.f32 0.0, %v4051
      %4053 = vmatmul.f32.gmra.mxu0 %v3990
      %v4054 = vpop.f32.mrf.mxu0
      %v4055 = vadd.f32 0.0, %v4054
      %4056 = vmatmul.f32.gmra.mxu0 %v3993
      %v4057 = vpop.f32.mrf.mxu0
      %v4058 = vadd.f32 0.0, %v4057
      %4059 = vmatmul.f32.gmra.mxu0 %v3996
      %v4060 = vpop.f32.mrf.mxu0
      %v4061 = vadd.f32 0.0, %v4060
      %4062 = vmatmul.f32.gmra.mxu0 %v3999
      %v4063 = vpop.f32.mrf.mxu0
      %v4064 = vadd.f32 0.0, %v4063
      %4065 = vmatmul.f32.gmra.mxu0 %v4002
      %v4066 = vpop.f32.mrf.mxu0
      %v4067 = vadd.f32 0.0, %v4066
      %4068 = vmatmul.f32.gmra.mxu0 %v4005
      %v4069 = vpop.f32.mrf.mxu0
      %v4070 = vadd.f32 0.0, %v4069
      %4071 = vmatmul.f32.gmra.mxu0 %v4008
      %v4072 = vpop.f32.mrf.mxu0
      %v4073 = vadd.f32 0.0, %v4072
      %4074 = vmatmul.f32.gmra.mxu0 %v4011
      %v4075 = vpop.f32.mrf.mxu0
      %v4076 = vadd.f32 0.0, %v4075
      %4077 = vmatmul.f32.gmra.mxu0 %v4014
      %v4078 = vpop.f32.mrf.mxu0
      %v4079 = vadd.f32 0.0, %v4078
      %4080 = vmatmul.f32.gmra.mxu0 %v4017
      %v4081 = vpop.f32.mrf.mxu0
      %v4082 = vadd.f32 0.0, %v4081
      %4083 = vmatmul.f32.gmra.mxu0 %v4020
      %v4084 = vpop.f32.mrf.mxu0
      %v4085 = vadd.f32 0.0, %v4084
      %4086 = vmatmul.f32.gmra.mxu0 %v4023
      %v4087 = vpop.f32.mrf.mxu0
      %v4088 = vadd.f32 0.0, %v4087
      %4089 = vdwg.mxu0
      %s4090 = scalar_lea.vmem %s242, 8
      %4091 = vst.msk [vmem:[%s4090] sm:$0xff] %vm629, %v4043
      %4092 = vst.msk [vmem:[%s4090 + $0x10] sm:$0xff] %vm629, %v4046
      %4093 = vst.msk [vmem:[%s4090 + $0x20] sm:$0xff] %vm629, %v4049
      %4094 = vst.msk [vmem:[%s4090 + $0x30] sm:$0xff] %vm629, %v4052
      %4095 = vst.msk [vmem:[%s4090 + $0x40] sm:$0xff] %vm629, %v4055
      %4096 = vst.msk [vmem:[%s4090 + $0x50] sm:$0xff] %vm629, %v4058
      %4097 = vst.msk [vmem:[%s4090 + $0x60] sm:$0xff] %vm629, %v4061
      %4098 = vst.msk [vmem:[%s4090 + $0x70] sm:$0xff] %vm629, %v4064
      %4099 = vst.msk [vmem:[%s4090 + $0x80] sm:$0xff] %vm629, %v4067
      %4100 = vst.msk [vmem:[%s4090 + $0x90] sm:$0xff] %vm629, %v4070
      %4101 = vst.msk [vmem:[%s4090 + $0xa0] sm:$0xff] %vm629, %v4073
      %4102 = vst.msk [vmem:[%s4090 + $0xb0] sm:$0xff] %vm629, %v4076
      %4103 = vst.msk [vmem:[%s4090 + $0xc0] sm:$0xff] %vm629, %v4079
      %4104 = vst.msk [vmem:[%s4090 + $0xd0] sm:$0xff] %vm629, %v4082
      %4105 = vst.msk [vmem:[%s4090 + $0xe0] sm:$0xff] %vm629, %v4085
      %4106 = vst.msk [vmem:[%s4090 + $0xf0] sm:$0xff] %vm629, %v4088
      %v4107 = vsel %vm629, %v4043, 0.0
      %v4108 = vsel %vm629, %v4046, 0.0
      %v4109 = vadd.f32 %v4107, %v4108
      %v4110 = vsel %vm629, %v4049, 0.0
      %v4111 = vadd.f32 %v4109, %v4110
      %v4112 = vsel %vm629, %v4052, 0.0
      %v4113 = vadd.f32 %v4111, %v4112
      %v4114 = vsel %vm629, %v4055, 0.0
      %v4115 = vadd.f32 %v4113, %v4114
      %v4116 = vsel %vm629, %v4058, 0.0
      %v4117 = vadd.f32 %v4115, %v4116
      %v4118 = vsel %vm629, %v4061, 0.0
      %v4119 = vadd.f32 %v4117, %v4118
      %v4120 = vsel %vm629, %v4064, 0.0
      %v4121 = vadd.f32 %v4119, %v4120
      %v4122 = vsel %vm629, %v4067, 0.0
      %v4123 = vadd.f32 %v4121, %v4122
      %v4124 = vsel %vm629, %v4070, 0.0
      %v4125 = vadd.f32 %v4123, %v4124
      %v4126 = vsel %vm629, %v4073, 0.0
      %v4127 = vadd.f32 %v4125, %v4126
      %v4128 = vsel %vm629, %v4076, 0.0
      %v4129 = vadd.f32 %v4127, %v4128
      %v4130 = vsel %vm629, %v4079, 0.0
      %v4131 = vadd.f32 %v4129, %v4130
      %v4132 = vsel %vm629, %v4082, 0.0
      %v4133 = vadd.f32 %v4131, %v4132
      %v4134 = vsel %vm629, %v4085, 0.0
      %v4135 = vadd.f32 %v4133, %v4134
      %v4136 = vsel %vm629, %v4088, 0.0
      %v4137 = vadd.f32 %v4135, %v4136
      %v4138 = vrot.slane %v4137, 4
      %v4139 = vadd.f32 %v4137, %v4138
      %v4140 = vrot.slane %v4139, 2
      %v4141 = vadd.f32 %v4139, %v4140
      %v4142 = vrot.slane %v4141, 1
      %v4143 = vadd.f32 %v4141, %v4142
      %v4144 = vadd.f32 %v3612, %v4143
      %v4145 = vmul.f32 %v4043, %v4043
      %v4146 = vmul.f32 %v4046, %v4046
      %v4147 = vmul.f32 %v4049, %v4049
      %v4148 = vmul.f32 %v4052, %v4052
      %v4149 = vmul.f32 %v4055, %v4055
      %v4150 = vmul.f32 %v4058, %v4058
      %v4151 = vmul.f32 %v4061, %v4061
      %v4152 = vmul.f32 %v4064, %v4064
      %v4153 = vmul.f32 %v4067, %v4067
      %v4154 = vmul.f32 %v4070, %v4070
      %v4155 = vmul.f32 %v4073, %v4073
      %v4156 = vmul.f32 %v4076, %v4076
      %v4157 = vmul.f32 %v4079, %v4079
      %v4158 = vmul.f32 %v4082, %v4082
      %v4159 = vmul.f32 %v4085, %v4085
      %v4160 = vmul.f32 %v4088, %v4088
      %v4161 = vsel %vm629, %v4145, 0.0
      %v4162 = vsel %vm629, %v4146, 0.0
      %v4163 = vadd.f32 %v4161, %v4162
      %v4164 = vsel %vm629, %v4147, 0.0
      %v4165 = vadd.f32 %v4163, %v4164
      %v4166 = vsel %vm629, %v4148, 0.0
      %v4167 = vadd.f32 %v4165, %v4166
      %v4168 = vsel %vm629, %v4149, 0.0
      %v4169 = vadd.f32 %v4167, %v4168
      %v4170 = vsel %vm629, %v4150, 0.0
      %v4171 = vadd.f32 %v4169, %v4170
      %v4172 = vsel %vm629, %v4151, 0.0
      %v4173 = vadd.f32 %v4171, %v4172
      %v4174 = vsel %vm629, %v4152, 0.0
      %v4175 = vadd.f32 %v4173, %v4174
      %v4176 = vsel %vm629, %v4153, 0.0
      %v4177 = vadd.f32 %v4175, %v4176
      %v4178 = vsel %vm629, %v4154, 0.0
      %v4179 = vadd.f32 %v4177, %v4178
      %v4180 = vsel %vm629, %v4155, 0.0
      %v4181 = vadd.f32 %v4179, %v4180
      %v4182 = vsel %vm629, %v4156, 0.0
      %v4183 = vadd.f32 %v4181, %v4182
      %v4184 = vsel %vm629, %v4157, 0.0
      %v4185 = vadd.f32 %v4183, %v4184
      %v4186 = vsel %vm629, %v4158, 0.0
      %v4187 = vadd.f32 %v4185, %v4186
      %v4188 = vsel %vm629, %v4159, 0.0
      %v4189 = vadd.f32 %v4187, %v4188
      %v4190 = vsel %vm629, %v4160, 0.0
      %v4191 = vadd.f32 %v4189, %v4190
      %v4192 = vrot.slane %v4191, 4
      %v4193 = vadd.f32 %v4191, %v4192
      %v4194 = vrot.slane %v4193, 2
      %v4195 = vadd.f32 %v4193, %v4194
      %v4196 = vrot.slane %v4195, 1
      %v4197 = vadd.f32 %v4195, %v4196
      %v4198 = vadd.f32 %v3666, %v4197
      %v4199 = vld [vmem:[%s2524 + $0x1] sm:$0xff]
      %v4200 = vld [vmem:[%s2524 + $0x11] sm:$0xff]
      %v4201 = vld [vmem:[%s2524 + $0x21] sm:$0xff]
      %v4202 = vld [vmem:[%s2524 + $0x31] sm:$0xff]
      %v4203 = vld [vmem:[%s2524 + $0x41] sm:$0xff]
      %v4204 = vld [vmem:[%s2524 + $0x51] sm:$0xff]
      %v4205 = vld [vmem:[%s2524 + $0x61] sm:$0xff]
      %v4206 = vld [vmem:[%s2524 + $0x71] sm:$0xff]
      %v4207 = vld [vmem:[%s2524 + $0xa1] sm:$0xff]
      %v4208 = vld [vmem:[%s2524 + $0xb1] sm:$0xff]
      %v4209 = vld [vmem:[%s2524 + $0xc1] sm:$0xff]
      %v4210 = vld [vmem:[%s2524 + $0xd1] sm:$0xff]
      %v4211 = vld [vmem:[%s2524 + $0xe1] sm:$0xff]
      %v4212 = vld [vmem:[%s2524 + $0xf1] sm:$0xff]
      %v4213 = vld [vmem:[%s2524 + $0x101] sm:$0xff]
      %v4214 = vld [vmem:[%s2524 + $0x111] sm:$0xff]
      %v4215 = vld [vmem:[%s2524 + $0x2] sm:$0xff]
      %v4216 = vld [vmem:[%s2524 + $0x12] sm:$0xff]
      %v4217 = vld [vmem:[%s2524 + $0x22] sm:$0xff]
      %v4218 = vld [vmem:[%s2524 + $0x32] sm:$0xff]
      %v4219 = vld [vmem:[%s2524 + $0x42] sm:$0xff]
      %v4220 = vld [vmem:[%s2524 + $0x52] sm:$0xff]
      %v4221 = vld [vmem:[%s2524 + $0x62] sm:$0xff]
      %v4222 = vld [vmem:[%s2524 + $0x72] sm:$0xff]
      %v4223 = vld [vmem:[%s2524 + $0xa2] sm:$0xff]
      %v4224 = vld [vmem:[%s2524 + $0xb2] sm:$0xff]
      %v4225 = vld [vmem:[%s2524 + $0xc2] sm:$0xff]
      %v4226 = vld [vmem:[%s2524 + $0xd2] sm:$0xff]
      %v4227 = vld [vmem:[%s2524 + $0xe2] sm:$0xff]
      %v4228 = vld [vmem:[%s2524 + $0xf2] sm:$0xff]
      %v4229 = vld [vmem:[%s2524 + $0x102] sm:$0xff]
      %v4230 = vld [vmem:[%s2524 + $0x112] sm:$0xff]
      %v4231 = vld [vmem:[%s3699 + $0x1] sm:$0xff]
      %v4232 = vld [vmem:[%s3699 + $0x11] sm:$0xff]
      %v4233 = vld [vmem:[%s3699 + $0x21] sm:$0xff]
      %v4234 = vld [vmem:[%s3699 + $0x31] sm:$0xff]
      %v4235 = vld [vmem:[%s3699 + $0x41] sm:$0xff]
      %v4236 = vld [vmem:[%s3699 + $0x51] sm:$0xff]
      %v4237 = vld [vmem:[%s3699 + $0x61] sm:$0xff]
      %v4238 = vld [vmem:[%s3699 + $0x71] sm:$0xff]
      %v4239 = vld [vmem:[%s3699 + $0xa1] sm:$0xff]
      %v4240 = vld [vmem:[%s3699 + $0xb1] sm:$0xff]
      %v4241 = vld [vmem:[%s3699 + $0xc1] sm:$0xff]
      %v4242 = vld [vmem:[%s3699 + $0xd1] sm:$0xff]
      %v4243 = vld [vmem:[%s3699 + $0xe1] sm:$0xff]
      %v4244 = vld [vmem:[%s3699 + $0xf1] sm:$0xff]
      %v4245 = vld [vmem:[%s3699 + $0x101] sm:$0xff]
      %v4246 = vld [vmem:[%s3699 + $0x111] sm:$0xff]
      %v4247 = vld [vmem:[%s3699 + $0x2] sm:$0xff]
      %v4248 = vld [vmem:[%s3699 + $0x12] sm:$0xff]
      %v4249 = vld [vmem:[%s3699 + $0x22] sm:$0xff]
      %v4250 = vld [vmem:[%s3699 + $0x32] sm:$0xff]
      %v4251 = vld [vmem:[%s3699 + $0x42] sm:$0xff]
      %v4252 = vld [vmem:[%s3699 + $0x52] sm:$0xff]
      %v4253 = vld [vmem:[%s3699 + $0x62] sm:$0xff]
      %v4254 = vld [vmem:[%s3699 + $0x72] sm:$0xff]
      %v4255 = vld [vmem:[%s3699 + $0xa2] sm:$0xff]
      %v4256 = vld [vmem:[%s3699 + $0xb2] sm:$0xff]
      %v4257 = vld [vmem:[%s3699 + $0xc2] sm:$0xff]
      %v4258 = vld [vmem:[%s3699 + $0xd2] sm:$0xff]
      %v4259 = vld [vmem:[%s3699 + $0xe2] sm:$0xff]
      %v4260 = vld [vmem:[%s3699 + $0xf2] sm:$0xff]
      %v4261 = vld [vmem:[%s3699 + $0x102] sm:$0xff]
      %v4262 = vld [vmem:[%s3699 + $0x112] sm:$0xff]
      %4279 = vrot.lane.b32.xlu0 %v4215, 8
      %v4280 = vpop.permute.xlu0 %4279
      %4281 = vrot.lane.b32.xlu0 %v4216, 8
      %v4282 = vpop.permute.xlu0 %4281
      %4283 = vrot.lane.b32.xlu0 %v4217, 8
      %v4284 = vpop.permute.xlu0 %4283
      %4285 = vrot.lane.b32.xlu0 %v4218, 8
      %v4286 = vpop.permute.xlu0 %4285
      %4287 = vrot.lane.b32.xlu0 %v4219, 8
      %v4288 = vpop.permute.xlu0 %4287
      %4289 = vrot.lane.b32.xlu0 %v4220, 8
      %v4290 = vpop.permute.xlu0 %4289
      %4291 = vrot.lane.b32.xlu0 %v4221, 8
      %v4292 = vpop.permute.xlu0 %4291
      %4293 = vrot.lane.b32.xlu0 %v4222, 8
      %v4294 = vpop.permute.xlu0 %4293
      %4295 = vrot.lane.b32.xlu0 %v4223, 8
      %v4296 = vpop.permute.xlu0 %4295
      %4297 = vrot.lane.b32.xlu0 %v4224, 8
      %v4298 = vpop.permute.xlu0 %4297
      %4299 = vrot.lane.b32.xlu0 %v4225, 8
      %v4300 = vpop.permute.xlu0 %4299
      %4301 = vrot.lane.b32.xlu0 %v4226, 8
      %v4302 = vpop.permute.xlu0 %4301
      %4303 = vrot.lane.b32.xlu0 %v4227, 8
      %v4304 = vpop.permute.xlu0 %4303
      %4305 = vrot.lane.b32.xlu0 %v4228, 8
      %v4306 = vpop.permute.xlu0 %4305
      %4307 = vrot.lane.b32.xlu0 %v4229, 8
      %v4308 = vpop.permute.xlu0 %4307
      %4309 = vrot.lane.b32.xlu0 %v4230, 8
      %v4310 = vpop.permute.xlu0 %4309
      %4343 = vrot.lane.b32.xlu0 %v4231, 16
      %v4344 = vpop.permute.xlu0 %4343
      %4345 = vrot.lane.b32.xlu0 %v4232, 16
      %v4346 = vpop.permute.xlu0 %4345
      %4347 = vrot.lane.b32.xlu0 %v4233, 16
      %v4348 = vpop.permute.xlu0 %4347
      %4349 = vrot.lane.b32.xlu0 %v4234, 16
      %v4350 = vpop.permute.xlu0 %4349
      %4351 = vrot.lane.b32.xlu0 %v4235, 16
      %v4352 = vpop.permute.xlu0 %4351
      %4353 = vrot.lane.b32.xlu0 %v4236, 16
      %v4354 = vpop.permute.xlu0 %4353
      %4355 = vrot.lane.b32.xlu0 %v4237, 16
      %v4356 = vpop.permute.xlu0 %4355
      %4357 = vrot.lane.b32.xlu0 %v4238, 16
      %v4358 = vpop.permute.xlu0 %4357
      %4359 = vrot.lane.b32.xlu0 %v4239, 16
      %v4360 = vpop.permute.xlu0 %4359
      %4361 = vrot.lane.b32.xlu0 %v4240, 16
      %v4362 = vpop.permute.xlu0 %4361
      %4363 = vrot.lane.b32.xlu0 %v4241, 16
      %v4364 = vpop.permute.xlu0 %4363
      %4365 = vrot.lane.b32.xlu0 %v4242, 16
      %v4366 = vpop.permute.xlu0 %4365
      %4367 = vrot.lane.b32.xlu0 %v4243, 16
      %v4368 = vpop.permute.xlu0 %4367
      %4369 = vrot.lane.b32.xlu0 %v4244, 16
      %v4370 = vpop.permute.xlu0 %4369
      %4371 = vrot.lane.b32.xlu0 %v4245, 16
      %v4372 = vpop.permute.xlu0 %4371
      %4373 = vrot.lane.b32.xlu0 %v4246, 16
      %v4374 = vpop.permute.xlu0 %4373
      %4407 = vrot.lane.b32.xlu0 %v4247, 24
      %v4408 = vpop.permute.xlu0 %4407
      %4409 = vrot.lane.b32.xlu0 %v4248, 24
      %v4410 = vpop.permute.xlu0 %4409
      %4411 = vrot.lane.b32.xlu0 %v4249, 24
      %v4412 = vpop.permute.xlu0 %4411
      %4413 = vrot.lane.b32.xlu0 %v4250, 24
      %v4414 = vpop.permute.xlu0 %4413
      %4415 = vrot.lane.b32.xlu0 %v4251, 24
      %v4416 = vpop.permute.xlu0 %4415
      %4417 = vrot.lane.b32.xlu0 %v4252, 24
      %v4418 = vpop.permute.xlu0 %4417
      %4419 = vrot.lane.b32.xlu0 %v4253, 24
      %v4420 = vpop.permute.xlu0 %4419
      %4421 = vrot.lane.b32.xlu0 %v4254, 24
      %v4422 = vpop.permute.xlu0 %4421
      %4423 = vrot.lane.b32.xlu0 %v4255, 24
      %v4424 = vpop.permute.xlu0 %4423
      %4425 = vrot.lane.b32.xlu0 %v4256, 24
      %v4426 = vpop.permute.xlu0 %4425
      %4427 = vrot.lane.b32.xlu0 %v4257, 24
      %v4428 = vpop.permute.xlu0 %4427
      %4429 = vrot.lane.b32.xlu0 %v4258, 24
      %v4430 = vpop.permute.xlu0 %4429
      %4431 = vrot.lane.b32.xlu0 %v4259, 24
      %v4432 = vpop.permute.xlu0 %4431
      %4433 = vrot.lane.b32.xlu0 %v4260, 24
      %v4434 = vpop.permute.xlu0 %4433
      %4435 = vrot.lane.b32.xlu0 %v4261, 24
      %v4436 = vpop.permute.xlu0 %4435
      %4437 = vrot.lane.b32.xlu0 %v4262, 24
      %v4438 = vpop.permute.xlu0 %4437
      %v4455 = vsel %vm646, %v4199, %v4280
      %v4456 = vsel %vm646, %v4200, %v4282
      %v4457 = vsel %vm646, %v4201, %v4284
      %v4458 = vsel %vm646, %v4202, %v4286
      %v4459 = vsel %vm646, %v4203, %v4288
      %v4460 = vsel %vm646, %v4204, %v4290
      %v4461 = vsel %vm646, %v4205, %v4292
      %v4462 = vsel %vm646, %v4206, %v4294
      %v4463 = vsel %vm646, %v4207, %v4296
      %v4464 = vsel %vm646, %v4208, %v4298
      %v4465 = vsel %vm646, %v4209, %v4300
      %v4466 = vsel %vm646, %v4210, %v4302
      %v4467 = vsel %vm646, %v4211, %v4304
      %v4468 = vsel %vm646, %v4212, %v4306
      %v4469 = vsel %vm646, %v4213, %v4308
      %v4470 = vsel %vm646, %v4214, %v4310
      %v4471 = vsel %vm1112, %v4455, %v4344
      %v4472 = vsel %vm1112, %v4456, %v4346
      %v4473 = vsel %vm1112, %v4457, %v4348
      %v4474 = vsel %vm1112, %v4458, %v4350
      %v4475 = vsel %vm1112, %v4459, %v4352
      %v4476 = vsel %vm1112, %v4460, %v4354
      %v4477 = vsel %vm1112, %v4461, %v4356
      %v4478 = vsel %vm1112, %v4462, %v4358
      %v4479 = vsel %vm1112, %v4463, %v4360
      %v4480 = vsel %vm1112, %v4464, %v4362
      %v4481 = vsel %vm1112, %v4465, %v4364
      %v4482 = vsel %vm1112, %v4466, %v4366
      %v4483 = vsel %vm1112, %v4467, %v4368
      %v4484 = vsel %vm1112, %v4468, %v4370
      %v4485 = vsel %vm1112, %v4469, %v4372
      %v4486 = vsel %vm1112, %v4470, %v4374
      %v4487 = vsel %vm2829, %v4471, %v4408
      %v4488 = vsel %vm2829, %v4472, %v4410
      %v4489 = vsel %vm2829, %v4473, %v4412
      %v4490 = vsel %vm2829, %v4474, %v4414
      %v4491 = vsel %vm2829, %v4475, %v4416
      %v4492 = vsel %vm2829, %v4476, %v4418
      %v4493 = vsel %vm2829, %v4477, %v4420
      %v4494 = vsel %vm2829, %v4478, %v4422
      %v4495 = vsel %vm2829, %v4479, %v4424
      %v4496 = vsel %vm2829, %v4480, %v4426
      %v4497 = vsel %vm2829, %v4481, %v4428
      %v4498 = vsel %vm2829, %v4482, %v4430
      %v4499 = vsel %vm2829, %v4483, %v4432
      %v4500 = vsel %vm2829, %v4484, %v4434
      %v4501 = vsel %vm2829, %v4485, %v4436
      %v4502 = vsel %vm2829, %v4486, %v4438
      %s4503 = scalar_lea.vmem %s2, 96
      %v4504 = vld [vmem:[%s4503] sm:$0xff]
      %v4505 = vld [vmem:[%s4503 + $0x8] sm:$0xff]
      %v4506 = vld [vmem:[%s4503 + $0x10] sm:$0xff]
      %v4507 = vld [vmem:[%s4503 + $0x18] sm:$0xff]
      %v4509 = vsel %vm2850, %v4487, 0
      %v4512 = vsel %vm2850, %v4488, 0
      %v4515 = vsel %vm2850, %v4489, 0
      %v4518 = vsel %vm2850, %v4490, 0
      %v4521 = vsel %vm2850, %v4491, 0
      %v4524 = vsel %vm2850, %v4492, 0
      %v4527 = vsel %vm2850, %v4493, 0
      %v4530 = vsel %vm2850, %v4494, 0
      %v4533 = vsel %vm2850, %v4495, 0
      %v4536 = vsel %vm2850, %v4496, 0
      %v4539 = vsel %vm2850, %v4497, 0
      %v4542 = vsel %vm2850, %v4498, 0
      %v4545 = vsel %vm2850, %v4499, 0
      %v4548 = vsel %vm2850, %v4500, 0
      %v4551 = vsel %vm2850, %v4501, 0
      %v4554 = vsel %vm2850, %v4502, 0
      %4556 = vmatpush.msra.mxu0 0.0
      %4557 = vmatpush.msra.mxu0 0.0
      %4558 = vmatpush.msra.mxu0 0.0
      %4559 = vmatpush.msra.mxu0 0.0
      %4560 = vmatpush.msra.mxu0 0.0
      %4561 = vmatpush.msra.mxu0 0.0
      %4562 = vmatpush.msra.mxu0 0.0
      %4563 = vmatpush.msra.mxu0 0.0
      %4564 = vmatpush.msra.mxu0 0.0
      %4565 = vmatpush.msra.mxu0 0.0
      %4566 = vmatpush.msra.mxu0 0.0
      %4567 = vmatpush.msra.mxu0 0.0
      %4568 = vmatpush.msra.mxu0 %v4507
      %4569 = vmatpush.msra.mxu0 %v4506
      %4570 = vmatpush.msra.mxu0 %v4505
      %4571 = vmatpush.msra.mxu0 %v4504
      %4572 = vmatmul.f32.gmra.mxu0 %v4509
      %v4573 = vpop.f32.mrf.mxu0
      %v4574 = vadd.f32 0.0, %v4573
      %4575 = vmatmul.f32.gmra.mxu0 %v4512
      %v4576 = vpop.f32.mrf.mxu0
      %v4577 = vadd.f32 0.0, %v4576
      %4578 = vmatmul.f32.gmra.mxu0 %v4515
      %v4579 = vpop.f32.mrf.mxu0
      %v4580 = vadd.f32 0.0, %v4579
      %4581 = vmatmul.f32.gmra.mxu0 %v4518
      %v4582 = vpop.f32.mrf.mxu0
      %v4583 = vadd.f32 0.0, %v4582
      %4584 = vmatmul.f32.gmra.mxu0 %v4521
      %v4585 = vpop.f32.mrf.mxu0
      %v4586 = vadd.f32 0.0, %v4585
      %4587 = vmatmul.f32.gmra.mxu0 %v4524
      %v4588 = vpop.f32.mrf.mxu0
      %v4589 = vadd.f32 0.0, %v4588
      %4590 = vmatmul.f32.gmra.mxu0 %v4527
      %v4591 = vpop.f32.mrf.mxu0
      %v4592 = vadd.f32 0.0, %v4591
      %4593 = vmatmul.f32.gmra.mxu0 %v4530
      %v4594 = vpop.f32.mrf.mxu0
      %v4595 = vadd.f32 0.0, %v4594
      %4596 = vmatmul.f32.gmra.mxu0 %v4533
      %v4597 = vpop.f32.mrf.mxu0
      %v4598 = vadd.f32 0.0, %v4597
      %4599 = vmatmul.f32.gmra.mxu0 %v4536
      %v4600 = vpop.f32.mrf.mxu0
      %v4601 = vadd.f32 0.0, %v4600
      %4602 = vmatmul.f32.gmra.mxu0 %v4539
      %v4603 = vpop.f32.mrf.mxu0
      %v4604 = vadd.f32 0.0, %v4603
      %4605 = vmatmul.f32.gmra.mxu0 %v4542
      %v4606 = vpop.f32.mrf.mxu0
      %v4607 = vadd.f32 0.0, %v4606
      %4608 = vmatmul.f32.gmra.mxu0 %v4545
      %v4609 = vpop.f32.mrf.mxu0
      %v4610 = vadd.f32 0.0, %v4609
      %4611 = vmatmul.f32.gmra.mxu0 %v4548
      %v4612 = vpop.f32.mrf.mxu0
      %v4613 = vadd.f32 0.0, %v4612
      %4614 = vmatmul.f32.gmra.mxu0 %v4551
      %v4615 = vpop.f32.mrf.mxu0
      %v4616 = vadd.f32 0.0, %v4615
      %4617 = vmatmul.f32.gmra.mxu0 %v4554
      %v4618 = vpop.f32.mrf.mxu0
      %v4619 = vadd.f32 0.0, %v4618
      %4620 = vdwg.mxu0
      %4637 = vrot.lane.b32.xlu0 %v4574, 4
      %v4638 = vpop.permute.xlu0 %4637
      %4639 = vrot.lane.b32.xlu0 %v4577, 4
      %v4640 = vpop.permute.xlu0 %4639
      %4641 = vrot.lane.b32.xlu0 %v4580, 4
      %v4642 = vpop.permute.xlu0 %4641
      %4643 = vrot.lane.b32.xlu0 %v4583, 4
      %v4644 = vpop.permute.xlu0 %4643
      %4645 = vrot.lane.b32.xlu0 %v4586, 4
      %v4646 = vpop.permute.xlu0 %4645
      %4647 = vrot.lane.b32.xlu0 %v4589, 4
      %v4648 = vpop.permute.xlu0 %4647
      %4649 = vrot.lane.b32.xlu0 %v4592, 4
      %v4650 = vpop.permute.xlu0 %4649
      %4651 = vrot.lane.b32.xlu0 %v4595, 4
      %v4652 = vpop.permute.xlu0 %4651
      %4653 = vrot.lane.b32.xlu0 %v4598, 4
      %v4654 = vpop.permute.xlu0 %4653
      %4655 = vrot.lane.b32.xlu0 %v4601, 4
      %v4656 = vpop.permute.xlu0 %4655
      %4657 = vrot.lane.b32.xlu0 %v4604, 4
      %v4658 = vpop.permute.xlu0 %4657
      %4659 = vrot.lane.b32.xlu0 %v4607, 4
      %v4660 = vpop.permute.xlu0 %4659
      %4661 = vrot.lane.b32.xlu0 %v4610, 4
      %v4662 = vpop.permute.xlu0 %4661
      %4663 = vrot.lane.b32.xlu0 %v4613, 4
      %v4664 = vpop.permute.xlu0 %4663
      %4665 = vrot.lane.b32.xlu0 %v4616, 4
      %v4666 = vpop.permute.xlu0 %4665
      %4667 = vrot.lane.b32.xlu0 %v4619, 4
      %v4668 = vpop.permute.xlu0 %4667
      %4685 = vst.msk [vmem:[%s4090] sm:$0xff] %vm3558, %v4638
      %4686 = vst.msk [vmem:[%s4090 + $0x10] sm:$0xff] %vm3558, %v4640
      %4687 = vst.msk [vmem:[%s4090 + $0x20] sm:$0xff] %vm3558, %v4642
      %4688 = vst.msk [vmem:[%s4090 + $0x30] sm:$0xff] %vm3558, %v4644
      %4689 = vst.msk [vmem:[%s4090 + $0x40] sm:$0xff] %vm3558, %v4646
      %4690 = vst.msk [vmem:[%s4090 + $0x50] sm:$0xff] %vm3558, %v4648
      %4691 = vst.msk [vmem:[%s4090 + $0x60] sm:$0xff] %vm3558, %v4650
      %4692 = vst.msk [vmem:[%s4090 + $0x70] sm:$0xff] %vm3558, %v4652
      %4693 = vst.msk [vmem:[%s4090 + $0x80] sm:$0xff] %vm3558, %v4654
      %4694 = vst.msk [vmem:[%s4090 + $0x90] sm:$0xff] %vm3558, %v4656
      %4695 = vst.msk [vmem:[%s4090 + $0xa0] sm:$0xff] %vm3558, %v4658
      %4696 = vst.msk [vmem:[%s4090 + $0xb0] sm:$0xff] %vm3558, %v4660
      %4697 = vst.msk [vmem:[%s4090 + $0xc0] sm:$0xff] %vm3558, %v4662
      %4698 = vst.msk [vmem:[%s4090 + $0xd0] sm:$0xff] %vm3558, %v4664
      %4699 = vst.msk [vmem:[%s4090 + $0xe0] sm:$0xff] %vm3558, %v4666
      %4700 = vst.msk [vmem:[%s4090 + $0xf0] sm:$0xff] %vm3558, %v4668
      %v4701 = vsel %vm629, %v4574, 0.0
      %v4702 = vsel %vm629, %v4577, 0.0
      %v4703 = vadd.f32 %v4701, %v4702
      %v4704 = vsel %vm629, %v4580, 0.0
      %v4705 = vadd.f32 %v4703, %v4704
      %v4706 = vsel %vm629, %v4583, 0.0
      %v4707 = vadd.f32 %v4705, %v4706
      %v4708 = vsel %vm629, %v4586, 0.0
      %v4709 = vadd.f32 %v4707, %v4708
      %v4710 = vsel %vm629, %v4589, 0.0
      %v4711 = vadd.f32 %v4709, %v4710
      %v4712 = vsel %vm629, %v4592, 0.0
      %v4713 = vadd.f32 %v4711, %v4712
      %v4714 = vsel %vm629, %v4595, 0.0
      %v4715 = vadd.f32 %v4713, %v4714
      %v4716 = vsel %vm629, %v4598, 0.0
      %v4717 = vadd.f32 %v4715, %v4716
      %v4718 = vsel %vm629, %v4601, 0.0
      %v4719 = vadd.f32 %v4717, %v4718
      %v4720 = vsel %vm629, %v4604, 0.0
      %v4721 = vadd.f32 %v4719, %v4720
      %v4722 = vsel %vm629, %v4607, 0.0
      %v4723 = vadd.f32 %v4721, %v4722
      %v4724 = vsel %vm629, %v4610, 0.0
      %v4725 = vadd.f32 %v4723, %v4724
      %v4726 = vsel %vm629, %v4613, 0.0
      %v4727 = vadd.f32 %v4725, %v4726
      %v4728 = vsel %vm629, %v4616, 0.0
      %v4729 = vadd.f32 %v4727, %v4728
      %v4730 = vsel %vm629, %v4619, 0.0
      %v4731 = vadd.f32 %v4729, %v4730
      %v4732 = vrot.slane %v4731, 4
      %v4733 = vadd.f32 %v4731, %v4732
      %v4734 = vrot.slane %v4733, 2
      %v4735 = vadd.f32 %v4733, %v4734
      %v4736 = vrot.slane %v4735, 1
      %v4737 = vadd.f32 %v4735, %v4736
      %v4738 = vadd.f32 %v4144, %v4737
      %v4739 = vmul.f32 %v4574, %v4574
      %v4740 = vmul.f32 %v4577, %v4577
      %v4741 = vmul.f32 %v4580, %v4580
      %v4742 = vmul.f32 %v4583, %v4583
      %v4743 = vmul.f32 %v4586, %v4586
      %v4744 = vmul.f32 %v4589, %v4589
      %v4745 = vmul.f32 %v4592, %v4592
      %v4746 = vmul.f32 %v4595, %v4595
      %v4747 = vmul.f32 %v4598, %v4598
      %v4748 = vmul.f32 %v4601, %v4601
      %v4749 = vmul.f32 %v4604, %v4604
      %v4750 = vmul.f32 %v4607, %v4607
      %v4751 = vmul.f32 %v4610, %v4610
      %v4752 = vmul.f32 %v4613, %v4613
      %v4753 = vmul.f32 %v4616, %v4616
      %v4754 = vmul.f32 %v4619, %v4619
      %v4755 = vsel %vm629, %v4739, 0.0
      %v4756 = vsel %vm629, %v4740, 0.0
      %v4757 = vadd.f32 %v4755, %v4756
      %v4758 = vsel %vm629, %v4741, 0.0
      %v4759 = vadd.f32 %v4757, %v4758
      %v4760 = vsel %vm629, %v4742, 0.0
      %v4761 = vadd.f32 %v4759, %v4760
      %v4762 = vsel %vm629, %v4743, 0.0
      %v4763 = vadd.f32 %v4761, %v4762
      %v4764 = vsel %vm629, %v4744, 0.0
      %v4765 = vadd.f32 %v4763, %v4764
      %v4766 = vsel %vm629, %v4745, 0.0
      %v4767 = vadd.f32 %v4765, %v4766
      %v4768 = vsel %vm629, %v4746, 0.0
      %v4769 = vadd.f32 %v4767, %v4768
      %v4770 = vsel %vm629, %v4747, 0.0
      %v4771 = vadd.f32 %v4769, %v4770
      %v4772 = vsel %vm629, %v4748, 0.0
      %v4773 = vadd.f32 %v4771, %v4772
      %v4774 = vsel %vm629, %v4749, 0.0
      %v4775 = vadd.f32 %v4773, %v4774
      %v4776 = vsel %vm629, %v4750, 0.0
      %v4777 = vadd.f32 %v4775, %v4776
      %v4778 = vsel %vm629, %v4751, 0.0
      %v4779 = vadd.f32 %v4777, %v4778
      %v4780 = vsel %vm629, %v4752, 0.0
      %v4781 = vadd.f32 %v4779, %v4780
      %v4782 = vsel %vm629, %v4753, 0.0
      %v4783 = vadd.f32 %v4781, %v4782
      %v4784 = vsel %vm629, %v4754, 0.0
      %v4785 = vadd.f32 %v4783, %v4784
      %v4786 = vrot.slane %v4785, 4
      %v4787 = vadd.f32 %v4785, %v4786
      %v4788 = vrot.slane %v4787, 2
      %v4789 = vadd.f32 %v4787, %v4788
      %v4790 = vrot.slane %v4789, 1
      %v4791 = vadd.f32 %v4789, %v4790
      %v4792 = vadd.f32 %v4198, %v4791
      %vm4793 = vcmask 24576
      %4794 = vst.msk [vmem:[%s246] sm:$0x1] %vm4793, %v4738
      %4795 = vst.msk [vmem:[%s249] sm:$0x1] %vm4793, %v4792
      %s4796 = smul.u32 2, %s17
      %p4797 = scmp.lt.s32.totalorder %s4796, 3
      %s4798 = scalar_select %p4797, %s4796, 3
      %s4799 = smul.addr %s4798, 16
      %s4800 = smul.addr %s4799, 8
      %s4801 = scalar_lea.vmem %s3, %s4800
      %p4802 = scmp.lt.s32.totalorder %s17, 1
      %s4803 = scalar_select %p4802, %s17, 1
      %s4804 = scalar_lea.vmem %s4, %s4803
      %p4805 = scmp.lt.s32.totalorder %s17, 1
      %s4806 = scalar_select %p4805, %s17, 1
      %s4807 = scalar_lea.vmem %s5, %s4806
      // Predicated region
      $region33: #{unet_innermost_forward.2} parent=31 // pred_check
        %p4808 = pneg %p103
      $region34: #{unet_innermost_forward.2} parent=31 // pred_check_branch
        %4810 = sbr.rel (%p4808) target = $region36
      $region35: #{unet_innermost_forward.2} parent=31 // pred_region
        %s4811 = smul.u32 2, %s17
      $region36: #{unet_innermost_forward.2} parent=31 // pred_fallthru
        _
      // Predicated region
      $region37: #{unet_innermost_forward.2} parent=31 // pred_check
        %p4812 = pneg %p129
      $region38: #{unet_innermost_forward.2} parent=31 // pred_check_branch
        %4814 = sbr.rel (%p4812) target = $region40
      $region39: #{unet_innermost_forward.2} parent=31 // pred_region
        _
      $region40: #{unet_innermost_forward.2} parent=31 // pred_fallthru
        _
      // Predicated region
      $region41: #{unet_innermost_forward.2} parent=31 // pred_check
        %p4815 = pneg %p155
      $region42: #{unet_innermost_forward.2} parent=31 // pred_check_branch
        %4817 = sbr.rel (%p4815) target = $region44
      $region43: #{unet_innermost_forward.2} parent=31 // pred_region
        _
      $region44: #{unet_innermost_forward.2} parent=31 // pred_fallthru
        _
    $region32: #{unet_innermost_forward.2} parent=5 // pred_fallthru
      _
    %p4818 = scmp.le.s32.totalorder 2, %s12
    // Predicated region
    $region45: #{unet_innermost_forward.2} parent=5 // pred_check
      %p4819 = pneg %p4818
    $region46: #{unet_innermost_forward.2} parent=5 // pred_check_branch
      %4821 = sbr.rel (%p4819) target = $region48
    $region47: #{unet_innermost_forward.2} parent=5 // pred_region
      %s4822 = ssub.s32 %s12, 2
      // Predicated region
      $region49: #{unet_innermost_forward.2} parent=47 // pred_check
        %p4823 = pneg %p109
      $region50: #{unet_innermost_forward.2} parent=47 // pred_check_branch
        %4825 = sbr.rel (%p4823) target = $region52
      $region51: #{unet_innermost_forward.2} parent=47 // pred_region
        %s4826 = smul.u32 2, %s18
        %p4827 = scmp.lt.s32.totalorder %s4826, 3
        %s4828 = scalar_select %p4827, %s4826, 3
        %s4829 = smul.addr %s4828, 16
        %s4830 = smul.addr %s4829, 8
        %s4831 = scalar_lea.vmem %s3, %s4830
      $region52: #{unet_innermost_forward.2} parent=47 // pred_fallthru
        _
      // Predicated region
      $region53: #{unet_innermost_forward.2} parent=47 // pred_check
        %p4832 = pneg %p135
      $region54: #{unet_innermost_forward.2} parent=47 // pred_check_branch
        %4834 = sbr.rel (%p4832) target = $region56
      $region55: #{unet_innermost_forward.2} parent=47 // pred_region
        %p4835 = scmp.lt.s32.totalorder %s18, 1
        %s4836 = scalar_select %p4835, %s18, 1
        %s4837 = scalar_lea.vmem %s4, %s4836
      $region56: #{unet_innermost_forward.2} parent=47 // pred_fallthru
        _
      // Predicated region
      $region57: #{unet_innermost_forward.2} parent=47 // pred_check
        %p4838 = pneg %p161
      $region58: #{unet_innermost_forward.2} parent=47 // pred_check_branch
        %4840 = sbr.rel (%p4838) target = $region60
      $region59: #{unet_innermost_forward.2} parent=47 // pred_region
        %p4841 = scmp.lt.s32.totalorder %s18, 1
        %s4842 = scalar_select %p4841, %s18, 1
        %s4843 = scalar_lea.vmem %s5, %s4842
      $region60: #{unet_innermost_forward.2} parent=47 // pred_fallthru
        _
    $region48: #{unet_innermost_forward.2} parent=5 // pred_fallthru
      _
  $region6: #{unet_innermost_forward.2} parent=0 // loop_footer
    %s16 = sadd.s32 1, %s12
  $region7: #{unet_innermost_forward.2} parent=0 // loop_footer_branch
    %11 = sbr.rel target = $region3
  $region8: #{unet_innermost_forward.2} parent=0 // loop_exit
    _

</llo_original>
